<compile_context>
chip_gen: v7x
topology: tpu7x:2x2x1
jax: 0.10.0
libtpu: 0.0.40
codegen_flags: <defaults>
</compile_context>

<pallas_src>
import jax
import jax.numpy as jnp
from jax.experimental import pallas as pl
from jax.experimental.pallas import tpu as pltpu

LANE = 128


def _round_up(x, m):
    return (x + m - 1) // m * m


# ----------------------------------------------------------------------------
# Tiling / VMEM-budget selection (v7x: 64 MiB per TensorCore; v5e/v6e: 128 MiB)
# ----------------------------------------------------------------------------
def _choose_tiling(H, W, cin_p, cout_p):
    try:
        vmem_cap = int(pltpu.get_tpu_info().vmem_capacity_bytes)
    except Exception:  # pragma: no cover - conservative fallback
        vmem_cap = 128 * 1024 * 1024
    budget = int(0.35 * vmem_cap)          # headroom for pipelining slop
    wp = _round_up(W + 2, 8)
    # double-buffered bf16 weights (w1, w2)
    w_bytes = 2 * (9 * cin_p * cout_p * 2) + 2 * (9 * cout_p * cout_p * 2)

    def live_bytes(th):
        x_blk = 2 * (th + 4) * wp * cin_p * 2        # bf16 input block, 2 bufs
        o_blk = 2 * th * W * cout_p * 4              # f32 output block, 2 bufs
        mid = (th + 2) * (W + 16) * cout_p * 4       # f32 scratch
        return w_bytes + x_blk + o_blk + mid

    # >=2 tiles whenever H>=16 so the pipeline / both v7x cores have work.
    cap_rows = min(64, max(8, H // 2))
    cands = sorted((t for t in range(1, H + 1) if H % t == 0 and t <= cap_rows),
                   reverse=True)
    th = next((t for t in cands if live_bytes(t) <= budget), cands[-1])
    vmem_limit = int(min(0.9 * vmem_cap,
                         max(32 * 1024 * 1024, 2 * live_bytes(th))))
    return th, vmem_limit


# ----------------------------------------------------------------------------
# Fused kernel: [Conv3x3(pad=1) + folded-BN + ReLU] x 2 on one (image, H-tile)
# ----------------------------------------------------------------------------
def _conv3x3_bn_relu(src_ref, col0, nrows, ncols, w_ref, b_ref):
    """9 MXU matmuls (one per tap), bf16 operands, f32 accumulate + bias + ReLU.

    Output row r / col j reads src rows r+kh, cols col0+j+kw (kh,kw in 0..2),
    i.e. src holds the input shifted so its (row 0, col col0) is the (-1,-1)
    padding position of the first output element.
    """
    cin = src_ref.shape[-1]
    cout = w_ref.shape[-1]
    acc = jnp.zeros((nrows * ncols, cout), jnp.float32)
    for kh in range(3):
        for kw in range(3):
            slab = src_ref[kh:kh + nrows, col0 + kw:col0 + kw + ncols, :]
            slab = slab.reshape(nrows * ncols, cin).astype(jnp.bfloat16)
            acc += jnp.dot(slab, w_ref[kh * 3 + kw],
                           preferred_element_type=jnp.float32)
    acc = acc + b_ref[...]              # folded BN shift (broadcast)
    return jnp.maximum(acc, 0.0).reshape(nrows, ncols, cout)


def fused_basic_conv_block_kernel(x_ref, w1_ref, b1_ref, w2_ref, b2_ref,
                                  out_ref, mid_ref):
    # x_ref  : (TH+4, Wp, C1p) bf16  input tile; image col j at buffer col j+1,
    #          2-row H halo on each side (wrapper-padded / replicated).
    # w*_ref : (9, Cin_p, Cout_p) bf16, tap index = kh*3 + kw.
    # b*_ref : (1, Cout_p) f32 folded-BN shift.
    # out_ref: (TH, W, Cout_p) f32.
    # mid_ref: (TH+2, W+16, Cout_p) f32 scratch; y1 col j at buffer col j+8
    #          (sublane-aligned interior), 1-row halo top/bottom.
    TH, W, Cp = out_ref.shape
    h = pl.program_id(1)
    n_h = pl.num_programs(1)

    # ---- ConvModule #1: compute TH+2 rows (tile + 1-row halo each side) ----
    y1 = _conv3x3_bn_relu(x_ref, 0, TH + 2, W, w1_ref, b1_ref)

    # conv2's padding=1 zeros: two halo columns (cheap, per step — every value
    # conv2 reads is written in this same step, so nothing relies on scratch
    # state persisting across (possibly megacore-partitioned) grid steps).
    zcol = jnp.zeros((TH + 2, 1, Cp), jnp.float32)
    mid_ref[:, 7:8, :] = zcol
    mid_ref[:, 8 + W:9 + W, :] = zcol
    mid_ref[:, 8:8 + W, :] = y1          # sublane-aligned (offset 8) store

    # Image top/bottom edges: the halo row must be conv2's zero padding,
    # not conv1 applied to the wrapper's zero-padded rows.
    zrow = jnp.zeros((1, W + 2, Cp), jnp.float32)

    @pl.when(h == 0)
    def _():
        mid_ref[0:1, 7:9 + W, :] = zrow

    @pl.when(h == n_h - 1)
    def _():
        mid_ref[TH + 1:TH + 2, 7:9 + W, :] = zrow

    # ---- ConvModule #2: mid (with halo) -> output tile ----------------------
    y2 = _conv3x3_bn_relu(mid_ref, 7, TH, W, w2_ref, b2_ref)
    out_ref[...] = y2.astype(out_ref.dtype)


# ----------------------------------------------------------------------------
# Parameter setup / BN folding / channel padding (plain-JAX glue)
# ----------------------------------------------------------------------------
def _fold_bn_into_conv(w_oihw, gamma, beta, mean, var, eps=1e-5):
    """Conv(no bias) + BN(eval)  ==  Conv(w*scale) + shift."""
    scale = gamma / jnp.sqrt(var + eps)                       # (Cout,)
    w_folded = w_oihw * scale[:, None, None, None]            # (Cout,Cin,3,3)
    shift = beta - mean * scale                               # (Cout,)
    w_hwio = jnp.transpose(w_folded, (2, 3, 1, 0))            # (3,3,Cin,Cout)
    return w_hwio, shift.reshape(1, -1)


def _prep_conv_params(p, cin, cin_p, cout, cout_p, eps=1e-5):
    """Fold BN, zero-pad channels to lane width, flatten taps, cast to bf16."""
    w, gamma, beta, mean, var = p
    w_hwio, bias = _fold_bn_into_conv(w, gamma, beta, mean, var, eps)
    w_hwio = jnp.pad(w_hwio, ((0, 0), (0, 0),
                              (0, cin_p - cin), (0, cout_p - cout)))
    bias = jnp.pad(bias, ((0, 0), (0, cout_p - cout)))
    w_taps = w_hwio.reshape(9, cin_p, cout_p).astype(jnp.bfloat16)
    return w_taps, bias.astype(jnp.float32)


def make_params(key, in_channels, out_channels, num_convs=2):
    """Deterministic synthetic parameters mirroring BasicConvBlock.__init__."""
    params = []
    cin = in_channels
    for _ in range(num_convs):
        key, kw_, kg, kb, km, kv = jax.random.split(key, 6)
        w = jax.random.normal(kw_, (out_channels, cin, 3, 3), jnp.float32) * 0.1
        gamma = 1.0 + 0.1 * jax.random.normal(kg, (out_channels,), jnp.float32)
        beta = 0.1 * jax.random.normal(kb, (out_channels,), jnp.float32)
        mean = 0.1 * jax.random.normal(km, (out_channels,), jnp.float32)
        var = jnp.abs(jax.random.normal(kv, (out_channels,), jnp.float32)) + 0.5
        params.append((w, gamma, beta, mean, var))
        cin = out_channels
    return params


# ----------------------------------------------------------------------------
# BasicConvBlock forward (NCHW in; NHWC out by default to keep the kernel path
# lane-dense — pass out_layout="NCHW" for strict PyTorch layout parity)
# ----------------------------------------------------------------------------
def basic_conv_block_forward(x_nchw, params, eps=1e-5, out_layout="NHWC"):
    # Default configuration: num_convs=2, stride=1, dilation=1.  with_cp is a
    # training-only memory trick and does not change forward semantics.
    assert len(params) == 2, "fused kernel implements the default num_convs=2"
    N, Cin, H, W = x_nchw.shape
    Cout = params[0][0].shape[0]
    Cin_p = _round_up(Cin, LANE)
    Cout_p = _round_up(Cout, LANE)

    TH, vmem_limit = _choose_tiling(H, W, Cin_p, Cout_p)
    assert H % TH == 0
    n_tiles = H // TH
    Wp = _round_up(W + 2, 8)

    # NCHW -> NHWC, bf16 MXU input, channels zero-padded to the 128-lane width,
    # spatial pad: 2 rows top/bottom (fused 2-conv halo), 1 col left, >=1 right.
    x = jnp.transpose(x_nchw, (0, 2, 3, 1)).astype(jnp.bfloat16)
    x = jnp.pad(x, ((0, 0), (2, 2), (1, Wp - W - 1), (0, Cin_p - Cin)))
    # Replicate each H-tile's (TH+4)-row window so overlapping halos are
    # delivered by plain BlockSpec pipelining (no manual DMA).
    x_tiled = jnp.stack([x[:, h * TH:h * TH + TH + 4] for h in range(n_tiles)],
                        axis=1)                    # (N, nT, TH+4, Wp, Cin_p)

    w1, b1 = _prep_conv_params(params[0], Cin, Cin_p, Cout, Cout_p, eps)
    w2, b2 = _prep_conv_params(params[1], Cout, Cout_p, Cout, Cout_p, eps)

    out = pl.pallas_call(
        fused_basic_conv_block_kernel,
        out_shape=jax.ShapeDtypeStruct((N, H, W, Cout_p), jnp.float32),
        grid=(N, n_tiles),
        in_specs=[
            pl.BlockSpec((None, None, TH + 4, Wp, Cin_p),
                         lambda n, h: (n, h, 0, 0, 0)),
            pl.BlockSpec((9, Cin_p, Cout_p), lambda n, h: (0, 0, 0)),
            pl.BlockSpec((1, Cout_p), lambda n, h: (0, 0)),
            pl.BlockSpec((9, Cout_p, Cout_p), lambda n, h: (0, 0, 0)),
            pl.BlockSpec((1, Cout_p), lambda n, h: (0, 0)),
        ],
        out_specs=pl.BlockSpec((None, TH, W, Cout_p),
                               lambda n, h: (n, h, 0, 0)),
        scratch_shapes=[
            pltpu.VMEM((TH + 2, W + 16, Cout_p), jnp.float32),
        ],
        compiler_params=pltpu.CompilerParams(
            dimension_semantics=("parallel", "parallel"),
            vmem_limit_bytes=vmem_limit,
        ),
    )(x_tiled, w1, b1, w2, b2)

    out = out[..., :Cout]                             # drop lane padding
    if out_layout == "NCHW":
        out = jnp.transpose(out, (0, 3, 1, 2))
    return out


# ----------------------------------------------------------------------------
# References (for correctness checks)
# ----------------------------------------------------------------------------
def basic_conv_block_ref(x_nchw, params, eps=1e-5):
    """Pure-f32 module semantics: Conv -> BN(eval) -> ReLU, twice."""
    y = x_nchw.astype(jnp.float32)
    for (w, gamma, beta, mean, var) in params:
        y = jax.lax.conv_general_dilated(
            y, w, window_strides=(1, 1), padding=((1, 1), (1, 1)),
            dimension_numbers=("NCHW", "OIHW", "NCHW"))
        scale = gamma / jnp.sqrt(var + eps)
        shift = beta - mean * scale
        y = y * scale[None, :, None, None] + shift[None, :, None, None]
        y = jnp.maximum(y, 0.0)
    return y


def basic_conv_block_ref_bf16(x_nchw, params, eps=1e-5):
    """Mirrors the kernel's precision policy: BN folded into the weights,
    matmul operands rounded to bf16, accumulation / bias / ReLU in f32."""
    y = x_nchw.astype(jnp.float32)
    for (w, gamma, beta, mean, var) in params:
        scale = gamma / jnp.sqrt(var + eps)
        shift = beta - mean * scale
        wf = (w * scale[:, None, None, None]).astype(jnp.bfloat16)
        wf = wf.astype(jnp.float32)
        y_in = y.astype(jnp.bfloat16).astype(jnp.float32)
        y = jax.lax.conv_general_dilated(
            y_in, wf, window_strides=(1, 1), padding=((1, 1), (1, 1)),
            dimension_numbers=("NCHW", "OIHW", "NCHW"))
        y = y + shift[None, :, None, None]
        y = jnp.maximum(y, 0.0)
    return y


if __name__ == "__main__":
    # Small shapes consistent with the module: N=2, Cin=4, Cout=8, 16x16.
    key = jax.random.PRNGKey(0)
    key, kx = jax.random.split(key)
    x = jax.random.normal(kx, (2, 4, 16, 16), jnp.float32)   # NCHW input

    params = make_params(key, in_channels=4, out_channels=8, num_convs=2)

    out_nhwc = basic_conv_block_forward(x, params)           # NHWC output
    out_nhwc = jax.block_until_ready(out_nhwc)
    assert out_nhwc.shape == (2, 16, 16, 8), out_nhwc.shape
    out_nchw = jnp.transpose(out_nhwc, (0, 3, 1, 2))

    # Tight check vs. a reference using the kernel's own precision policy.
    ref_bf16 = basic_conv_block_ref_bf16(x, params)
    assert jnp.allclose(out_nchw, ref_bf16, atol=5e-3, rtol=5e-3), (
        float(jnp.max(jnp.abs(out_nchw - ref_bf16))))

    # Relaxed check vs. pure-f32 module semantics (bf16 MXU operands).
    ref_f32 = basic_conv_block_ref(x, params)
    assert jnp.allclose(out_nchw, ref_f32, atol=5e-2, rtol=5e-2), (
        float(jnp.max(jnp.abs(out_nchw - ref_f32))))

    print("KERNEL_OK")
</pallas_src>

<mosaic_0001>
module attributes {stable_mosaic.version = 11 : i64} {
  func.func @fused_basic_conv_block_kernel(%arg0: i32, %arg1: i32, %arg2: memref<1x1x12x24x128xbf16, #tpu.memory_space<vmem>>, %arg3: memref<9x128x128xbf16, #tpu.memory_space<vmem>>, %arg4: memref<1x128xf32, #tpu.memory_space<vmem>>, %arg5: memref<9x128x128xbf16, #tpu.memory_space<vmem>>, %arg6: memref<1x128xf32, #tpu.memory_space<vmem>>, %arg7: memref<1x8x16x128xf32, #tpu.memory_space<vmem>>, %arg8: memref<10x32x128xf32, #tpu.memory_space<vmem>>) attributes {dimension_semantics = [#tpu.dimension_semantics<parallel>, #tpu.dimension_semantics<parallel>], iteration_bounds = array<i64: 2, 2>, scalar_prefetch = 0 : i64, scratch_operands = 1 : i64, tpu.core_type = #tpu.core_type<tc>, window_params = [{transform_indices = @transform_0, window_bounds = array<i64: 1, 1, 12, 24, 128>}, {pipeline_mode = #tpu.pipeline_mode<synchronous>, transform_indices = @transform_1, window_bounds = array<i64: 9, 128, 128>}, {pipeline_mode = #tpu.pipeline_mode<synchronous>, transform_indices = @transform_2, window_bounds = array<i64: 1, 128>}, {pipeline_mode = #tpu.pipeline_mode<synchronous>, transform_indices = @transform_3, window_bounds = array<i64: 9, 128, 128>}, {pipeline_mode = #tpu.pipeline_mode<synchronous>, transform_indices = @transform_4, window_bounds = array<i64: 1, 128>}, {transform_indices = @transform_5, window_bounds = array<i64: 1, 8, 16, 128>}]} {
    %cst = arith.constant 0.000000e+00 : f32
    %0 = vector.broadcast %cst : f32 to vector<160x128xf32>
    %c0 = arith.constant 0 : index
    %c0_0 = arith.constant 0 : index
    %c0_1 = arith.constant 0 : index
    %c0_2 = arith.constant 0 : index
    %c0_3 = arith.constant 0 : index
    %1 = vector.load %arg2[%c0, %c0_0, %c0_1, %c0_2, %c0_3] : memref<1x1x12x24x128xbf16, #tpu.memory_space<vmem>>, vector<1x1x10x16x128xbf16>
    %2 = vector.shape_cast %1 : vector<1x1x10x16x128xbf16> to vector<10x16x128xbf16>
    %3 = vector.shape_cast %2 : vector<10x16x128xbf16> to vector<160x128xbf16>
    %c0_4 = arith.constant 0 : index
    %c0_5 = arith.constant 0 : index
    %c0_6 = arith.constant 0 : index
    %4 = vector.load %arg3[%c0_4, %c0_5, %c0_6] : memref<9x128x128xbf16, #tpu.memory_space<vmem>>, vector<1x128x128xbf16>
    %5 = vector.shape_cast %4 : vector<1x128x128xbf16> to vector<128x128xbf16>
    %cst_7 = arith.constant dense<0.000000e+00> : vector<160x128xf32>
    %6 = tpu.matmul %3, %5, %cst_7 {dimension_numbers = #tpu.dot_dimension_numbers<[1], [0], [0], [1], [0, 0, 1, 1], [], []>} : vector<160x128xbf16>, vector<128x128xbf16>, vector<160x128xf32> -> vector<160x128xf32>
    %7 = arith.addf %0, %6 : vector<160x128xf32>
    %c0_8 = arith.constant 0 : index
    %c0_9 = arith.constant 0 : index
    %c0_10 = arith.constant 0 : index
    %c1 = arith.constant 1 : index
    %c0_11 = arith.constant 0 : index
    %8 = vector.load %arg2[%c0_8, %c0_9, %c0_10, %c1, %c0_11] : memref<1x1x12x24x128xbf16, #tpu.memory_space<vmem>>, vector<1x1x10x16x128xbf16>
    %9 = vector.shape_cast %8 : vector<1x1x10x16x128xbf16> to vector<10x16x128xbf16>
    %10 = vector.shape_cast %9 : vector<10x16x128xbf16> to vector<160x128xbf16>
    %c1_12 = arith.constant 1 : index
    %c0_13 = arith.constant 0 : index
    %c0_14 = arith.constant 0 : index
    %11 = vector.load %arg3[%c1_12, %c0_13, %c0_14] : memref<9x128x128xbf16, #tpu.memory_space<vmem>>, vector<1x128x128xbf16>
    %12 = vector.shape_cast %11 : vector<1x128x128xbf16> to vector<128x128xbf16>
    %cst_15 = arith.constant dense<0.000000e+00> : vector<160x128xf32>
    %13 = tpu.matmul %10, %12, %cst_15 {dimension_numbers = #tpu.dot_dimension_numbers<[1], [0], [0], [1], [0, 0, 1, 1], [], []>} : vector<160x128xbf16>, vector<128x128xbf16>, vector<160x128xf32> -> vector<160x128xf32>
    %14 = arith.addf %7, %13 : vector<160x128xf32>
    %c0_16 = arith.constant 0 : index
    %c0_17 = arith.constant 0 : index
    %c0_18 = arith.constant 0 : index
    %c2 = arith.constant 2 : index
    %c0_19 = arith.constant 0 : index
    %15 = vector.load %arg2[%c0_16, %c0_17, %c0_18, %c2, %c0_19] : memref<1x1x12x24x128xbf16, #tpu.memory_space<vmem>>, vector<1x1x10x16x128xbf16>
    %16 = vector.shape_cast %15 : vector<1x1x10x16x128xbf16> to vector<10x16x128xbf16>
    %17 = vector.shape_cast %16 : vector<10x16x128xbf16> to vector<160x128xbf16>
    %c2_20 = arith.constant 2 : index
    %c0_21 = arith.constant 0 : index
    %c0_22 = arith.constant 0 : index
    %18 = vector.load %arg3[%c2_20, %c0_21, %c0_22] : memref<9x128x128xbf16, #tpu.memory_space<vmem>>, vector<1x128x128xbf16>
    %19 = vector.shape_cast %18 : vector<1x128x128xbf16> to vector<128x128xbf16>
    %cst_23 = arith.constant dense<0.000000e+00> : vector<160x128xf32>
    %20 = tpu.matmul %17, %19, %cst_23 {dimension_numbers = #tpu.dot_dimension_numbers<[1], [0], [0], [1], [0, 0, 1, 1], [], []>} : vector<160x128xbf16>, vector<128x128xbf16>, vector<160x128xf32> -> vector<160x128xf32>
    %21 = arith.addf %14, %20 : vector<160x128xf32>
    %c0_24 = arith.constant 0 : index
    %c0_25 = arith.constant 0 : index
    %c1_26 = arith.constant 1 : index
    %c0_27 = arith.constant 0 : index
    %c0_28 = arith.constant 0 : index
    %22 = vector.load %arg2[%c0_24, %c0_25, %c1_26, %c0_27, %c0_28] : memref<1x1x12x24x128xbf16, #tpu.memory_space<vmem>>, vector<1x1x10x16x128xbf16>
    %23 = vector.shape_cast %22 : vector<1x1x10x16x128xbf16> to vector<10x16x128xbf16>
    %24 = vector.shape_cast %23 : vector<10x16x128xbf16> to vector<160x128xbf16>
    %c3 = arith.constant 3 : index
    %c0_29 = arith.constant 0 : index
    %c0_30 = arith.constant 0 : index
    %25 = vector.load %arg3[%c3, %c0_29, %c0_30] : memref<9x128x128xbf16, #tpu.memory_space<vmem>>, vector<1x128x128xbf16>
    %26 = vector.shape_cast %25 : vector<1x128x128xbf16> to vector<128x128xbf16>
    %cst_31 = arith.constant dense<0.000000e+00> : vector<160x128xf32>
    %27 = tpu.matmul %24, %26, %cst_31 {dimension_numbers = #tpu.dot_dimension_numbers<[1], [0], [0], [1], [0, 0, 1, 1], [], []>} : vector<160x128xbf16>, vector<128x128xbf16>, vector<160x128xf32> -> vector<160x128xf32>
    %28 = arith.addf %21, %27 : vector<160x128xf32>
    %c0_32 = arith.constant 0 : index
    %c0_33 = arith.constant 0 : index
    %c1_34 = arith.constant 1 : index
    %c1_35 = arith.constant 1 : index
    %c0_36 = arith.constant 0 : index
    %29 = vector.load %arg2[%c0_32, %c0_33, %c1_34, %c1_35, %c0_36] : memref<1x1x12x24x128xbf16, #tpu.memory_space<vmem>>, vector<1x1x10x16x128xbf16>
    %30 = vector.shape_cast %29 : vector<1x1x10x16x128xbf16> to vector<10x16x128xbf16>
    %31 = vector.shape_cast %30 : vector<10x16x128xbf16> to vector<160x128xbf16>
    %c4 = arith.constant 4 : index
    %c0_37 = arith.constant 0 : index
    %c0_38 = arith.constant 0 : index
    %32 = vector.load %arg3[%c4, %c0_37, %c0_38] : memref<9x128x128xbf16, #tpu.memory_space<vmem>>, vector<1x128x128xbf16>
    %33 = vector.shape_cast %32 : vector<1x128x128xbf16> to vector<128x128xbf16>
    %cst_39 = arith.constant dense<0.000000e+00> : vector<160x128xf32>
    %34 = tpu.matmul %31, %33, %cst_39 {dimension_numbers = #tpu.dot_dimension_numbers<[1], [0], [0], [1], [0, 0, 1, 1], [], []>} : vector<160x128xbf16>, vector<128x128xbf16>, vector<160x128xf32> -> vector<160x128xf32>
    %35 = arith.addf %28, %34 : vector<160x128xf32>
    %c0_40 = arith.constant 0 : index
    %c0_41 = arith.constant 0 : index
    %c1_42 = arith.constant 1 : index
    %c2_43 = arith.constant 2 : index
    %c0_44 = arith.constant 0 : index
    %36 = vector.load %arg2[%c0_40, %c0_41, %c1_42, %c2_43, %c0_44] : memref<1x1x12x24x128xbf16, #tpu.memory_space<vmem>>, vector<1x1x10x16x128xbf16>
    %37 = vector.shape_cast %36 : vector<1x1x10x16x128xbf16> to vector<10x16x128xbf16>
    %38 = vector.shape_cast %37 : vector<10x16x128xbf16> to vector<160x128xbf16>
    %c5 = arith.constant 5 : index
    %c0_45 = arith.constant 0 : index
    %c0_46 = arith.constant 0 : index
    %39 = vector.load %arg3[%c5, %c0_45, %c0_46] : memref<9x128x128xbf16, #tpu.memory_space<vmem>>, vector<1x128x128xbf16>
    %40 = vector.shape_cast %39 : vector<1x128x128xbf16> to vector<128x128xbf16>
    %cst_47 = arith.constant dense<0.000000e+00> : vector<160x128xf32>
    %41 = tpu.matmul %38, %40, %cst_47 {dimension_numbers = #tpu.dot_dimension_numbers<[1], [0], [0], [1], [0, 0, 1, 1], [], []>} : vector<160x128xbf16>, vector<128x128xbf16>, vector<160x128xf32> -> vector<160x128xf32>
    %42 = arith.addf %35, %41 : vector<160x128xf32>
    %c0_48 = arith.constant 0 : index
    %c0_49 = arith.constant 0 : index
    %c2_50 = arith.constant 2 : index
    %c0_51 = arith.constant 0 : index
    %c0_52 = arith.constant 0 : index
    %43 = vector.load %arg2[%c0_48, %c0_49, %c2_50, %c0_51, %c0_52] : memref<1x1x12x24x128xbf16, #tpu.memory_space<vmem>>, vector<1x1x10x16x128xbf16>
    %44 = vector.shape_cast %43 : vector<1x1x10x16x128xbf16> to vector<10x16x128xbf16>
    %45 = vector.shape_cast %44 : vector<10x16x128xbf16> to vector<160x128xbf16>
    %c6 = arith.constant 6 : index
    %c0_53 = arith.constant 0 : index
    %c0_54 = arith.constant 0 : index
    %46 = vector.load %arg3[%c6, %c0_53, %c0_54] : memref<9x128x128xbf16, #tpu.memory_space<vmem>>, vector<1x128x128xbf16>
    %47 = vector.shape_cast %46 : vector<1x128x128xbf16> to vector<128x128xbf16>
    %cst_55 = arith.constant dense<0.000000e+00> : vector<160x128xf32>
    %48 = tpu.matmul %45, %47, %cst_55 {dimension_numbers = #tpu.dot_dimension_numbers<[1], [0], [0], [1], [0, 0, 1, 1], [], []>} : vector<160x128xbf16>, vector<128x128xbf16>, vector<160x128xf32> -> vector<160x128xf32>
    %49 = arith.addf %42, %48 : vector<160x128xf32>
    %c0_56 = arith.constant 0 : index
    %c0_57 = arith.constant 0 : index
    %c2_58 = arith.constant 2 : index
    %c1_59 = arith.constant 1 : index
    %c0_60 = arith.constant 0 : index
    %50 = vector.load %arg2[%c0_56, %c0_57, %c2_58, %c1_59, %c0_60] : memref<1x1x12x24x128xbf16, #tpu.memory_space<vmem>>, vector<1x1x10x16x128xbf16>
    %51 = vector.shape_cast %50 : vector<1x1x10x16x128xbf16> to vector<10x16x128xbf16>
    %52 = vector.shape_cast %51 : vector<10x16x128xbf16> to vector<160x128xbf16>
    %c7 = arith.constant 7 : index
    %c0_61 = arith.constant 0 : index
    %c0_62 = arith.constant 0 : index
    %53 = vector.load %arg3[%c7, %c0_61, %c0_62] : memref<9x128x128xbf16, #tpu.memory_space<vmem>>, vector<1x128x128xbf16>
    %54 = vector.shape_cast %53 : vector<1x128x128xbf16> to vector<128x128xbf16>
    %cst_63 = arith.constant dense<0.000000e+00> : vector<160x128xf32>
    %55 = tpu.matmul %52, %54, %cst_63 {dimension_numbers = #tpu.dot_dimension_numbers<[1], [0], [0], [1], [0, 0, 1, 1], [], []>} : vector<160x128xbf16>, vector<128x128xbf16>, vector<160x128xf32> -> vector<160x128xf32>
    %56 = arith.addf %49, %55 : vector<160x128xf32>
    %c0_64 = arith.constant 0 : index
    %c0_65 = arith.constant 0 : index
    %c2_66 = arith.constant 2 : index
    %c2_67 = arith.constant 2 : index
    %c0_68 = arith.constant 0 : index
    %57 = vector.load %arg2[%c0_64, %c0_65, %c2_66, %c2_67, %c0_68] : memref<1x1x12x24x128xbf16, #tpu.memory_space<vmem>>, vector<1x1x10x16x128xbf16>
    %58 = vector.shape_cast %57 : vector<1x1x10x16x128xbf16> to vector<10x16x128xbf16>
    %59 = vector.shape_cast %58 : vector<10x16x128xbf16> to vector<160x128xbf16>
    %c8 = arith.constant 8 : index
    %c0_69 = arith.constant 0 : index
    %c0_70 = arith.constant 0 : index
    %60 = vector.load %arg3[%c8, %c0_69, %c0_70] : memref<9x128x128xbf16, #tpu.memory_space<vmem>>, vector<1x128x128xbf16>
    %61 = vector.shape_cast %60 : vector<1x128x128xbf16> to vector<128x128xbf16>
    %cst_71 = arith.constant dense<0.000000e+00> : vector<160x128xf32>
    %62 = tpu.matmul %59, %61, %cst_71 {dimension_numbers = #tpu.dot_dimension_numbers<[1], [0], [0], [1], [0, 0, 1, 1], [], []>} : vector<160x128xbf16>, vector<128x128xbf16>, vector<160x128xf32> -> vector<160x128xf32>
    %63 = arith.addf %56, %62 : vector<160x128xf32>
    %c0_72 = arith.constant 0 : index
    %c0_73 = arith.constant 0 : index
    %64 = vector.load %arg4[%c0_72, %c0_73] : memref<1x128xf32, #tpu.memory_space<vmem>>, vector<1x128xf32>
    %65 = vector.broadcast %64 : vector<1x128xf32> to vector<160x128xf32>
    %66 = arith.addf %63, %65 : vector<160x128xf32>
    %cst_74 = arith.constant 0.000000e+00 : f32
    %67 = vector.broadcast %cst_74 : f32 to vector<160x128xf32>
    %68 = arith.maximumf %66, %67 : vector<160x128xf32>
    %69 = vector.shape_cast %68 : vector<160x128xf32> to vector<10x16x128xf32>
    %cst_75 = arith.constant 0.000000e+00 : f32
    %70 = vector.broadcast %cst_75 : f32 to vector<10x1x128xf32>
    %c0_76 = arith.constant 0 : index
    %c7_77 = arith.constant 7 : index
    %c0_78 = arith.constant 0 : index
    %71 = vector.load %arg8[%c0_76, %c7_77, %c0_78] : memref<10x32x128xf32, #tpu.memory_space<vmem>>, vector<10x1x128xf32>
    tpu.vector_store %arg8[%c0_76, %c7_77, %c0_78], %70 {strides = array<i32>} : memref<10x32x128xf32, #tpu.memory_space<vmem>>, vector<10x1x128xf32>,
    %c0_79 = arith.constant 0 : index
    %c24 = arith.constant 24 : index
    %c0_80 = arith.constant 0 : index
    %72 = vector.load %arg8[%c0_79, %c24, %c0_80] : memref<10x32x128xf32, #tpu.memory_space<vmem>>, vector<10x1x128xf32>
    tpu.vector_store %arg8[%c0_79, %c24, %c0_80], %70 {strides = array<i32>} : memref<10x32x128xf32, #tpu.memory_space<vmem>>, vector<10x1x128xf32>,
    %c0_81 = arith.constant 0 : index
    %c8_82 = arith.constant 8 : index
    %c0_83 = arith.constant 0 : index
    %73 = vector.load %arg8[%c0_81, %c8_82, %c0_83] : memref<10x32x128xf32, #tpu.memory_space<vmem>>, vector<10x16x128xf32>
    tpu.vector_store %arg8[%c0_81, %c8_82, %c0_83], %69 {strides = array<i32>} : memref<10x32x128xf32, #tpu.memory_space<vmem>>, vector<10x16x128xf32>,
    %cst_84 = arith.constant 0.000000e+00 : f32
    %74 = vector.broadcast %cst_84 : f32 to vector<1x18x128xf32>
    %c0_i32 = arith.constant 0 : i32
    %75 = arith.cmpi eq, %arg1, %c0_i32 : i32
    %76 = arith.extui %75 : i1 to i32
    %c0_i32_85 = arith.constant 0 : i32
    %77 = arith.cmpi ne, %76, %c0_i32_85 : i32
    scf.if %77 {
      %c0_157 = arith.constant 0 : index
      %c7_158 = arith.constant 7 : index
      %c0_159 = arith.constant 0 : index
      %154 = vector.load %arg8[%c0_157, %c7_158, %c0_159] : memref<10x32x128xf32, #tpu.memory_space<vmem>>, vector<1x18x128xf32>
      tpu.vector_store %arg8[%c0_157, %c7_158, %c0_159], %74 {strides = array<i32>} : memref<10x32x128xf32, #tpu.memory_space<vmem>>, vector<1x18x128xf32>,
    } else {
    }
    %c1_i32 = arith.constant 1 : i32
    %78 = arith.cmpi eq, %arg1, %c1_i32 : i32
    %79 = arith.extui %78 : i1 to i32
    %c0_i32_86 = arith.constant 0 : i32
    %80 = arith.cmpi ne, %79, %c0_i32_86 : i32
    scf.if %80 {
      %c9_157 = arith.constant 9 : index
      %c7_158 = arith.constant 7 : index
      %c0_159 = arith.constant 0 : index
      %154 = vector.load %arg8[%c9_157, %c7_158, %c0_159] : memref<10x32x128xf32, #tpu.memory_space<vmem>>, vector<1x18x128xf32>
      tpu.vector_store %arg8[%c9_157, %c7_158, %c0_159], %74 {strides = array<i32>} : memref<10x32x128xf32, #tpu.memory_space<vmem>>, vector<1x18x128xf32>,
    } else {
    }
    %cst_87 = arith.constant 0.000000e+00 : f32
    %81 = vector.broadcast %cst_87 : f32 to vector<128x128xf32>
    %c0_88 = arith.constant 0 : index
    %c7_89 = arith.constant 7 : index
    %c0_90 = arith.constant 0 : index
    %82 = vector.load %arg8[%c0_88, %c7_89, %c0_90] : memref<10x32x128xf32, #tpu.memory_space<vmem>>, vector<8x16x128xf32>
    %83 = vector.shape_cast %82 : vector<8x16x128xf32> to vector<128x128xf32>
    %84 = arith.truncf %83 : vector<128x128xf32> to vector<128x128xbf16>
    %c0_91 = arith.constant 0 : index
    %c0_92 = arith.constant 0 : index
    %c0_93 = arith.constant 0 : index
    %85 = vector.load %arg5[%c0_91, %c0_92, %c0_93] : memref<9x128x128xbf16, #tpu.memory_space<vmem>>, vector<1x128x128xbf16>
    %86 = vector.shape_cast %85 : vector<1x128x128xbf16> to vector<128x128xbf16>
    %cst_94 = arith.constant dense<0.000000e+00> : vector<128x128xf32>
    %87 = tpu.matmul %84, %86, %cst_94 {dimension_numbers = #tpu.dot_dimension_numbers<[1], [0], [0], [1], [0, 0, 1, 1], [], []>} : vector<128x128xbf16>, vector<128x128xbf16>, vector<128x128xf32> -> vector<128x128xf32>
    %88 = arith.addf %81, %87 : vector<128x128xf32>
    %c0_95 = arith.constant 0 : index
    %c8_96 = arith.constant 8 : index
    %c0_97 = arith.constant 0 : index
    %89 = vector.load %arg8[%c0_95, %c8_96, %c0_97] : memref<10x32x128xf32, #tpu.memory_space<vmem>>, vector<8x16x128xf32>
    %90 = vector.shape_cast %89 : vector<8x16x128xf32> to vector<128x128xf32>
    %91 = arith.truncf %90 : vector<128x128xf32> to vector<128x128xbf16>
    %c1_98 = arith.constant 1 : index
    %c0_99 = arith.constant 0 : index
    %c0_100 = arith.constant 0 : index
    %92 = vector.load %arg5[%c1_98, %c0_99, %c0_100] : memref<9x128x128xbf16, #tpu.memory_space<vmem>>, vector<1x128x128xbf16>
    %93 = vector.shape_cast %92 : vector<1x128x128xbf16> to vector<128x128xbf16>
    %cst_101 = arith.constant dense<0.000000e+00> : vector<128x128xf32>
    %94 = tpu.matmul %91, %93, %cst_101 {dimension_numbers = #tpu.dot_dimension_numbers<[1], [0], [0], [1], [0, 0, 1, 1], [], []>} : vector<128x128xbf16>, vector<128x128xbf16>, vector<128x128xf32> -> vector<128x128xf32>
    %95 = arith.addf %88, %94 : vector<128x128xf32>
    %c0_102 = arith.constant 0 : index
    %c9 = arith.constant 9 : index
    %c0_103 = arith.constant 0 : index
    %96 = vector.load %arg8[%c0_102, %c9, %c0_103] : memref<10x32x128xf32, #tpu.memory_space<vmem>>, vector<8x16x128xf32>
    %97 = vector.shape_cast %96 : vector<8x16x128xf32> to vector<128x128xf32>
    %98 = arith.truncf %97 : vector<128x128xf32> to vector<128x128xbf16>
    %c2_104 = arith.constant 2 : index
    %c0_105 = arith.constant 0 : index
    %c0_106 = arith.constant 0 : index
    %99 = vector.load %arg5[%c2_104, %c0_105, %c0_106] : memref<9x128x128xbf16, #tpu.memory_space<vmem>>, vector<1x128x128xbf16>
    %100 = vector.shape_cast %99 : vector<1x128x128xbf16> to vector<128x128xbf16>
    %cst_107 = arith.constant dense<0.000000e+00> : vector<128x128xf32>
    %101 = tpu.matmul %98, %100, %cst_107 {dimension_numbers = #tpu.dot_dimension_numbers<[1], [0], [0], [1], [0, 0, 1, 1], [], []>} : vector<128x128xbf16>, vector<128x128xbf16>, vector<128x128xf32> -> vector<128x128xf32>
    %102 = arith.addf %95, %101 : vector<128x128xf32>
    %c1_108 = arith.constant 1 : index
    %c7_109 = arith.constant 7 : index
    %c0_110 = arith.constant 0 : index
    %103 = vector.load %arg8[%c1_108, %c7_109, %c0_110] : memref<10x32x128xf32, #tpu.memory_space<vmem>>, vector<8x16x128xf32>
    %104 = vector.shape_cast %103 : vector<8x16x128xf32> to vector<128x128xf32>
    %105 = arith.truncf %104 : vector<128x128xf32> to vector<128x128xbf16>
    %c3_111 = arith.constant 3 : index
    %c0_112 = arith.constant 0 : index
    %c0_113 = arith.constant 0 : index
    %106 = vector.load %arg5[%c3_111, %c0_112, %c0_113] : memref<9x128x128xbf16, #tpu.memory_space<vmem>>, vector<1x128x128xbf16>
    %107 = vector.shape_cast %106 : vector<1x128x128xbf16> to vector<128x128xbf16>
    %cst_114 = arith.constant dense<0.000000e+00> : vector<128x128xf32>
    %108 = tpu.matmul %105, %107, %cst_114 {dimension_numbers = #tpu.dot_dimension_numbers<[1], [0], [0], [1], [0, 0, 1, 1], [], []>} : vector<128x128xbf16>, vector<128x128xbf16>, vector<128x128xf32> -> vector<128x128xf32>
    %109 = arith.addf %102, %108 : vector<128x128xf32>
    %c1_115 = arith.constant 1 : index
    %c8_116 = arith.constant 8 : index
    %c0_117 = arith.constant 0 : index
    %110 = vector.load %arg8[%c1_115, %c8_116, %c0_117] : memref<10x32x128xf32, #tpu.memory_space<vmem>>, vector<8x16x128xf32>
    %111 = vector.shape_cast %110 : vector<8x16x128xf32> to vector<128x128xf32>
    %112 = arith.truncf %111 : vector<128x128xf32> to vector<128x128xbf16>
    %c4_118 = arith.constant 4 : index
    %c0_119 = arith.constant 0 : index
    %c0_120 = arith.constant 0 : index
    %113 = vector.load %arg5[%c4_118, %c0_119, %c0_120] : memref<9x128x128xbf16, #tpu.memory_space<vmem>>, vector<1x128x128xbf16>
    %114 = vector.shape_cast %113 : vector<1x128x128xbf16> to vector<128x128xbf16>
    %cst_121 = arith.constant dense<0.000000e+00> : vector<128x128xf32>
    %115 = tpu.matmul %112, %114, %cst_121 {dimension_numbers = #tpu.dot_dimension_numbers<[1], [0], [0], [1], [0, 0, 1, 1], [], []>} : vector<128x128xbf16>, vector<128x128xbf16>, vector<128x128xf32> -> vector<128x128xf32>
    %116 = arith.addf %109, %115 : vector<128x128xf32>
    %c1_122 = arith.constant 1 : index
    %c9_123 = arith.constant 9 : index
    %c0_124 = arith.constant 0 : index
    %117 = vector.load %arg8[%c1_122, %c9_123, %c0_124] : memref<10x32x128xf32, #tpu.memory_space<vmem>>, vector<8x16x128xf32>
    %118 = vector.shape_cast %117 : vector<8x16x128xf32> to vector<128x128xf32>
    %119 = arith.truncf %118 : vector<128x128xf32> to vector<128x128xbf16>
    %c5_125 = arith.constant 5 : index
    %c0_126 = arith.constant 0 : index
    %c0_127 = arith.constant 0 : index
    %120 = vector.load %arg5[%c5_125, %c0_126, %c0_127] : memref<9x128x128xbf16, #tpu.memory_space<vmem>>, vector<1x128x128xbf16>
    %121 = vector.shape_cast %120 : vector<1x128x128xbf16> to vector<128x128xbf16>
    %cst_128 = arith.constant dense<0.000000e+00> : vector<128x128xf32>
    %122 = tpu.matmul %119, %121, %cst_128 {dimension_numbers = #tpu.dot_dimension_numbers<[1], [0], [0], [1], [0, 0, 1, 1], [], []>} : vector<128x128xbf16>, vector<128x128xbf16>, vector<128x128xf32> -> vector<128x128xf32>
    %123 = arith.addf %116, %122 : vector<128x128xf32>
    %c2_129 = arith.constant 2 : index
    %c7_130 = arith.constant 7 : index
    %c0_131 = arith.constant 0 : index
    %124 = vector.load %arg8[%c2_129, %c7_130, %c0_131] : memref<10x32x128xf32, #tpu.memory_space<vmem>>, vector<8x16x128xf32>
    %125 = vector.shape_cast %124 : vector<8x16x128xf32> to vector<128x128xf32>
    %126 = arith.truncf %125 : vector<128x128xf32> to vector<128x128xbf16>
    %c6_132 = arith.constant 6 : index
    %c0_133 = arith.constant 0 : index
    %c0_134 = arith.constant 0 : index
    %127 = vector.load %arg5[%c6_132, %c0_133, %c0_134] : memref<9x128x128xbf16, #tpu.memory_space<vmem>>, vector<1x128x128xbf16>
    %128 = vector.shape_cast %127 : vector<1x128x128xbf16> to vector<128x128xbf16>
    %cst_135 = arith.constant dense<0.000000e+00> : vector<128x128xf32>
    %129 = tpu.matmul %126, %128, %cst_135 {dimension_numbers = #tpu.dot_dimension_numbers<[1], [0], [0], [1], [0, 0, 1, 1], [], []>} : vector<128x128xbf16>, vector<128x128xbf16>, vector<128x128xf32> -> vector<128x128xf32>
    %130 = arith.addf %123, %129 : vector<128x128xf32>
    %c2_136 = arith.constant 2 : index
    %c8_137 = arith.constant 8 : index
    %c0_138 = arith.constant 0 : index
    %131 = vector.load %arg8[%c2_136, %c8_137, %c0_138] : memref<10x32x128xf32, #tpu.memory_space<vmem>>, vector<8x16x128xf32>
    %132 = vector.shape_cast %131 : vector<8x16x128xf32> to vector<128x128xf32>
    %133 = arith.truncf %132 : vector<128x128xf32> to vector<128x128xbf16>
    %c7_139 = arith.constant 7 : index
    %c0_140 = arith.constant 0 : index
    %c0_141 = arith.constant 0 : index
    %134 = vector.load %arg5[%c7_139, %c0_140, %c0_141] : memref<9x128x128xbf16, #tpu.memory_space<vmem>>, vector<1x128x128xbf16>
    %135 = vector.shape_cast %134 : vector<1x128x128xbf16> to vector<128x128xbf16>
    %cst_142 = arith.constant dense<0.000000e+00> : vector<128x128xf32>
    %136 = tpu.matmul %133, %135, %cst_142 {dimension_numbers = #tpu.dot_dimension_numbers<[1], [0], [0], [1], [0, 0, 1, 1], [], []>} : vector<128x128xbf16>, vector<128x128xbf16>, vector<128x128xf32> -> vector<128x128xf32>
    %137 = arith.addf %130, %136 : vector<128x128xf32>
    %c2_143 = arith.constant 2 : index
    %c9_144 = arith.constant 9 : index
    %c0_145 = arith.constant 0 : index
    %138 = vector.load %arg8[%c2_143, %c9_144, %c0_145] : memref<10x32x128xf32, #tpu.memory_space<vmem>>, vector<8x16x128xf32>
    %139 = vector.shape_cast %138 : vector<8x16x128xf32> to vector<128x128xf32>
    %140 = arith.truncf %139 : vector<128x128xf32> to vector<128x128xbf16>
    %c8_146 = arith.constant 8 : index
    %c0_147 = arith.constant 0 : index
    %c0_148 = arith.constant 0 : index
    %141 = vector.load %arg5[%c8_146, %c0_147, %c0_148] : memref<9x128x128xbf16, #tpu.memory_space<vmem>>, vector<1x128x128xbf16>
    %142 = vector.shape_cast %141 : vector<1x128x128xbf16> to vector<128x128xbf16>
    %cst_149 = arith.constant dense<0.000000e+00> : vector<128x128xf32>
    %143 = tpu.matmul %140, %142, %cst_149 {dimension_numbers = #tpu.dot_dimension_numbers<[1], [0], [0], [1], [0, 0, 1, 1], [], []>} : vector<128x128xbf16>, vector<128x128xbf16>, vector<128x128xf32> -> vector<128x128xf32>
    %144 = arith.addf %137, %143 : vector<128x128xf32>
    %c0_150 = arith.constant 0 : index
    %c0_151 = arith.constant 0 : index
    %145 = vector.load %arg6[%c0_150, %c0_151] : memref<1x128xf32, #tpu.memory_space<vmem>>, vector<1x128xf32>
    %146 = vector.broadcast %145 : vector<1x128xf32> to vector<128x128xf32>
    %147 = arith.addf %144, %146 : vector<128x128xf32>
    %cst_152 = arith.constant 0.000000e+00 : f32
    %148 = vector.broadcast %cst_152 : f32 to vector<128x128xf32>
    %149 = arith.maximumf %147, %148 : vector<128x128xf32>
    %150 = vector.shape_cast %149 : vector<128x128xf32> to vector<8x16x128xf32>
    %c0_153 = arith.constant 0 : index
    %c0_154 = arith.constant 0 : index
    %c0_155 = arith.constant 0 : index
    %c0_156 = arith.constant 0 : index
    %151 = vector.load %arg7[%c0_153, %c0_154, %c0_155, %c0_156] : memref<1x8x16x128xf32, #tpu.memory_space<vmem>>, vector<1x8x16x128xf32>
    %152 = vector.shape_cast %151 : vector<1x8x16x128xf32> to vector<8x16x128xf32>
    %153 = vector.shape_cast %150 : vector<8x16x128xf32> to vector<1x8x16x128xf32>
    tpu.vector_store %arg7[%c0_153, %c0_154, %c0_155, %c0_156], %153 {strides = array<i32>} : memref<1x8x16x128xf32, #tpu.memory_space<vmem>>, vector<1x8x16x128xf32>,
    return
  }
  func.func @transform_0(%arg0: i32, %arg1: i32) -> (i32, i32, i32, i32, i32) {
    %c0_i32 = arith.constant 0 : i32
    %c0_i32_0 = arith.constant 0 : i32
    %c0_i32_1 = arith.constant 0 : i32
    %c0_i32_2 = arith.constant 0 : i32
    return %arg0, %arg1, %c0_i32, %c0_i32_0, %c0_i32_1 : i32, i32, i32, i32, i32
  }
  func.func @transform_1(%arg0: i32, %arg1: i32) -> (i32, i32, i32) {
    %c0_i32 = arith.constant 0 : i32
    %c0_i32_0 = arith.constant 0 : i32
    %c0_i32_1 = arith.constant 0 : i32
    %c0_i32_2 = arith.constant 0 : i32
    return %c0_i32, %c0_i32_0, %c0_i32_1 : i32, i32, i32
  }
  func.func @transform_2(%arg0: i32, %arg1: i32) -> (i32, i32) {
    %c0_i32 = arith.constant 0 : i32
    %c0_i32_0 = arith.constant 0 : i32
    %c0_i32_1 = arith.constant 0 : i32
    return %c0_i32, %c0_i32_0 : i32, i32
  }
  func.func @transform_3(%arg0: i32, %arg1: i32) -> (i32, i32, i32) {
    %c0_i32 = arith.constant 0 : i32
    %c0_i32_0 = arith.constant 0 : i32
    %c0_i32_1 = arith.constant 0 : i32
    %c0_i32_2 = arith.constant 0 : i32
    return %c0_i32, %c0_i32_0, %c0_i32_1 : i32, i32, i32
  }
  func.func @transform_4(%arg0: i32, %arg1: i32) -> (i32, i32) {
    %c0_i32 = arith.constant 0 : i32
    %c0_i32_0 = arith.constant 0 : i32
    %c0_i32_1 = arith.constant 0 : i32
    return %c0_i32, %c0_i32_0 : i32, i32
  }
  func.func @transform_5(%arg0: i32, %arg1: i32) -> (i32, i32, i32, i32) {
    %c0_i32 = arith.constant 0 : i32
    %c0_i32_0 = arith.constant 0 : i32
    %c0_i32_1 = arith.constant 0 : i32
    return %arg0, %arg1, %c0_i32, %c0_i32_0 : i32, i32, i32, i32
  }
}

</mosaic_0001>

<llo_original>
// kernel: tpu_custom_call.1
$region0: #{tpu_custom_call.1}
  #allocation0 [shape = 'u32[]', space=smem, size = 0x4, offset = 0x4, fixed_abs, tag = 'smem constant byte address 0x4 - core index']
  #allocation1 [shape = 'u32[144,128]{1,0:T(1,128)}', space=vmem, size = 0x12000, scoped, tag = 'internal scratch']
  #allocation2 [shape = 'f32[10,32,128]{2,1,0:T(8,128)}', space=vmem, size = 0x28000, scoped, tag = 'scratch operand']
  %s0 = inlined_call_operand.hbm [shape: bf16[2,2,12,24,128], index: 0, kind: input, shape index: {}]
  %s1 = inlined_call_operand.hbm [shape: bf16[9,128,128], index: 1, kind: input, shape index: {}]
  %s2 = inlined_call_operand.vmem [shape: f32[1,128], index: 2, kind: input, shape index: {}]
  %s3 = inlined_call_operand.hbm [shape: bf16[9,128,128], index: 3, kind: input, shape index: {}]
  %s4 = inlined_call_operand.vmem [shape: f32[1,128], index: 4, kind: input, shape index: {}]
  %s5 = inlined_call_operand.hbm [shape: f32[2,16,16,128], index: 5, kind: output, shape index: {}]
  %s6 = sld [smem:[#allocation0]]
  $region73: #{tpu_custom_call.1} parent=0
    _
  %s8 = ssub.s32 1, %s6
  %s9 = scalar_select 0, %s8, %s6
  $region1: #{tpu_custom_call.1} parent=0
    #allocation3 [shape = 'u8[147456]{0}', space=vmem, size = 0x24000, scoped, tag = 'input window, operand 0']
    #allocation4 [shape = 's32[2]{0}', space=sflag, size = 0x8, scoped, tag = 'scoped memory for tpu_custom_call.1']
    #allocation5 [shape = 's32[2]{0}', space=sflag, size = 0x8, scoped, tag = 'scoped memory for tpu_custom_call.1']
    #allocation6 [shape = 'u8[294912]{0}', space=vmem, size = 0x48000, scoped, tag = 'input window, operand 1, single buffered']
    #allocation7 [shape = 's32[1]{0}', space=sflag, size = 0x4, scoped, tag = 'scoped memory for tpu_custom_call.1']
    #allocation8 [shape = 'u8[294912]{0}', space=vmem, size = 0x48000, scoped, tag = 'input window, operand 3, single buffered']
    #allocation9 [shape = 'u8[131072]{0}', space=vmem, size = 0x20000, scoped, tag = 'output window, operand 0']
    %10 = vsyncpa [#allocation4], 0
    %s11 = scalar_lea.sflag [#allocation4], 1
    %12 = vsyncpa %s11, 0
    %13 = vsyncpa [#allocation7], 0
    %14 = vsyncpa [#allocation5], 0
    %s15 = scalar_lea.sflag [#allocation5], 1
    %16 = vsyncpa %s15, 0
    loop: start=0, step=1, limit=6
    $region2: #{tpu_custom_call.1} parent=1 // loop_pre_header
      _
    $region3: #{tpu_custom_call.1} parent=1 // loop_header
      %s18 = sphi 0, %s22
      %p19 = scmp.ge.s32.totalorder %s18, 6
      %s25 = sphi 0, %s37
      %s26 = sphi 0, %s33
      %s27 = sphi 0, %s25
      %s28 = sphi 0, %s26
      %s29 = sphi 0, %s27
      %s30 = sphi 0, %s28
      %s42 = sphi 0, %s44
      %s45 = sphi 0, %s42
      %s46 = sphi 0, %s45
      %s62 = sphi 0, %s46
      %s66 = sphi 0, %s66
      %s68 = sphi 0, %s66
      %s69 = sphi 0, %s68
      %s83 = sphi 0, %s69
      %s87 = sphi 0, %s87
      %s89 = sphi 0, %s87
      %s90 = sphi 0, %s89
      %s104 = sphi 0, %s90
      %s108 = sphi 0, %s108
      %s110 = sphi 0, %s108
      %s111 = sphi 0, %s110
      %s125 = sphi 0, %s111
      %s129 = sphi 0, %s129
      %s131 = sphi 0, %s129
      %s132 = sphi 0, %s131
      %s146 = sphi 0, %s132
      %s154 = sphi 0, %s156
      %s157 = sphi 0, %s154
      %s158 = sphi 0, %s157
      %s174 = sphi 0, %s158
    $region4: #{tpu_custom_call.1} parent=1 // loop_header_branch
      %21 = sbr.rel (%p19) target = $region8
    $region5: #{tpu_custom_call.1} parent=1 // loop_body
      %s23 = ssub.s32 %s18, 1
      %s24 = ssub.s32 %s18, 2
      %s31 = sadd.s32 1, %s26
      %p32 = scmp.ge.s32.totalorder %s31, 2
      %s33 = scalar_select %p32, 0, %s31
      %s34 = sadd.s32 1, %s25
      %s35 = scalar_select %p32, %s34, %s25
      %p36 = scmp.ge.s32.totalorder %s35, 2
      %s37 = scalar_select %p36, 0, %s35
      %s38 = ssub.s32 %s25, %s37
      %s39 = ssub.s32 %s26, %s33
      %s40 = sor.u32 %s38, %s39
      %p41 = scmp.eq.s32.totalorder %s40, 0
      %s43 = sadd.s32 %s42, 1
      %s44 = scalar_select %p41, %s42, %s43
      %p47 = pneg %p41
      %p48 = scmp.eq.s32.totalorder %s18, 3
      %p49 = por %p47, %p48
      %p50 = scmp.ne.s32.totalorder %s42, %s45
      %p51 = scmp.eq.s32.totalorder %s18, 0
      %p52 = por %p50, %p51
      %p53 = scmp.ne.s32.totalorder %s42, %s45
      %p54 = scmp.eq.s32.totalorder %s23, 3
      %p55 = por %p53, %p54
      %p56 = scmp.ne.s32.totalorder %s45, %s46
      %p57 = scmp.eq.s32.totalorder %s23, 0
      %p58 = por %p56, %p57
      %p59 = scmp.ne.s32.totalorder %s45, %s46
      %p60 = scmp.eq.s32.totalorder %s24, 3
      %p61 = por %p59, %p60
      %p63 = scmp.ne.s32.totalorder %s46, %s62
      %p64 = scmp.eq.s32.totalorder %s24, 0
      %p65 = por %p63, %p64
      %s67 = sadd.s32 %s66, 1
      %p70 = scmp.eq.s32.totalorder %s18, 3
      %p71 = scmp.ne.s32.totalorder %s66, %s68
      %p72 = scmp.eq.s32.totalorder %s18, 0
      %p73 = por %p71, %p72
      %p74 = scmp.ne.s32.totalorder %s66, %s68
      %p75 = scmp.eq.s32.totalorder %s23, 3
      %p76 = por %p74, %p75
      %p77 = scmp.ne.s32.totalorder %s68, %s69
      %p78 = scmp.eq.s32.totalorder %s23, 0
      %p79 = por %p77, %p78
      %p80 = scmp.ne.s32.totalorder %s68, %s69
      %p81 = scmp.eq.s32.totalorder %s24, 3
      %p82 = por %p80, %p81
      %p84 = scmp.ne.s32.totalorder %s69, %s83
      %p85 = scmp.eq.s32.totalorder %s24, 0
      %p86 = por %p84, %p85
      %s88 = sadd.s32 %s87, 1
      %p91 = scmp.eq.s32.totalorder %s18, 3
      %p92 = scmp.ne.s32.totalorder %s87, %s89
      %p93 = scmp.eq.s32.totalorder %s18, 0
      %p94 = por %p92, %p93
      %p95 = scmp.ne.s32.totalorder %s87, %s89
      %p96 = scmp.eq.s32.totalorder %s23, 3
      %p97 = por %p95, %p96
      %p98 = scmp.ne.s32.totalorder %s89, %s90
      %p99 = scmp.eq.s32.totalorder %s23, 0
      %p100 = por %p98, %p99
      %p101 = scmp.ne.s32.totalorder %s89, %s90
      %p102 = scmp.eq.s32.totalorder %s24, 3
      %p103 = por %p101, %p102
      %p105 = scmp.ne.s32.totalorder %s90, %s104
      %p106 = scmp.eq.s32.totalorder %s24, 0
      %p107 = por %p105, %p106
      %s109 = sadd.s32 %s108, 1
      %p112 = scmp.eq.s32.totalorder %s18, 3
      %p113 = scmp.ne.s32.totalorder %s108, %s110
      %p114 = scmp.eq.s32.totalorder %s18, 0
      %p115 = por %p113, %p114
      %p116 = scmp.ne.s32.totalorder %s108, %s110
      %p117 = scmp.eq.s32.totalorder %s23, 3
      %p118 = por %p116, %p117
      %p119 = scmp.ne.s32.totalorder %s110, %s111
      %p120 = scmp.eq.s32.totalorder %s23, 0
      %p121 = por %p119, %p120
      %p122 = scmp.ne.s32.totalorder %s110, %s111
      %p123 = scmp.eq.s32.totalorder %s24, 3
      %p124 = por %p122, %p123
      %p126 = scmp.ne.s32.totalorder %s111, %s125
      %p127 = scmp.eq.s32.totalorder %s24, 0
      %p128 = por %p126, %p127
      %s130 = sadd.s32 %s129, 1
      %p133 = scmp.eq.s32.totalorder %s18, 3
      %p134 = scmp.ne.s32.totalorder %s129, %s131
      %p135 = scmp.eq.s32.totalorder %s18, 0
      %p136 = por %p134, %p135
      %p137 = scmp.ne.s32.totalorder %s129, %s131
      %p138 = scmp.eq.s32.totalorder %s23, 3
      %p139 = por %p137, %p138
      %p140 = scmp.ne.s32.totalorder %s131, %s132
      %p141 = scmp.eq.s32.totalorder %s23, 0
      %p142 = por %p140, %p141
      %p143 = scmp.ne.s32.totalorder %s131, %s132
      %p144 = scmp.eq.s32.totalorder %s24, 3
      %p145 = por %p143, %p144
      %p147 = scmp.ne.s32.totalorder %s132, %s146
      %p148 = scmp.eq.s32.totalorder %s24, 0
      %p149 = por %p147, %p148
      %s150 = ssub.s32 %s25, %s37
      %s151 = ssub.s32 %s26, %s33
      %s152 = sor.u32 %s150, %s151
      %p153 = scmp.eq.s32.totalorder %s152, 0
      %s155 = sadd.s32 %s154, 1
      %s156 = scalar_select %p153, %s154, %s155
      %p159 = pneg %p153
      %p160 = scmp.eq.s32.totalorder %s18, 3
      %p161 = por %p159, %p160
      %p162 = scmp.ne.s32.totalorder %s154, %s157
      %p163 = scmp.eq.s32.totalorder %s18, 0
      %p164 = por %p162, %p163
      %p165 = scmp.ne.s32.totalorder %s154, %s157
      %p166 = scmp.eq.s32.totalorder %s23, 3
      %p167 = por %p165, %p166
      %p168 = scmp.ne.s32.totalorder %s157, %s158
      %p169 = scmp.eq.s32.totalorder %s23, 0
      %p170 = por %p168, %p169
      %p171 = scmp.ne.s32.totalorder %s157, %s158
      %p172 = scmp.eq.s32.totalorder %s24, 3
      %p173 = por %p171, %p172
      %p175 = scmp.ne.s32.totalorder %s158, %s174
      %p176 = scmp.eq.s32.totalorder %s24, 0
      %p177 = por %p175, %p176
      %p178 = scmp.le.s32.totalorder 1, %s18
      %p179 = scmp.lt.s32.totalorder %s18, 5
      %p180 = pnand %p178, %p179
      %p181 = pneg %p180
      // Predicated region
      $region9: #{tpu_custom_call.1} parent=5 // pred_check
        _
      $region10: #{tpu_custom_call.1} parent=5 // pred_check_branch
        %183 = sbr.rel (%p180) target = $region12
      $region11: #{tpu_custom_call.1} parent=5 // pred_region
        %s184 = ssub.s32 %s18, 1
        // Predicated region
        $region13: #{tpu_custom_call.1} parent=11 // pred_check
          %p185 = pneg %p79
        $region14: #{tpu_custom_call.1} parent=11 // pred_check_branch
          %187 = sbr.rel (%p185) target = $region16
        $region15: #{tpu_custom_call.1} parent=11 // pred_region
          %s189 = ssub.s32 9216, 9216
          %190 = vsyncadd [#allocation7], %s189
          %s191 = sshll.u32 [#allocation6], 4
          %s192 = int_to_ptr.vmem [resolvable:$true] %s191
          %197 = dma.hbm_to_vmem [thread:$0]  %s1, 9216, %s192, [#allocation7], 64, 64, 4
        $region16: #{tpu_custom_call.1} parent=11 // pred_fallthru
          _
        // Predicated region
        $region17: #{tpu_custom_call.1} parent=11 // pred_check
          %p198 = pneg %p100
        $region18: #{tpu_custom_call.1} parent=11 // pred_check_branch
          %200 = sbr.rel (%p198) target = $region20
        $region19: #{tpu_custom_call.1} parent=11 // pred_region
          _
        $region20: #{tpu_custom_call.1} parent=11 // pred_fallthru
          _
        // Predicated region
        $region21: #{tpu_custom_call.1} parent=11 // pred_check
          %p201 = pneg %p121
        $region22: #{tpu_custom_call.1} parent=11 // pred_check_branch
          %203 = sbr.rel (%p201) target = $region24
        $region23: #{tpu_custom_call.1} parent=11 // pred_region
          %s205 = ssub.s32 9216, 9216
          %206 = vsyncadd [#allocation7], %s205
          %s207 = sshll.u32 [#allocation8], 4
          %s208 = int_to_ptr.vmem [resolvable:$true] %s207
          %213 = dma.hbm_to_vmem [thread:$0]  %s3, 9216, %s208, [#allocation7], 64, 64, 4
        $region24: #{tpu_custom_call.1} parent=11 // pred_fallthru
          _
        // Predicated region
        $region25: #{tpu_custom_call.1} parent=11 // pred_check
          %p214 = pneg %p142
        $region26: #{tpu_custom_call.1} parent=11 // pred_check_branch
          %216 = sbr.rel (%p214) target = $region28
        $region27: #{tpu_custom_call.1} parent=11 // pred_region
          _
        $region28: #{tpu_custom_call.1} parent=11 // pred_fallthru
          _
      $region12: #{tpu_custom_call.1} parent=5 // pred_fallthru
        _
      %p217 = scmp.lt.s32.totalorder %s18, 4
      // Predicated region
      $region29: #{tpu_custom_call.1} parent=5 // pred_check
        %p218 = pneg %p217
      $region30: #{tpu_custom_call.1} parent=5 // pred_check_branch
        %220 = sbr.rel (%p218) target = $region32
      $region31: #{tpu_custom_call.1} parent=5 // pred_region
        // Predicated region
        $region33: #{tpu_custom_call.1} parent=31 // pred_check
          %p221 = pneg %p52
        $region34: #{tpu_custom_call.1} parent=31 // pred_check_branch
          %223 = sbr.rel (%p221) target = $region36
        $region35: #{tpu_custom_call.1} parent=31 // pred_region
          %s224 = sand.u32 %s42, 1
          %s225 = scalar_lea.sflag [#allocation4], %s224
          %s226 = sand.u32 %s42, 1
          %s227 = smul.addr %s226, 144
          %s228 = scalar_lea.vmem [#allocation3], %s227
          %s230 = ssub.s32 2304, 2304
          %231 = vsyncadd %s225, %s230
          %s232 = smul.addr %s26, 36
          %s233 = smul.addr %s25, 72
          %s234 = sadd.s32 %s232, %s233
          %s235 = smul.addr %s234, 64
          %s236 = scalar_lea.hbm %s0, %s235
          %s237 = sshll.u32 %s228, 4
          %s238 = int_to_ptr.vmem [resolvable:$true] %s237
          %243 = dma.hbm_to_vmem [thread:$0]  %s236, 2304, %s238, %s225, 64, 64, 4
        $region36: #{tpu_custom_call.1} parent=31 // pred_fallthru
          _
      $region32: #{tpu_custom_call.1} parent=5 // pred_fallthru
        _
      %p244 = scmp.le.s32.totalorder 1, %s18
      %p245 = scmp.lt.s32.totalorder %s18, 5
      %p246 = pnand %p244, %p245
      %p247 = pneg %p246
      // Predicated region
      $region37: #{tpu_custom_call.1} parent=5 // pred_check
        _
      $region38: #{tpu_custom_call.1} parent=5 // pred_check_branch
        %249 = sbr.rel (%p246) target = $region40
      $region39: #{tpu_custom_call.1} parent=5 // pred_region
        %s250 = ssub.s32 %s18, 1
        %s251 = sand.u32 %s45, 1
        %s252 = scalar_lea.sflag [#allocation4], %s251
        %s253 = sand.u32 %s45, 1
        %s254 = smul.addr %s253, 144
        %s255 = scalar_lea.vmem [#allocation3], %s254
        // Predicated region
        $region41: #{tpu_custom_call.1} parent=39 // pred_check
          %p256 = pneg %p58
        $region42: #{tpu_custom_call.1} parent=39 // pred_check_branch
          %258 = sbr.rel (%p256) target = $region44
        $region43: #{tpu_custom_call.1} parent=39 // pred_region
          %259 = dma.done %s252, 2304
        $region44: #{tpu_custom_call.1} parent=39 // pred_fallthru
          _
        // Predicated region
        $region45: #{tpu_custom_call.1} parent=39 // pred_check
          %p260 = pneg %p79
        $region46: #{tpu_custom_call.1} parent=39 // pred_check_branch
          %262 = sbr.rel (%p260) target = $region48
        $region47: #{tpu_custom_call.1} parent=39 // pred_region
          %263 = dma.done [#allocation7], 9216
        $region48: #{tpu_custom_call.1} parent=39 // pred_fallthru
          _
        // Predicated region
        $region49: #{tpu_custom_call.1} parent=39 // pred_check
          %p264 = pneg %p121
        $region50: #{tpu_custom_call.1} parent=39 // pred_check_branch
          %266 = sbr.rel (%p264) target = $region52
        $region51: #{tpu_custom_call.1} parent=39 // pred_region
          %267 = dma.done [#allocation7], 9216
        $region52: #{tpu_custom_call.1} parent=39 // pred_fallthru
          _
        %s268 = sand.u32 %s45, 1
        %s269 = scalar_lea.sflag [#allocation4], %s268
        %s270 = sand.u32 %s45, 1
        %s271 = smul.addr %s270, 144
        %s272 = scalar_lea.vmem [#allocation3], %s271
        %p273 = pneg %p58
        %p274 = pneg %p55
        %p275 = pneg %p79
        %p276 = pneg %p76
        %p277 = pneg %p100
        %p278 = pneg %p97
        %p279 = pneg %p121
        %p280 = pneg %p118
        %p281 = pneg %p142
        %p282 = pneg %p139
        %p283 = pneg %p170
        %p284 = pneg %p167
        %s285 = sand.u32 %s157, 1
        %s286 = scalar_lea.sflag [#allocation5], %s285
        %s287 = sand.u32 %s157, 1
        %s288 = smul.addr %s287, 128
        %s289 = scalar_lea.vmem [#allocation9], %s288
        %s290 = smul.u32 8, %s28
        %v292 = vld [vmem:[%s255] sm:$0xf]
        %v293 = vld [vmem:[%s255 + $0x4] sm:$0xf]
        %v294 = vld [vmem:[%s255 + $0xc] sm:$0xf]
        %v295 = vld [vmem:[%s255 + $0x10] sm:$0xf]
        %v296 = vld [vmem:[%s255 + $0x18] sm:$0xf]
        %v297 = vld [vmem:[%s255 + $0x1c] sm:$0xf]
        %v298 = vld [vmem:[%s255 + $0x24] sm:$0xf]
        %v299 = vld [vmem:[%s255 + $0x28] sm:$0xf]
        %v300 = vld [vmem:[%s255 + $0x30] sm:$0xf]
        %v301 = vld [vmem:[%s255 + $0x34] sm:$0xf]
        %v302 = vld [vmem:[%s255 + $0x3c] sm:$0xf]
        %v303 = vld [vmem:[%s255 + $0x40] sm:$0xf]
        %v304 = vld [vmem:[%s255 + $0x48] sm:$0xf]
        %v305 = vld [vmem:[%s255 + $0x4c] sm:$0xf]
        %v306 = vld [vmem:[%s255 + $0x54] sm:$0xf]
        %v307 = vld [vmem:[%s255 + $0x58] sm:$0xf]
        %v308 = vld [vmem:[%s255 + $0x60] sm:$0xf]
        %v309 = vld [vmem:[%s255 + $0x64] sm:$0xf]
        %v310 = vld [vmem:[%s255 + $0x6c] sm:$0xf]
        %v311 = vld [vmem:[%s255 + $0x70] sm:$0xf]
        %v312 = vld [vmem:[#allocation6] sm:$0xf]
        %v313 = vld [vmem:[#allocation6 + $0x4] sm:$0xf]
        %v314 = vld [vmem:[#allocation6 + $0x8] sm:$0xf]
        %v315 = vld [vmem:[#allocation6 + $0xc] sm:$0xf]
        %v316 = vld [vmem:[#allocation6 + $0x10] sm:$0xf]
        %v317 = vld [vmem:[#allocation6 + $0x14] sm:$0xf]
        %v318 = vld [vmem:[#allocation6 + $0x18] sm:$0xf]
        %v319 = vld [vmem:[#allocation6 + $0x1c] sm:$0xf]
        %v320 = vld [vmem:[#allocation6 + $0x20] sm:$0xf]
        %v321 = vld [vmem:[#allocation6 + $0x24] sm:$0xf]
        %v322 = vld [vmem:[#allocation6 + $0x28] sm:$0xf]
        %v323 = vld [vmem:[#allocation6 + $0x2c] sm:$0xf]
        %v324 = vld [vmem:[#allocation6 + $0x30] sm:$0xf]
        %v325 = vld [vmem:[#allocation6 + $0x34] sm:$0xf]
        %v326 = vld [vmem:[#allocation6 + $0x38] sm:$0xf]
        %v327 = vld [vmem:[#allocation6 + $0x3c] sm:$0xf]
        %v328 = vld [vmem:[%s255 + $0x8] sm:$0x1]
        %v329 = vld [vmem:[%s255 + $0x14] sm:$0x1]
        %v330 = vld [vmem:[%s255 + $0x20] sm:$0x1]
        %v331 = vld [vmem:[%s255 + $0x2c] sm:$0x1]
        %v332 = vld [vmem:[%s255 + $0x38] sm:$0x1]
        %v333 = vld [vmem:[%s255 + $0x44] sm:$0x1]
        %v334 = vld [vmem:[%s255 + $0x50] sm:$0x1]
        %v335 = vld [vmem:[%s255 + $0x5c] sm:$0x1]
        %v336 = vld [vmem:[%s255 + $0x68] sm:$0x1]
        %v337 = vld [vmem:[%s255 + $0x74] sm:$0x1]
        %vm338 = vsmask.f32 3328
        %vm339 = vsmask.f32 7440
        %vm340 = vmor %vm338, %vm339
        %v342 = vshrl.u32 %v292, 16
        %v344 = vrot.slane %v342, 4
        %v345 = vshll.u32 %v292, 16
        %v347 = vrot.slane %v345, 5
        %v348 = vor.u32 %v344, %v347
        %v349 = vrot.slane %v348, 4
        %v351 = vshll.u32 %v293, 16
        %v353 = vrot.slane %v351, 5
        %v354 = vsel %vm340, %v349, %v353
        %v355 = vshrl.u32 %v293, 16
        %v357 = vrot.slane %v355, 4
        %v358 = vor.u32 %v357, %v353
        %v359 = vrot.slane %v358, 4
        %v361 = vshll.u32 %v328, 16
        %v363 = vrot.slane %v361, 5
        %v364 = vsel %vm340, %v359, %v363
        %v366 = vshrl.u32 %v294, 16
        %v368 = vrot.slane %v366, 4
        %v369 = vshll.u32 %v294, 16
        %v371 = vrot.slane %v369, 5
        %v372 = vor.u32 %v368, %v371
        %v373 = vrot.slane %v372, 4
        %v375 = vshll.u32 %v295, 16
        %v377 = vrot.slane %v375, 5
        %v378 = vsel %vm340, %v373, %v377
        %v379 = vshrl.u32 %v295, 16
        %v381 = vrot.slane %v379, 4
        %v382 = vor.u32 %v381, %v377
        %v383 = vrot.slane %v382, 4
        %v385 = vshll.u32 %v329, 16
        %v387 = vrot.slane %v385, 5
        %v388 = vsel %vm340, %v383, %v387
        %v390 = vshrl.u32 %v296, 16
        %v392 = vrot.slane %v390, 4
        %v393 = vshll.u32 %v296, 16
        %v395 = vrot.slane %v393, 5
        %v396 = vor.u32 %v392, %v395
        %v397 = vrot.slane %v396, 4
        %v399 = vshll.u32 %v297, 16
        %v401 = vrot.slane %v399, 5
        %v402 = vsel %vm340, %v397, %v401
        %v403 = vshrl.u32 %v297, 16
        %v405 = vrot.slane %v403, 4
        %v406 = vor.u32 %v405, %v401
        %v407 = vrot.slane %v406, 4
        %v409 = vshll.u32 %v330, 16
        %v411 = vrot.slane %v409, 5
        %v412 = vsel %vm340, %v407, %v411
        %v414 = vshrl.u32 %v298, 16
        %v416 = vrot.slane %v414, 4
        %v417 = vshll.u32 %v298, 16
        %v419 = vrot.slane %v417, 5
        %v420 = vor.u32 %v416, %v419
        %v421 = vrot.slane %v420, 4
        %v423 = vshll.u32 %v299, 16
        %v425 = vrot.slane %v423, 5
        %v426 = vsel %vm340, %v421, %v425
        %v427 = vshrl.u32 %v299, 16
        %v429 = vrot.slane %v427, 4
        %v430 = vor.u32 %v429, %v425
        %v431 = vrot.slane %v430, 4
        %v433 = vshll.u32 %v331, 16
        %v435 = vrot.slane %v433, 5
        %v436 = vsel %vm340, %v431, %v435
        %v438 = vshrl.u32 %v300, 16
        %v440 = vrot.slane %v438, 4
        %v441 = vshll.u32 %v300, 16
        %v443 = vrot.slane %v441, 5
        %v444 = vor.u32 %v440, %v443
        %v445 = vrot.slane %v444, 4
        %v447 = vshll.u32 %v301, 16
        %v449 = vrot.slane %v447, 5
        %v450 = vsel %vm340, %v445, %v449
        %v451 = vshrl.u32 %v301, 16
        %v453 = vrot.slane %v451, 4
        %v454 = vor.u32 %v453, %v449
        %v455 = vrot.slane %v454, 4
        %v457 = vshll.u32 %v332, 16
        %v459 = vrot.slane %v457, 5
        %v460 = vsel %vm340, %v455, %v459
        %v462 = vshrl.u32 %v302, 16
        %v464 = vrot.slane %v462, 4
        %v465 = vshll.u32 %v302, 16
        %v467 = vrot.slane %v465, 5
        %v468 = vor.u32 %v464, %v467
        %v469 = vrot.slane %v468, 4
        %v471 = vshll.u32 %v303, 16
        %v473 = vrot.slane %v471, 5
        %v474 = vsel %vm340, %v469, %v473
        %v475 = vshrl.u32 %v303, 16
        %v477 = vrot.slane %v475, 4
        %v478 = vor.u32 %v477, %v473
        %v479 = vrot.slane %v478, 4
        %v481 = vshll.u32 %v333, 16
        %v483 = vrot.slane %v481, 5
        %v484 = vsel %vm340, %v479, %v483
        %v486 = vshrl.u32 %v304, 16
        %v488 = vrot.slane %v486, 4
        %v489 = vshll.u32 %v304, 16
        %v491 = vrot.slane %v489, 5
        %v492 = vor.u32 %v488, %v491
        %v493 = vrot.slane %v492, 4
        %v495 = vshll.u32 %v305, 16
        %v497 = vrot.slane %v495, 5
        %v498 = vsel %vm340, %v493, %v497
        %v499 = vshrl.u32 %v305, 16
        %v501 = vrot.slane %v499, 4
        %v502 = vor.u32 %v501, %v497
        %v503 = vrot.slane %v502, 4
        %v505 = vshll.u32 %v334, 16
        %v507 = vrot.slane %v505, 5
        %v508 = vsel %vm340, %v503, %v507
        %v510 = vshrl.u32 %v306, 16
        %v512 = vrot.slane %v510, 4
        %v513 = vshll.u32 %v306, 16
        %v515 = vrot.slane %v513, 5
        %v516 = vor.u32 %v512, %v515
        %v517 = vrot.slane %v516, 4
        %v519 = vshll.u32 %v307, 16
        %v521 = vrot.slane %v519, 5
        %v522 = vsel %vm340, %v517, %v521
        %v523 = vshrl.u32 %v307, 16
        %v525 = vrot.slane %v523, 4
        %v526 = vor.u32 %v525, %v521
        %v527 = vrot.slane %v526, 4
        %v529 = vshll.u32 %v335, 16
        %v531 = vrot.slane %v529, 5
        %v532 = vsel %vm340, %v527, %v531
        %v534 = vshrl.u32 %v308, 16
        %v536 = vrot.slane %v534, 4
        %v537 = vshll.u32 %v308, 16
        %v539 = vrot.slane %v537, 5
        %v540 = vor.u32 %v536, %v539
        %v541 = vrot.slane %v540, 4
        %v543 = vshll.u32 %v309, 16
        %v545 = vrot.slane %v543, 5
        %v546 = vsel %vm340, %v541, %v545
        %v547 = vshrl.u32 %v309, 16
        %v549 = vrot.slane %v547, 4
        %v550 = vor.u32 %v549, %v545
        %v551 = vrot.slane %v550, 4
        %v553 = vshll.u32 %v336, 16
        %v555 = vrot.slane %v553, 5
        %v556 = vsel %vm340, %v551, %v555
        %v558 = vshrl.u32 %v310, 16
        %v560 = vrot.slane %v558, 4
        %v561 = vshll.u32 %v310, 16
        %v563 = vrot.slane %v561, 5
        %v564 = vor.u32 %v560, %v563
        %v565 = vrot.slane %v564, 4
        %v567 = vshll.u32 %v311, 16
        %v569 = vrot.slane %v567, 5
        %v570 = vsel %vm340, %v565, %v569
        %v571 = vshrl.u32 %v311, 16
        %v573 = vrot.slane %v571, 4
        %v574 = vor.u32 %v573, %v569
        %v575 = vrot.slane %v574, 4
        %v577 = vshll.u32 %v337, 16
        %v579 = vrot.slane %v577, 5
        %v580 = vsel %vm340, %v575, %v579
        %s581 = scalar_lea.vmem [#allocation6], 64
        %v582 = vld [vmem:[%s581] sm:$0xf]
        %v583 = vld [vmem:[%s581 + $0x4] sm:$0xf]
        %v584 = vld [vmem:[%s581 + $0x8] sm:$0xf]
        %v585 = vld [vmem:[%s581 + $0xc] sm:$0xf]
        %v586 = vld [vmem:[%s581 + $0x10] sm:$0xf]
        %v587 = vld [vmem:[%s581 + $0x14] sm:$0xf]
        %v588 = vld [vmem:[%s581 + $0x18] sm:$0xf]
        %v589 = vld [vmem:[%s581 + $0x1c] sm:$0xf]
        %v590 = vld [vmem:[%s581 + $0x20] sm:$0xf]
        %v591 = vld [vmem:[%s581 + $0x24] sm:$0xf]
        %v592 = vld [vmem:[%s581 + $0x28] sm:$0xf]
        %v593 = vld [vmem:[%s581 + $0x2c] sm:$0xf]
        %v594 = vld [vmem:[%s581 + $0x30] sm:$0xf]
        %v595 = vld [vmem:[%s581 + $0x34] sm:$0xf]
        %v596 = vld [vmem:[%s581 + $0x38] sm:$0xf]
        %v597 = vld [vmem:[%s581 + $0x3c] sm:$0xf]
        %v598 = vunpack.c.l.b16 %v354
        %v599 = vunpack.c.l.b16 %v364
        %v600 = vunpack.c.l.b16 %v378
        %v601 = vunpack.c.l.b16 %v388
        %v602 = vunpack.c.l.b16 %v402
        %v603 = vunpack.c.l.b16 %v412
        %v604 = vunpack.c.l.b16 %v426
        %v605 = vunpack.c.l.b16 %v436
        %v606 = vunpack.c.l.b16 %v450
        %v607 = vunpack.c.l.b16 %v460
        %v608 = vunpack.c.l.b16 %v474
        %v609 = vunpack.c.l.b16 %v484
        %v610 = vunpack.c.l.b16 %v498
        %v611 = vunpack.c.l.b16 %v508
        %v612 = vunpack.c.l.b16 %v522
        %v613 = vunpack.c.l.b16 %v532
        %v614 = vunpack.c.l.b16 %v546
        %v615 = vunpack.c.l.b16 %v556
        %v616 = vunpack.c.l.b16 %v570
        %v617 = vunpack.c.l.b16 %v580
        %v618 = vpack.c.b16 %v599, %v598
        %v619 = vpack.c.b16 %v601, %v600
        %v620 = vpack.c.b16 %v603, %v602
        %v621 = vpack.c.b16 %v605, %v604
        %v622 = vpack.c.b16 %v607, %v606
        %v623 = vpack.c.b16 %v609, %v608
        %v624 = vpack.c.b16 %v611, %v610
        %v625 = vpack.c.b16 %v613, %v612
        %v626 = vpack.c.b16 %v615, %v614
        %v627 = vpack.c.b16 %v617, %v616
        %v654 = vunpack.c.l.b16 %v582
        %v655 = vunpack.c.l.b16 %v583
        %v656 = vunpack.c.l.b16 %v584
        %v657 = vunpack.c.l.b16 %v585
        %v658 = vunpack.c.l.b16 %v586
        %v659 = vunpack.c.l.b16 %v587
        %v660 = vunpack.c.l.b16 %v588
        %v661 = vunpack.c.l.b16 %v589
        %v662 = vunpack.c.l.b16 %v590
        %v663 = vunpack.c.l.b16 %v591
        %v664 = vunpack.c.l.b16 %v592
        %v665 = vunpack.c.l.b16 %v593
        %v666 = vunpack.c.l.b16 %v594
        %v667 = vunpack.c.l.b16 %v595
        %v668 = vunpack.c.l.b16 %v596
        %v669 = vunpack.c.l.b16 %v597
        %v670 = vpack.c.b16 %v655, %v654
        %v671 = vpack.c.b16 %v657, %v656
        %v672 = vpack.c.b16 %v659, %v658
        %v673 = vpack.c.b16 %v661, %v660
        %v674 = vpack.c.b16 %v663, %v662
        %v675 = vpack.c.b16 %v665, %v664
        %v676 = vpack.c.b16 %v667, %v666
        %v677 = vpack.c.b16 %v669, %v668
        %686 = vmatprep.subr.bf16.mxu0 0
        %687 = vmatpush1.bf16.msra.mxu0 %v670
        %688 = vmatprep.subr.bf16.mxu0 0
        %689 = vmatpush1.bf16.msra.mxu0 %v671
        %690 = vmatprep.subr.bf16.mxu0 0
        %691 = vmatpush1.bf16.msra.mxu0 %v672
        %692 = vmatprep.subr.bf16.mxu0 0
        %693 = vmatpush1.bf16.msra.mxu0 %v673
        %694 = vmatprep.subr.bf16.mxu0 0
        %695 = vmatpush1.bf16.msra.mxu0 %v674
        %696 = vmatprep.subr.bf16.mxu0 0
        %697 = vmatpush1.bf16.msra.mxu0 %v675
        %698 = vmatprep.subr.bf16.mxu0 0
        %699 = vmatpush1.bf16.msra.mxu0 %v676
        %700 = vmatprep.subr.bf16.mxu0 0
        %701 = vmatpush1.bf16.msra.mxu0 %v677
        %702 = vmatprep.subr.bf16.mxu0 0
        %703 = vmatpush1.bf16.msra.mxu0 0
        %704 = vmatprep.subr.bf16.mxu0 0
        %705 = vmatpush1.bf16.msra.mxu0 0
        %706 = vmatprep.subr.bf16.mxu0 0
        %707 = vmatpush1.bf16.msra.mxu0 0
        %708 = vmatprep.subr.bf16.mxu0 0
        %709 = vmatpush1.bf16.msra.mxu0 0
        %710 = vmatprep.subr.bf16.mxu0 0
        %711 = vmatpush1.bf16.msra.mxu0 0
        %712 = vmatprep.subr.bf16.mxu0 0
        %713 = vmatpush1.bf16.msra.mxu0 0
        %714 = vmatprep.subr.bf16.mxu0 0
        %715 = vmatpush1.bf16.msra.mxu0 0
        %716 = vmatprep.subr.bf16.mxu0 0
        %717 = vmatpush1.bf16.msra.mxu0 0
        %718 = vmatprep.mubr.bf16.mxu0 0
        %719 = vmatmul.mubr.bf16.gmra.mrb[0].mxu0 %v618
        %v720 = vpop.f32.mrb[0].mxu0
        %v721 = vadd.f32 0.0, %v720
        %v722 = vpop.f32.mrb[0].mxu0
        %v723 = vpop.f32.mrb[0].mxu0
        %v724 = vadd.f32 0.0, %v723
        %v725 = vpop.f32.mrb[0].mxu0
        %726 = vmatprep.mubr.bf16.mxu0 0
        %727 = vmatmul.mubr.bf16.gmra.mrb[0].mxu0 %v619
        %v728 = vpop.f32.mrb[0].mxu0
        %v729 = vadd.f32 0.0, %v728
        %v730 = vpop.f32.mrb[0].mxu0
        %v731 = vpop.f32.mrb[0].mxu0
        %v732 = vadd.f32 0.0, %v731
        %v733 = vpop.f32.mrb[0].mxu0
        %734 = vmatprep.mubr.bf16.mxu0 0
        %735 = vmatmul.mubr.bf16.gmra.mrb[0].mxu0 %v620
        %v736 = vpop.f32.mrb[0].mxu0
        %v737 = vadd.f32 0.0, %v736
        %v738 = vpop.f32.mrb[0].mxu0
        %v739 = vpop.f32.mrb[0].mxu0
        %v740 = vadd.f32 0.0, %v739
        %v741 = vpop.f32.mrb[0].mxu0
        %742 = vmatprep.mubr.bf16.mxu0 0
        %743 = vmatmul.mubr.bf16.gmra.mrb[0].mxu0 %v621
        %v744 = vpop.f32.mrb[0].mxu0
        %v745 = vadd.f32 0.0, %v744
        %v746 = vpop.f32.mrb[0].mxu0
        %v747 = vpop.f32.mrb[0].mxu0
        %v748 = vadd.f32 0.0, %v747
        %v749 = vpop.f32.mrb[0].mxu0
        %750 = vmatprep.mubr.bf16.mxu0 0
        %751 = vmatmul.mubr.bf16.gmra.mrb[0].mxu0 %v622
        %v752 = vpop.f32.mrb[0].mxu0
        %v753 = vadd.f32 0.0, %v752
        %v754 = vpop.f32.mrb[0].mxu0
        %v755 = vpop.f32.mrb[0].mxu0
        %v756 = vadd.f32 0.0, %v755
        %v757 = vpop.f32.mrb[0].mxu0
        %758 = vmatprep.mubr.bf16.mxu0 0
        %759 = vmatmul.mubr.bf16.gmra.mrb[0].mxu0 %v623
        %v760 = vpop.f32.mrb[0].mxu0
        %v761 = vadd.f32 0.0, %v760
        %v762 = vpop.f32.mrb[0].mxu0
        %v763 = vpop.f32.mrb[0].mxu0
        %v764 = vadd.f32 0.0, %v763
        %v765 = vpop.f32.mrb[0].mxu0
        %766 = vmatprep.mubr.bf16.mxu0 0
        %767 = vmatmul.mubr.bf16.gmra.mrb[0].mxu0 %v624
        %v768 = vpop.f32.mrb[0].mxu0
        %v769 = vadd.f32 0.0, %v768
        %v770 = vpop.f32.mrb[0].mxu0
        %v771 = vpop.f32.mrb[0].mxu0
        %v772 = vadd.f32 0.0, %v771
        %v773 = vpop.f32.mrb[0].mxu0
        %774 = vmatprep.mubr.bf16.mxu0 0
        %775 = vmatmul.mubr.bf16.gmra.mrb[0].mxu0 %v625
        %v776 = vpop.f32.mrb[0].mxu0
        %v777 = vadd.f32 0.0, %v776
        %v778 = vpop.f32.mrb[0].mxu0
        %v779 = vpop.f32.mrb[0].mxu0
        %v780 = vadd.f32 0.0, %v779
        %v781 = vpop.f32.mrb[0].mxu0
        %782 = vmatprep.mubr.bf16.mxu0 0
        %783 = vmatmul.mubr.bf16.gmra.mrb[0].mxu0 %v626
        %v784 = vpop.f32.mrb[0].mxu0
        %v785 = vadd.f32 0.0, %v784
        %v786 = vpop.f32.mrb[0].mxu0
        %v787 = vpop.f32.mrb[0].mxu0
        %v788 = vadd.f32 0.0, %v787
        %v789 = vpop.f32.mrb[0].mxu0
        %790 = vmatprep.mubr.bf16.mxu0 0
        %791 = vmatmul.mubr.bf16.gmra.mrb[0].mxu0 %v627
        %v792 = vpop.f32.mrb[0].mxu0
        %v793 = vadd.f32 0.0, %v792
        %v794 = vpop.f32.mrb[0].mxu0
        %v795 = vpop.f32.mrb[0].mxu0
        %v796 = vadd.f32 0.0, %v795
        %v797 = vpop.f32.mrb[0].mxu0
        %798 = vdwg.mxu0
        %v819 = vunpack.c.l.b16 %v292
        %v820 = vunpack.c.l.b16 %v293
        %v821 = vunpack.c.l.b16 %v294
        %v822 = vunpack.c.l.b16 %v295
        %v823 = vunpack.c.l.b16 %v296
        %v824 = vunpack.c.l.b16 %v297
        %v825 = vunpack.c.l.b16 %v298
        %v826 = vunpack.c.l.b16 %v299
        %v827 = vunpack.c.l.b16 %v300
        %v828 = vunpack.c.l.b16 %v301
        %v829 = vunpack.c.l.b16 %v302
        %v830 = vunpack.c.l.b16 %v303
        %v831 = vunpack.c.l.b16 %v304
        %v832 = vunpack.c.l.b16 %v305
        %v833 = vunpack.c.l.b16 %v306
        %v834 = vunpack.c.l.b16 %v307
        %v835 = vunpack.c.l.b16 %v308
        %v836 = vunpack.c.l.b16 %v309
        %v837 = vunpack.c.l.b16 %v310
        %v838 = vunpack.c.l.b16 %v311
        %v839 = vpack.c.b16 %v820, %v819
        %v840 = vpack.c.b16 %v822, %v821
        %v841 = vpack.c.b16 %v824, %v823
        %v842 = vpack.c.b16 %v826, %v825
        %v843 = vpack.c.b16 %v828, %v827
        %v844 = vpack.c.b16 %v830, %v829
        %v845 = vpack.c.b16 %v832, %v831
        %v846 = vpack.c.b16 %v834, %v833
        %v847 = vpack.c.b16 %v836, %v835
        %v848 = vpack.c.b16 %v838, %v837
        %v875 = vunpack.c.l.b16 %v312
        %v876 = vunpack.c.l.b16 %v313
        %v877 = vunpack.c.l.b16 %v314
        %v878 = vunpack.c.l.b16 %v315
        %v879 = vunpack.c.l.b16 %v316
        %v880 = vunpack.c.l.b16 %v317
        %v881 = vunpack.c.l.b16 %v318
        %v882 = vunpack.c.l.b16 %v319
        %v883 = vunpack.c.l.b16 %v320
        %v884 = vunpack.c.l.b16 %v321
        %v885 = vunpack.c.l.b16 %v322
        %v886 = vunpack.c.l.b16 %v323
        %v887 = vunpack.c.l.b16 %v324
        %v888 = vunpack.c.l.b16 %v325
        %v889 = vunpack.c.l.b16 %v326
        %v890 = vunpack.c.l.b16 %v327
        %v891 = vpack.c.b16 %v876, %v875
        %v892 = vpack.c.b16 %v878, %v877
        %v893 = vpack.c.b16 %v880, %v879
        %v894 = vpack.c.b16 %v882, %v881
        %v895 = vpack.c.b16 %v884, %v883
        %v896 = vpack.c.b16 %v886, %v885
        %v897 = vpack.c.b16 %v888, %v887
        %v898 = vpack.c.b16 %v890, %v889
        %907 = vmatprep.subr.bf16.mxu0 0
        %908 = vmatpush1.bf16.msra.mxu0 %v891
        %909 = vmatprep.subr.bf16.mxu0 0
        %910 = vmatpush1.bf16.msra.mxu0 %v892
        %911 = vmatprep.subr.bf16.mxu0 0
        %912 = vmatpush1.bf16.msra.mxu0 %v893
        %913 = vmatprep.subr.bf16.mxu0 0
        %914 = vmatpush1.bf16.msra.mxu0 %v894
        %915 = vmatprep.subr.bf16.mxu0 0
        %916 = vmatpush1.bf16.msra.mxu0 %v895
        %917 = vmatprep.subr.bf16.mxu0 0
        %918 = vmatpush1.bf16.msra.mxu0 %v896
        %919 = vmatprep.subr.bf16.mxu0 0
        %920 = vmatpush1.bf16.msra.mxu0 %v897
        %921 = vmatprep.subr.bf16.mxu0 0
        %922 = vmatpush1.bf16.msra.mxu0 %v898
        %923 = vmatprep.subr.bf16.mxu0 0
        %924 = vmatpush1.bf16.msra.mxu0 0
        %925 = vmatprep.subr.bf16.mxu0 0
        %926 = vmatpush1.bf16.msra.mxu0 0
        %927 = vmatprep.subr.bf16.mxu0 0
        %928 = vmatpush1.bf16.msra.mxu0 0
        %929 = vmatprep.subr.bf16.mxu0 0
        %930 = vmatpush1.bf16.msra.mxu0 0
        %931 = vmatprep.subr.bf16.mxu0 0
        %932 = vmatpush1.bf16.msra.mxu0 0
        %933 = vmatprep.subr.bf16.mxu0 0
        %934 = vmatpush1.bf16.msra.mxu0 0
        %935 = vmatprep.subr.bf16.mxu0 0
        %936 = vmatpush1.bf16.msra.mxu0 0
        %937 = vmatprep.subr.bf16.mxu0 0
        %938 = vmatpush1.bf16.msra.mxu0 0
        %939 = vmatprep.mubr.bf16.mxu0 0
        %940 = vmatmul.mubr.bf16.gmra.mrb[0].mxu0 %v839
        %v941 = vpop.f32.mrb[0].mxu0
        %v942 = vadd.f32 %v721, %v941
        %v943 = vpop.f32.mrb[0].mxu0
        %v944 = vpop.f32.mrb[0].mxu0
        %v945 = vadd.f32 %v724, %v944
        %v946 = vpop.f32.mrb[0].mxu0
        %947 = vmatprep.mubr.bf16.mxu0 0
        %948 = vmatmul.mubr.bf16.gmra.mrb[0].mxu0 %v840
        %v949 = vpop.f32.mrb[0].mxu0
        %v950 = vadd.f32 %v729, %v949
        %v951 = vpop.f32.mrb[0].mxu0
        %v952 = vpop.f32.mrb[0].mxu0
        %v953 = vadd.f32 %v732, %v952
        %v954 = vpop.f32.mrb[0].mxu0
        %955 = vmatprep.mubr.bf16.mxu0 0
        %956 = vmatmul.mubr.bf16.gmra.mrb[0].mxu0 %v841
        %v957 = vpop.f32.mrb[0].mxu0
        %v958 = vadd.f32 %v737, %v957
        %v959 = vpop.f32.mrb[0].mxu0
        %v960 = vpop.f32.mrb[0].mxu0
        %v961 = vadd.f32 %v740, %v960
        %v962 = vpop.f32.mrb[0].mxu0
        %963 = vmatprep.mubr.bf16.mxu0 0
        %964 = vmatmul.mubr.bf16.gmra.mrb[0].mxu0 %v842
        %v965 = vpop.f32.mrb[0].mxu0
        %v966 = vadd.f32 %v745, %v965
        %v967 = vpop.f32.mrb[0].mxu0
        %v968 = vpop.f32.mrb[0].mxu0
        %v969 = vadd.f32 %v748, %v968
        %v970 = vpop.f32.mrb[0].mxu0
        %971 = vmatprep.mubr.bf16.mxu0 0
        %972 = vmatmul.mubr.bf16.gmra.mrb[0].mxu0 %v843
        %v973 = vpop.f32.mrb[0].mxu0
        %v974 = vadd.f32 %v753, %v973
        %v975 = vpop.f32.mrb[0].mxu0
        %v976 = vpop.f32.mrb[0].mxu0
        %v977 = vadd.f32 %v756, %v976
        %v978 = vpop.f32.mrb[0].mxu0
        %979 = vmatprep.mubr.bf16.mxu0 0
        %980 = vmatmul.mubr.bf16.gmra.mrb[0].mxu0 %v844
        %v981 = vpop.f32.mrb[0].mxu0
        %v982 = vadd.f32 %v761, %v981
        %v983 = vpop.f32.mrb[0].mxu0
        %v984 = vpop.f32.mrb[0].mxu0
        %v985 = vadd.f32 %v764, %v984
        %v986 = vpop.f32.mrb[0].mxu0
        %987 = vmatprep.mubr.bf16.mxu0 0
        %988 = vmatmul.mubr.bf16.gmra.mrb[0].mxu0 %v845
        %v989 = vpop.f32.mrb[0].mxu0
        %v990 = vadd.f32 %v769, %v989
        %v991 = vpop.f32.mrb[0].mxu0
        %v992 = vpop.f32.mrb[0].mxu0
        %v993 = vadd.f32 %v772, %v992
        %v994 = vpop.f32.mrb[0].mxu0
        %995 = vmatprep.mubr.bf16.mxu0 0
        %996 = vmatmul.mubr.bf16.gmra.mrb[0].mxu0 %v846
        %v997 = vpop.f32.mrb[0].mxu0
        %v998 = vadd.f32 %v777, %v997
        %v999 = vpop.f32.mrb[0].mxu0
        %v1000 = vpop.f32.mrb[0].mxu0
        %v1001 = vadd.f32 %v780, %v1000
        %v1002 = vpop.f32.mrb[0].mxu0
        %1003 = vmatprep.mubr.bf16.mxu0 0
        %1004 = vmatmul.mubr.bf16.gmra.mrb[0].mxu0 %v847
        %v1005 = vpop.f32.mrb[0].mxu0
        %v1006 = vadd.f32 %v785, %v1005
        %v1007 = vpop.f32.mrb[0].mxu0
        %v1008 = vpop.f32.mrb[0].mxu0
        %v1009 = vadd.f32 %v788, %v1008
        %v1010 = vpop.f32.mrb[0].mxu0
        %1011 = vmatprep.mubr.bf16.mxu0 0
        %1012 = vmatmul.mubr.bf16.gmra.mrb[0].mxu0 %v848
        %v1013 = vpop.f32.mrb[0].mxu0
        %v1014 = vadd.f32 %v793, %v1013
        %v1015 = vpop.f32.mrb[0].mxu0
        %v1016 = vpop.f32.mrb[0].mxu0
        %v1017 = vadd.f32 %v796, %v1016
        %v1018 = vpop.f32.mrb[0].mxu0
        %1019 = vdwg.mxu0
        %v1020 = vld [vmem:[%s255] sm:$0xe]
        %v1021 = vld [vmem:[%s255 + $0xc] sm:$0xe]
        %v1022 = vld [vmem:[%s255 + $0x18] sm:$0xe]
        %v1023 = vld [vmem:[%s255 + $0x24] sm:$0xe]
        %v1024 = vld [vmem:[%s255 + $0x30] sm:$0xe]
        %v1025 = vld [vmem:[%s255 + $0x3c] sm:$0xe]
        %v1026 = vld [vmem:[%s255 + $0x48] sm:$0xe]
        %v1027 = vld [vmem:[%s255 + $0x54] sm:$0xe]
        %v1028 = vld [vmem:[%s255 + $0x60] sm:$0xe]
        %v1029 = vld [vmem:[%s255 + $0x6c] sm:$0xe]
        %vm1050 = vcmask 1042432
        %vm1051 = vcmask 1046532
        %vm1052 = vmor %vm1050, %vm1051
        %v1053 = vrot.slane %v1020, 5
        %v1054 = vrot.slane %v1053, 4
        %v1055 = vrot.slane %v293, 5
        %v1056 = vsel %vm1052, %v1054, %v1055
        %v1057 = vrot.slane %v1055, 4
        %v1058 = vrot.slane %v328, 5
        %v1059 = vsel %vm1052, %v1057, %v1058
        %v1060 = vrot.slane %v1021, 5
        %v1061 = vrot.slane %v1060, 4
        %v1062 = vrot.slane %v295, 5
        %v1063 = vsel %vm1052, %v1061, %v1062
        %v1064 = vrot.slane %v1062, 4
        %v1065 = vrot.slane %v329, 5
        %v1066 = vsel %vm1052, %v1064, %v1065
        %v1067 = vrot.slane %v1022, 5
        %v1068 = vrot.slane %v1067, 4
        %v1069 = vrot.slane %v297, 5
        %v1070 = vsel %vm1052, %v1068, %v1069
        %v1071 = vrot.slane %v1069, 4
        %v1072 = vrot.slane %v330, 5
        %v1073 = vsel %vm1052, %v1071, %v1072
        %v1074 = vrot.slane %v1023, 5
        %v1075 = vrot.slane %v1074, 4
        %v1076 = vrot.slane %v299, 5
        %v1077 = vsel %vm1052, %v1075, %v1076
        %v1078 = vrot.slane %v1076, 4
        %v1079 = vrot.slane %v331, 5
        %v1080 = vsel %vm1052, %v1078, %v1079
        %v1081 = vrot.slane %v1024, 5
        %v1082 = vrot.slane %v1081, 4
        %v1083 = vrot.slane %v301, 5
        %v1084 = vsel %vm1052, %v1082, %v1083
        %v1085 = vrot.slane %v1083, 4
        %v1086 = vrot.slane %v332, 5
        %v1087 = vsel %vm1052, %v1085, %v1086
        %v1088 = vrot.slane %v1025, 5
        %v1089 = vrot.slane %v1088, 4
        %v1090 = vrot.slane %v303, 5
        %v1091 = vsel %vm1052, %v1089, %v1090
        %v1092 = vrot.slane %v1090, 4
        %v1093 = vrot.slane %v333, 5
        %v1094 = vsel %vm1052, %v1092, %v1093
        %v1095 = vrot.slane %v1026, 5
        %v1096 = vrot.slane %v1095, 4
        %v1097 = vrot.slane %v305, 5
        %v1098 = vsel %vm1052, %v1096, %v1097
        %v1099 = vrot.slane %v1097, 4
        %v1100 = vrot.slane %v334, 5
        %v1101 = vsel %vm1052, %v1099, %v1100
        %v1102 = vrot.slane %v1027, 5
        %v1103 = vrot.slane %v1102, 4
        %v1104 = vrot.slane %v307, 5
        %v1105 = vsel %vm1052, %v1103, %v1104
        %v1106 = vrot.slane %v1104, 4
        %v1107 = vrot.slane %v335, 5
        %v1108 = vsel %vm1052, %v1106, %v1107
        %v1109 = vrot.slane %v1028, 5
        %v1110 = vrot.slane %v1109, 4
        %v1111 = vrot.slane %v309, 5
        %v1112 = vsel %vm1052, %v1110, %v1111
        %v1113 = vrot.slane %v1111, 4
        %v1114 = vrot.slane %v336, 5
        %v1115 = vsel %vm1052, %v1113, %v1114
        %v1116 = vrot.slane %v1029, 5
        %v1117 = vrot.slane %v1116, 4
        %v1118 = vrot.slane %v311, 5
        %v1119 = vsel %vm1052, %v1117, %v1118
        %v1120 = vrot.slane %v1118, 4
        %v1121 = vrot.slane %v337, 5
        %v1122 = vsel %vm1052, %v1120, %v1121
        %s1123 = scalar_lea.vmem [#allocation6], 128
        %v1124 = vld [vmem:[%s1123] sm:$0xf]
        %v1125 = vld [vmem:[%s1123 + $0x4] sm:$0xf]
        %v1126 = vld [vmem:[%s1123 + $0x8] sm:$0xf]
        %v1127 = vld [vmem:[%s1123 + $0xc] sm:$0xf]
        %v1128 = vld [vmem:[%s1123 + $0x10] sm:$0xf]
        %v1129 = vld [vmem:[%s1123 + $0x14] sm:$0xf]
        %v1130 = vld [vmem:[%s1123 + $0x18] sm:$0xf]
        %v1131 = vld [vmem:[%s1123 + $0x1c] sm:$0xf]
        %v1132 = vld [vmem:[%s1123 + $0x20] sm:$0xf]
        %v1133 = vld [vmem:[%s1123 + $0x24] sm:$0xf]
        %v1134 = vld [vmem:[%s1123 + $0x28] sm:$0xf]
        %v1135 = vld [vmem:[%s1123 + $0x2c] sm:$0xf]
        %v1136 = vld [vmem:[%s1123 + $0x30] sm:$0xf]
        %v1137 = vld [vmem:[%s1123 + $0x34] sm:$0xf]
        %v1138 = vld [vmem:[%s1123 + $0x38] sm:$0xf]
        %v1139 = vld [vmem:[%s1123 + $0x3c] sm:$0xf]
        %v1140 = vunpack.c.l.b16 %v1056
        %v1141 = vunpack.c.l.b16 %v1059
        %v1142 = vunpack.c.l.b16 %v1063
        %v1143 = vunpack.c.l.b16 %v1066
        %v1144 = vunpack.c.l.b16 %v1070
        %v1145 = vunpack.c.l.b16 %v1073
        %v1146 = vunpack.c.l.b16 %v1077
        %v1147 = vunpack.c.l.b16 %v1080
        %v1148 = vunpack.c.l.b16 %v1084
        %v1149 = vunpack.c.l.b16 %v1087
        %v1150 = vunpack.c.l.b16 %v1091
        %v1151 = vunpack.c.l.b16 %v1094
        %v1152 = vunpack.c.l.b16 %v1098
        %v1153 = vunpack.c.l.b16 %v1101
        %v1154 = vunpack.c.l.b16 %v1105
        %v1155 = vunpack.c.l.b16 %v1108
        %v1156 = vunpack.c.l.b16 %v1112
        %v1157 = vunpack.c.l.b16 %v1115
        %v1158 = vunpack.c.l.b16 %v1119
        %v1159 = vunpack.c.l.b16 %v1122
        %v1160 = vpack.c.b16 %v1141, %v1140
        %v1161 = vpack.c.b16 %v1143, %v1142
        %v1162 = vpack.c.b16 %v1145, %v1144
        %v1163 = vpack.c.b16 %v1147, %v1146
        %v1164 = vpack.c.b16 %v1149, %v1148
        %v1165 = vpack.c.b16 %v1151, %v1150
        %v1166 = vpack.c.b16 %v1153, %v1152
        %v1167 = vpack.c.b16 %v1155, %v1154
        %v1168 = vpack.c.b16 %v1157, %v1156
        %v1169 = vpack.c.b16 %v1159, %v1158
        %v1196 = vunpack.c.l.b16 %v1124
        %v1197 = vunpack.c.l.b16 %v1125
        %v1198 = vunpack.c.l.b16 %v1126
        %v1199 = vunpack.c.l.b16 %v1127
        %v1200 = vunpack.c.l.b16 %v1128
        %v1201 = vunpack.c.l.b16 %v1129
        %v1202 = vunpack.c.l.b16 %v1130
        %v1203 = vunpack.c.l.b16 %v1131
        %v1204 = vunpack.c.l.b16 %v1132
        %v1205 = vunpack.c.l.b16 %v1133
        %v1206 = vunpack.c.l.b16 %v1134
        %v1207 = vunpack.c.l.b16 %v1135
        %v1208 = vunpack.c.l.b16 %v1136
        %v1209 = vunpack.c.l.b16 %v1137
        %v1210 = vunpack.c.l.b16 %v1138
        %v1211 = vunpack.c.l.b16 %v1139
        %v1212 = vpack.c.b16 %v1197, %v1196
        %v1213 = vpack.c.b16 %v1199, %v1198
        %v1214 = vpack.c.b16 %v1201, %v1200
        %v1215 = vpack.c.b16 %v1203, %v1202
        %v1216 = vpack.c.b16 %v1205, %v1204
        %v1217 = vpack.c.b16 %v1207, %v1206
        %v1218 = vpack.c.b16 %v1209, %v1208
        %v1219 = vpack.c.b16 %v1211, %v1210
        %1228 = vmatprep.subr.bf16.mxu0 0
        %1229 = vmatpush1.bf16.msra.mxu0 %v1212
        %1230 = vmatprep.subr.bf16.mxu0 0
        %1231 = vmatpush1.bf16.msra.mxu0 %v1213
        %1232 = vmatprep.subr.bf16.mxu0 0
        %1233 = vmatpush1.bf16.msra.mxu0 %v1214
        %1234 = vmatprep.subr.bf16.mxu0 0
        %1235 = vmatpush1.bf16.msra.mxu0 %v1215
        %1236 = vmatprep.subr.bf16.mxu0 0
        %1237 = vmatpush1.bf16.msra.mxu0 %v1216
        %1238 = vmatprep.subr.bf16.mxu0 0
        %1239 = vmatpush1.bf16.msra.mxu0 %v1217
        %1240 = vmatprep.subr.bf16.mxu0 0
        %1241 = vmatpush1.bf16.msra.mxu0 %v1218
        %1242 = vmatprep.subr.bf16.mxu0 0
        %1243 = vmatpush1.bf16.msra.mxu0 %v1219
        %1244 = vmatprep.subr.bf16.mxu0 0
        %1245 = vmatpush1.bf16.msra.mxu0 0
        %1246 = vmatprep.subr.bf16.mxu0 0
        %1247 = vmatpush1.bf16.msra.mxu0 0
        %1248 = vmatprep.subr.bf16.mxu0 0
        %1249 = vmatpush1.bf16.msra.mxu0 0
        %1250 = vmatprep.subr.bf16.mxu0 0
        %1251 = vmatpush1.bf16.msra.mxu0 0
        %1252 = vmatprep.subr.bf16.mxu0 0
        %1253 = vmatpush1.bf16.msra.mxu0 0
        %1254 = vmatprep.subr.bf16.mxu0 0
        %1255 = vmatpush1.bf16.msra.mxu0 0
        %1256 = vmatprep.subr.bf16.mxu0 0
        %1257 = vmatpush1.bf16.msra.mxu0 0
        %1258 = vmatprep.subr.bf16.mxu0 0
        %1259 = vmatpush1.bf16.msra.mxu0 0
        %1260 = vmatprep.mubr.bf16.mxu0 0
        %1261 = vmatmul.mubr.bf16.gmra.mrb[0].mxu0 %v1160
        %v1262 = vpop.f32.mrb[0].mxu0
        %v1263 = vadd.f32 0.0, %v1262
        %v1264 = vpop.f32.mrb[0].mxu0
        %v1265 = vpop.f32.mrb[0].mxu0
        %v1266 = vadd.f32 0.0, %v1265
        %v1267 = vpop.f32.mrb[0].mxu0
        %1268 = vmatprep.mubr.bf16.mxu0 0
        %1269 = vmatmul.mubr.bf16.gmra.mrb[0].mxu0 %v1161
        %v1270 = vpop.f32.mrb[0].mxu0
        %v1271 = vadd.f32 0.0, %v1270
        %v1272 = vpop.f32.mrb[0].mxu0
        %v1273 = vpop.f32.mrb[0].mxu0
        %v1274 = vadd.f32 0.0, %v1273
        %v1275 = vpop.f32.mrb[0].mxu0
        %1276 = vmatprep.mubr.bf16.mxu0 0
        %1277 = vmatmul.mubr.bf16.gmra.mrb[0].mxu0 %v1162
        %v1278 = vpop.f32.mrb[0].mxu0
        %v1279 = vadd.f32 0.0, %v1278
        %v1280 = vpop.f32.mrb[0].mxu0
        %v1281 = vpop.f32.mrb[0].mxu0
        %v1282 = vadd.f32 0.0, %v1281
        %v1283 = vpop.f32.mrb[0].mxu0
        %1284 = vmatprep.mubr.bf16.mxu0 0
        %1285 = vmatmul.mubr.bf16.gmra.mrb[0].mxu0 %v1163
        %v1286 = vpop.f32.mrb[0].mxu0
        %v1287 = vadd.f32 0.0, %v1286
        %v1288 = vpop.f32.mrb[0].mxu0
        %v1289 = vpop.f32.mrb[0].mxu0
        %v1290 = vadd.f32 0.0, %v1289
        %v1291 = vpop.f32.mrb[0].mxu0
        %1292 = vmatprep.mubr.bf16.mxu0 0
        %1293 = vmatmul.mubr.bf16.gmra.mrb[0].mxu0 %v1164
        %v1294 = vpop.f32.mrb[0].mxu0
        %v1295 = vadd.f32 0.0, %v1294
        %v1296 = vpop.f32.mrb[0].mxu0
        %v1297 = vpop.f32.mrb[0].mxu0
        %v1298 = vadd.f32 0.0, %v1297
        %v1299 = vpop.f32.mrb[0].mxu0
        %1300 = vmatprep.mubr.bf16.mxu0 0
        %1301 = vmatmul.mubr.bf16.gmra.mrb[0].mxu0 %v1165
        %v1302 = vpop.f32.mrb[0].mxu0
        %v1303 = vadd.f32 0.0, %v1302
        %v1304 = vpop.f32.mrb[0].mxu0
        %v1305 = vpop.f32.mrb[0].mxu0
        %v1306 = vadd.f32 0.0, %v1305
        %v1307 = vpop.f32.mrb[0].mxu0
        %1308 = vmatprep.mubr.bf16.mxu0 0
        %1309 = vmatmul.mubr.bf16.gmra.mrb[0].mxu0 %v1166
        %v1310 = vpop.f32.mrb[0].mxu0
        %v1311 = vadd.f32 0.0, %v1310
        %v1312 = vpop.f32.mrb[0].mxu0
        %v1313 = vpop.f32.mrb[0].mxu0
        %v1314 = vadd.f32 0.0, %v1313
        %v1315 = vpop.f32.mrb[0].mxu0
        %1316 = vmatprep.mubr.bf16.mxu0 0
        %1317 = vmatmul.mubr.bf16.gmra.mrb[0].mxu0 %v1167
        %v1318 = vpop.f32.mrb[0].mxu0
        %v1319 = vadd.f32 0.0, %v1318
        %v1320 = vpop.f32.mrb[0].mxu0
        %v1321 = vpop.f32.mrb[0].mxu0
        %v1322 = vadd.f32 0.0, %v1321
        %v1323 = vpop.f32.mrb[0].mxu0
        %1324 = vmatprep.mubr.bf16.mxu0 0
        %1325 = vmatmul.mubr.bf16.gmra.mrb[0].mxu0 %v1168
        %v1326 = vpop.f32.mrb[0].mxu0
        %v1327 = vadd.f32 0.0, %v1326
        %v1328 = vpop.f32.mrb[0].mxu0
        %v1329 = vpop.f32.mrb[0].mxu0
        %v1330 = vadd.f32 0.0, %v1329
        %v1331 = vpop.f32.mrb[0].mxu0
        %1332 = vmatprep.mubr.bf16.mxu0 0
        %1333 = vmatmul.mubr.bf16.gmra.mrb[0].mxu0 %v1169
        %v1334 = vpop.f32.mrb[0].mxu0
        %v1335 = vadd.f32 0.0, %v1334
        %v1336 = vpop.f32.mrb[0].mxu0
        %v1337 = vpop.f32.mrb[0].mxu0
        %v1338 = vadd.f32 0.0, %v1337
        %v1339 = vpop.f32.mrb[0].mxu0
        %1340 = vdwg.mxu0
        %v1341 = vadd.f32 %v942, %v1263
        %v1342 = vadd.f32 %v945, %v1266
        %v1343 = vadd.f32 %v950, %v1271
        %v1344 = vadd.f32 %v953, %v1274
        %v1345 = vadd.f32 %v958, %v1279
        %v1346 = vadd.f32 %v961, %v1282
        %v1347 = vadd.f32 %v966, %v1287
        %v1348 = vadd.f32 %v969, %v1290
        %v1349 = vadd.f32 %v974, %v1295
        %v1350 = vadd.f32 %v977, %v1298
        %v1351 = vadd.f32 %v982, %v1303
        %v1352 = vadd.f32 %v985, %v1306
        %v1353 = vadd.f32 %v990, %v1311
        %v1354 = vadd.f32 %v993, %v1314
        %v1355 = vadd.f32 %v998, %v1319
        %v1356 = vadd.f32 %v1001, %v1322
        %v1357 = vadd.f32 %v1006, %v1327
        %v1358 = vadd.f32 %v1009, %v1330
        %v1359 = vadd.f32 %v1014, %v1335
        %v1360 = vadd.f32 %v1017, %v1338
        %s1361 = scalar_lea.vmem %s255, 12 [#allocation3]
        %v1362 = vld [vmem:[%s1361] sm:$0xf]
        %v1363 = vld [vmem:[%s1361 + $0x4] sm:$0xf]
        %v1364 = vld [vmem:[%s1361 + $0xc] sm:$0xf]
        %v1365 = vld [vmem:[%s1361 + $0x10] sm:$0xf]
        %v1366 = vld [vmem:[%s1361 + $0x18] sm:$0xf]
        %v1367 = vld [vmem:[%s1361 + $0x1c] sm:$0xf]
        %v1368 = vld [vmem:[%s1361 + $0x24] sm:$0xf]
        %v1369 = vld [vmem:[%s1361 + $0x28] sm:$0xf]
        %v1370 = vld [vmem:[%s1361 + $0x30] sm:$0xf]
        %v1371 = vld [vmem:[%s1361 + $0x34] sm:$0xf]
        %v1372 = vld [vmem:[%s1361 + $0x3c] sm:$0xf]
        %v1373 = vld [vmem:[%s1361 + $0x40] sm:$0xf]
        %v1374 = vld [vmem:[%s1361 + $0x48] sm:$0xf]
        %v1375 = vld [vmem:[%s1361 + $0x4c] sm:$0xf]
        %v1376 = vld [vmem:[%s1361 + $0x54] sm:$0xf]
        %v1377 = vld [vmem:[%s1361 + $0x58] sm:$0xf]
        %v1378 = vld [vmem:[%s1361 + $0x60] sm:$0xf]
        %v1379 = vld [vmem:[%s1361 + $0x64] sm:$0xf]
        %v1380 = vld [vmem:[%s1361 + $0x6c] sm:$0xf]
        %v1381 = vld [vmem:[%s1361 + $0x70] sm:$0xf]
        %s1382 = scalar_lea.vmem [#allocation6], 192
        %v1383 = vld [vmem:[%s1382] sm:$0xf]
        %v1384 = vld [vmem:[%s1382 + $0x4] sm:$0xf]
        %v1385 = vld [vmem:[%s1382 + $0x8] sm:$0xf]
        %v1386 = vld [vmem:[%s1382 + $0xc] sm:$0xf]
        %v1387 = vld [vmem:[%s1382 + $0x10] sm:$0xf]
        %v1388 = vld [vmem:[%s1382 + $0x14] sm:$0xf]
        %v1389 = vld [vmem:[%s1382 + $0x18] sm:$0xf]
        %v1390 = vld [vmem:[%s1382 + $0x1c] sm:$0xf]
        %v1391 = vld [vmem:[%s1382 + $0x20] sm:$0xf]
        %v1392 = vld [vmem:[%s1382 + $0x24] sm:$0xf]
        %v1393 = vld [vmem:[%s1382 + $0x28] sm:$0xf]
        %v1394 = vld [vmem:[%s1382 + $0x2c] sm:$0xf]
        %v1395 = vld [vmem:[%s1382 + $0x30] sm:$0xf]
        %v1396 = vld [vmem:[%s1382 + $0x34] sm:$0xf]
        %v1397 = vld [vmem:[%s1382 + $0x38] sm:$0xf]
        %v1398 = vld [vmem:[%s1382 + $0x3c] sm:$0xf]
        %v1419 = vunpack.c.l.b16 %v1362
        %v1420 = vunpack.c.l.b16 %v1363
        %v1421 = vunpack.c.l.b16 %v1364
        %v1422 = vunpack.c.l.b16 %v1365
        %v1423 = vunpack.c.l.b16 %v1366
        %v1424 = vunpack.c.l.b16 %v1367
        %v1425 = vunpack.c.l.b16 %v1368
        %v1426 = vunpack.c.l.b16 %v1369
        %v1427 = vunpack.c.l.b16 %v1370
        %v1428 = vunpack.c.l.b16 %v1371
        %v1429 = vunpack.c.l.b16 %v1372
        %v1430 = vunpack.c.l.b16 %v1373
        %v1431 = vunpack.c.l.b16 %v1374
        %v1432 = vunpack.c.l.b16 %v1375
        %v1433 = vunpack.c.l.b16 %v1376
        %v1434 = vunpack.c.l.b16 %v1377
        %v1435 = vunpack.c.l.b16 %v1378
        %v1436 = vunpack.c.l.b16 %v1379
        %v1437 = vunpack.c.l.b16 %v1380
        %v1438 = vunpack.c.l.b16 %v1381
        %v1439 = vpack.c.b16 %v1420, %v1419
        %v1440 = vpack.c.b16 %v1422, %v1421
        %v1441 = vpack.c.b16 %v1424, %v1423
        %v1442 = vpack.c.b16 %v1426, %v1425
        %v1443 = vpack.c.b16 %v1428, %v1427
        %v1444 = vpack.c.b16 %v1430, %v1429
        %v1445 = vpack.c.b16 %v1432, %v1431
        %v1446 = vpack.c.b16 %v1434, %v1433
        %v1447 = vpack.c.b16 %v1436, %v1435
        %v1448 = vpack.c.b16 %v1438, %v1437
        %v1475 = vunpack.c.l.b16 %v1383
        %v1476 = vunpack.c.l.b16 %v1384
        %v1477 = vunpack.c.l.b16 %v1385
        %v1478 = vunpack.c.l.b16 %v1386
        %v1479 = vunpack.c.l.b16 %v1387
        %v1480 = vunpack.c.l.b16 %v1388
        %v1481 = vunpack.c.l.b16 %v1389
        %v1482 = vunpack.c.l.b16 %v1390
        %v1483 = vunpack.c.l.b16 %v1391
        %v1484 = vunpack.c.l.b16 %v1392
        %v1485 = vunpack.c.l.b16 %v1393
        %v1486 = vunpack.c.l.b16 %v1394
        %v1487 = vunpack.c.l.b16 %v1395
        %v1488 = vunpack.c.l.b16 %v1396
        %v1489 = vunpack.c.l.b16 %v1397
        %v1490 = vunpack.c.l.b16 %v1398
        %v1491 = vpack.c.b16 %v1476, %v1475
        %v1492 = vpack.c.b16 %v1478, %v1477
        %v1493 = vpack.c.b16 %v1480, %v1479
        %v1494 = vpack.c.b16 %v1482, %v1481
        %v1495 = vpack.c.b16 %v1484, %v1483
        %v1496 = vpack.c.b16 %v1486, %v1485
        %v1497 = vpack.c.b16 %v1488, %v1487
        %v1498 = vpack.c.b16 %v1490, %v1489
        %1507 = vmatprep.subr.bf16.mxu0 0
        %1508 = vmatpush1.bf16.msra.mxu0 %v1491
        %1509 = vmatprep.subr.bf16.mxu0 0
        %1510 = vmatpush1.bf16.msra.mxu0 %v1492
        %1511 = vmatprep.subr.bf16.mxu0 0
        %1512 = vmatpush1.bf16.msra.mxu0 %v1493
        %1513 = vmatprep.subr.bf16.mxu0 0
        %1514 = vmatpush1.bf16.msra.mxu0 %v1494
        %1515 = vmatprep.subr.bf16.mxu0 0
        %1516 = vmatpush1.bf16.msra.mxu0 %v1495
        %1517 = vmatprep.subr.bf16.mxu0 0
        %1518 = vmatpush1.bf16.msra.mxu0 %v1496
        %1519 = vmatprep.subr.bf16.mxu0 0
        %1520 = vmatpush1.bf16.msra.mxu0 %v1497
        %1521 = vmatprep.subr.bf16.mxu0 0
        %1522 = vmatpush1.bf16.msra.mxu0 %v1498
        %1523 = vmatprep.subr.bf16.mxu0 0
        %1524 = vmatpush1.bf16.msra.mxu0 0
        %1525 = vmatprep.subr.bf16.mxu0 0
        %1526 = vmatpush1.bf16.msra.mxu0 0
        %1527 = vmatprep.subr.bf16.mxu0 0
        %1528 = vmatpush1.bf16.msra.mxu0 0
        %1529 = vmatprep.subr.bf16.mxu0 0
        %1530 = vmatpush1.bf16.msra.mxu0 0
        %1531 = vmatprep.subr.bf16.mxu0 0
        %1532 = vmatpush1.bf16.msra.mxu0 0
        %1533 = vmatprep.subr.bf16.mxu0 0
        %1534 = vmatpush1.bf16.msra.mxu0 0
        %1535 = vmatprep.subr.bf16.mxu0 0
        %1536 = vmatpush1.bf16.msra.mxu0 0
        %1537 = vmatprep.subr.bf16.mxu0 0
        %1538 = vmatpush1.bf16.msra.mxu0 0
        %1539 = vmatprep.mubr.bf16.mxu0 0
        %1540 = vmatmul.mubr.bf16.gmra.mrb[0].mxu0 %v1439
        %v1541 = vpop.f32.mrb[0].mxu0
        %v1542 = vadd.f32 0.0, %v1541
        %v1543 = vpop.f32.mrb[0].mxu0
        %v1544 = vpop.f32.mrb[0].mxu0
        %v1545 = vadd.f32 0.0, %v1544
        %v1546 = vpop.f32.mrb[0].mxu0
        %1547 = vmatprep.mubr.bf16.mxu0 0
        %1548 = vmatmul.mubr.bf16.gmra.mrb[0].mxu0 %v1440
        %v1549 = vpop.f32.mrb[0].mxu0
        %v1550 = vadd.f32 0.0, %v1549
        %v1551 = vpop.f32.mrb[0].mxu0
        %v1552 = vpop.f32.mrb[0].mxu0
        %v1553 = vadd.f32 0.0, %v1552
        %v1554 = vpop.f32.mrb[0].mxu0
        %1555 = vmatprep.mubr.bf16.mxu0 0
        %1556 = vmatmul.mubr.bf16.gmra.mrb[0].mxu0 %v1441
        %v1557 = vpop.f32.mrb[0].mxu0
        %v1558 = vadd.f32 0.0, %v1557
        %v1559 = vpop.f32.mrb[0].mxu0
        %v1560 = vpop.f32.mrb[0].mxu0
        %v1561 = vadd.f32 0.0, %v1560
        %v1562 = vpop.f32.mrb[0].mxu0
        %1563 = vmatprep.mubr.bf16.mxu0 0
        %1564 = vmatmul.mubr.bf16.gmra.mrb[0].mxu0 %v1442
        %v1565 = vpop.f32.mrb[0].mxu0
        %v1566 = vadd.f32 0.0, %v1565
        %v1567 = vpop.f32.mrb[0].mxu0
        %v1568 = vpop.f32.mrb[0].mxu0
        %v1569 = vadd.f32 0.0, %v1568
        %v1570 = vpop.f32.mrb[0].mxu0
        %1571 = vmatprep.mubr.bf16.mxu0 0
        %1572 = vmatmul.mubr.bf16.gmra.mrb[0].mxu0 %v1443
        %v1573 = vpop.f32.mrb[0].mxu0
        %v1574 = vadd.f32 0.0, %v1573
        %v1575 = vpop.f32.mrb[0].mxu0
        %v1576 = vpop.f32.mrb[0].mxu0
        %v1577 = vadd.f32 0.0, %v1576
        %v1578 = vpop.f32.mrb[0].mxu0
        %1579 = vmatprep.mubr.bf16.mxu0 0
        %1580 = vmatmul.mubr.bf16.gmra.mrb[0].mxu0 %v1444
        %v1581 = vpop.f32.mrb[0].mxu0
        %v1582 = vadd.f32 0.0, %v1581
        %v1583 = vpop.f32.mrb[0].mxu0
        %v1584 = vpop.f32.mrb[0].mxu0
        %v1585 = vadd.f32 0.0, %v1584
        %v1586 = vpop.f32.mrb[0].mxu0
        %1587 = vmatprep.mubr.bf16.mxu0 0
        %1588 = vmatmul.mubr.bf16.gmra.mrb[0].mxu0 %v1445
        %v1589 = vpop.f32.mrb[0].mxu0
        %v1590 = vadd.f32 0.0, %v1589
        %v1591 = vpop.f32.mrb[0].mxu0
        %v1592 = vpop.f32.mrb[0].mxu0
        %v1593 = vadd.f32 0.0, %v1592
        %v1594 = vpop.f32.mrb[0].mxu0
        %1595 = vmatprep.mubr.bf16.mxu0 0
        %1596 = vmatmul.mubr.bf16.gmra.mrb[0].mxu0 %v1446
        %v1597 = vpop.f32.mrb[0].mxu0
        %v1598 = vadd.f32 0.0, %v1597
        %v1599 = vpop.f32.mrb[0].mxu0
        %v1600 = vpop.f32.mrb[0].mxu0
        %v1601 = vadd.f32 0.0, %v1600
        %v1602 = vpop.f32.mrb[0].mxu0
        %1603 = vmatprep.mubr.bf16.mxu0 0
        %1604 = vmatmul.mubr.bf16.gmra.mrb[0].mxu0 %v1447
        %v1605 = vpop.f32.mrb[0].mxu0
        %v1606 = vadd.f32 0.0, %v1605
        %v1607 = vpop.f32.mrb[0].mxu0
        %v1608 = vpop.f32.mrb[0].mxu0
        %v1609 = vadd.f32 0.0, %v1608
        %v1610 = vpop.f32.mrb[0].mxu0
        %1611 = vmatprep.mubr.bf16.mxu0 0
        %1612 = vmatmul.mubr.bf16.gmra.mrb[0].mxu0 %v1448
        %v1613 = vpop.f32.mrb[0].mxu0
        %v1614 = vadd.f32 0.0, %v1613
        %v1615 = vpop.f32.mrb[0].mxu0
        %v1616 = vpop.f32.mrb[0].mxu0
        %v1617 = vadd.f32 0.0, %v1616
        %v1618 = vpop.f32.mrb[0].mxu0
        %1619 = vdwg.mxu0
        %v1620 = vadd.f32 %v1341, %v1542
        %v1621 = vadd.f32 %v1342, %v1545
        %v1622 = vadd.f32 %v1343, %v1550
        %v1623 = vadd.f32 %v1344, %v1553
        %v1624 = vadd.f32 %v1345, %v1558
        %v1625 = vadd.f32 %v1346, %v1561
        %v1626 = vadd.f32 %v1347, %v1566
        %v1627 = vadd.f32 %v1348, %v1569
        %v1628 = vadd.f32 %v1349, %v1574
        %v1629 = vadd.f32 %v1350, %v1577
        %v1630 = vadd.f32 %v1351, %v1582
        %v1631 = vadd.f32 %v1352, %v1585
        %v1632 = vadd.f32 %v1353, %v1590
        %v1633 = vadd.f32 %v1354, %v1593
        %v1634 = vadd.f32 %v1355, %v1598
        %v1635 = vadd.f32 %v1356, %v1601
        %v1636 = vadd.f32 %v1357, %v1606
        %v1637 = vadd.f32 %v1358, %v1609
        %v1638 = vadd.f32 %v1359, %v1614
        %v1639 = vadd.f32 %v1360, %v1617
        %v1640 = vld [vmem:[%s1361] sm:$0xf]
        %v1641 = vld [vmem:[%s1361 + $0x4] sm:$0xf]
        %v1642 = vld [vmem:[%s1361 + $0x8] sm:$0x1]
        %v1643 = vld [vmem:[%s1361 + $0xc] sm:$0xf]
        %v1644 = vld [vmem:[%s1361 + $0x10] sm:$0xf]
        %v1645 = vld [vmem:[%s1361 + $0x14] sm:$0x1]
        %v1646 = vld [vmem:[%s1361 + $0x18] sm:$0xf]
        %v1647 = vld [vmem:[%s1361 + $0x1c] sm:$0xf]
        %v1648 = vld [vmem:[%s1361 + $0x20] sm:$0x1]
        %v1649 = vld [vmem:[%s1361 + $0x24] sm:$0xf]
        %v1650 = vld [vmem:[%s1361 + $0x28] sm:$0xf]
        %v1651 = vld [vmem:[%s1361 + $0x2c] sm:$0x1]
        %v1652 = vld [vmem:[%s1361 + $0x30] sm:$0xf]
        %v1653 = vld [vmem:[%s1361 + $0x34] sm:$0xf]
        %v1654 = vld [vmem:[%s1361 + $0x38] sm:$0x1]
        %v1655 = vld [vmem:[%s1361 + $0x3c] sm:$0xf]
        %v1656 = vld [vmem:[%s1361 + $0x40] sm:$0xf]
        %v1657 = vld [vmem:[%s1361 + $0x44] sm:$0x1]
        %v1658 = vld [vmem:[%s1361 + $0x48] sm:$0xf]
        %v1659 = vld [vmem:[%s1361 + $0x4c] sm:$0xf]
        %v1660 = vld [vmem:[%s1361 + $0x50] sm:$0x1]
        %v1661 = vld [vmem:[%s1361 + $0x54] sm:$0xf]
        %v1662 = vld [vmem:[%s1361 + $0x58] sm:$0xf]
        %v1663 = vld [vmem:[%s1361 + $0x5c] sm:$0x1]
        %v1664 = vld [vmem:[%s1361 + $0x60] sm:$0xf]
        %v1665 = vld [vmem:[%s1361 + $0x64] sm:$0xf]
        %v1666 = vld [vmem:[%s1361 + $0x68] sm:$0x1]
        %v1667 = vld [vmem:[%s1361 + $0x6c] sm:$0xf]
        %v1668 = vld [vmem:[%s1361 + $0x70] sm:$0xf]
        %v1669 = vld [vmem:[%s1361 + $0x74] sm:$0x1]
        %v1671 = vshrl.u32 %v1640, 16
        %v1673 = vrot.slane %v1671, 4
        %v1674 = vshll.u32 %v1640, 16
        %v1676 = vrot.slane %v1674, 5
        %v1677 = vor.u32 %v1673, %v1676
        %v1678 = vrot.slane %v1677, 4
        %v1680 = vshll.u32 %v1641, 16
        %v1682 = vrot.slane %v1680, 5
        %v1683 = vsel %vm340, %v1678, %v1682
        %v1684 = vshrl.u32 %v1641, 16
        %v1686 = vrot.slane %v1684, 4
        %v1687 = vor.u32 %v1686, %v1682
        %v1688 = vrot.slane %v1687, 4
        %v1690 = vshll.u32 %v1642, 16
        %v1692 = vrot.slane %v1690, 5
        %v1693 = vsel %vm340, %v1688, %v1692
        %v1695 = vshrl.u32 %v1643, 16
        %v1697 = vrot.slane %v1695, 4
        %v1698 = vshll.u32 %v1643, 16
        %v1700 = vrot.slane %v1698, 5
        %v1701 = vor.u32 %v1697, %v1700
        %v1702 = vrot.slane %v1701, 4
        %v1704 = vshll.u32 %v1644, 16
        %v1706 = vrot.slane %v1704, 5
        %v1707 = vsel %vm340, %v1702, %v1706
        %v1708 = vshrl.u32 %v1644, 16
        %v1710 = vrot.slane %v1708, 4
        %v1711 = vor.u32 %v1710, %v1706
        %v1712 = vrot.slane %v1711, 4
        %v1714 = vshll.u32 %v1645, 16
        %v1716 = vrot.slane %v1714, 5
        %v1717 = vsel %vm340, %v1712, %v1716
        %v1719 = vshrl.u32 %v1646, 16
        %v1721 = vrot.slane %v1719, 4
        %v1722 = vshll.u32 %v1646, 16
        %v1724 = vrot.slane %v1722, 5
        %v1725 = vor.u32 %v1721, %v1724
        %v1726 = vrot.slane %v1725, 4
        %v1728 = vshll.u32 %v1647, 16
        %v1730 = vrot.slane %v1728, 5
        %v1731 = vsel %vm340, %v1726, %v1730
        %v1732 = vshrl.u32 %v1647, 16
        %v1734 = vrot.slane %v1732, 4
        %v1735 = vor.u32 %v1734, %v1730
        %v1736 = vrot.slane %v1735, 4
        %v1738 = vshll.u32 %v1648, 16
        %v1740 = vrot.slane %v1738, 5
        %v1741 = vsel %vm340, %v1736, %v1740
        %v1743 = vshrl.u32 %v1649, 16
        %v1745 = vrot.slane %v1743, 4
        %v1746 = vshll.u32 %v1649, 16
        %v1748 = vrot.slane %v1746, 5
        %v1749 = vor.u32 %v1745, %v1748
        %v1750 = vrot.slane %v1749, 4
        %v1752 = vshll.u32 %v1650, 16
        %v1754 = vrot.slane %v1752, 5
        %v1755 = vsel %vm340, %v1750, %v1754
        %v1756 = vshrl.u32 %v1650, 16
        %v1758 = vrot.slane %v1756, 4
        %v1759 = vor.u32 %v1758, %v1754
        %v1760 = vrot.slane %v1759, 4
        %v1762 = vshll.u32 %v1651, 16
        %v1764 = vrot.slane %v1762, 5
        %v1765 = vsel %vm340, %v1760, %v1764
        %v1767 = vshrl.u32 %v1652, 16
        %v1769 = vrot.slane %v1767, 4
        %v1770 = vshll.u32 %v1652, 16
        %v1772 = vrot.slane %v1770, 5
        %v1773 = vor.u32 %v1769, %v1772
        %v1774 = vrot.slane %v1773, 4
        %v1776 = vshll.u32 %v1653, 16
        %v1778 = vrot.slane %v1776, 5
        %v1779 = vsel %vm340, %v1774, %v1778
        %v1780 = vshrl.u32 %v1653, 16
        %v1782 = vrot.slane %v1780, 4
        %v1783 = vor.u32 %v1782, %v1778
        %v1784 = vrot.slane %v1783, 4
        %v1786 = vshll.u32 %v1654, 16
        %v1788 = vrot.slane %v1786, 5
        %v1789 = vsel %vm340, %v1784, %v1788
        %v1791 = vshrl.u32 %v1655, 16
        %v1793 = vrot.slane %v1791, 4
        %v1794 = vshll.u32 %v1655, 16
        %v1796 = vrot.slane %v1794, 5
        %v1797 = vor.u32 %v1793, %v1796
        %v1798 = vrot.slane %v1797, 4
        %v1800 = vshll.u32 %v1656, 16
        %v1802 = vrot.slane %v1800, 5
        %v1803 = vsel %vm340, %v1798, %v1802
        %v1804 = vshrl.u32 %v1656, 16
        %v1806 = vrot.slane %v1804, 4
        %v1807 = vor.u32 %v1806, %v1802
        %v1808 = vrot.slane %v1807, 4
        %v1810 = vshll.u32 %v1657, 16
        %v1812 = vrot.slane %v1810, 5
        %v1813 = vsel %vm340, %v1808, %v1812
        %v1815 = vshrl.u32 %v1658, 16
        %v1817 = vrot.slane %v1815, 4
        %v1818 = vshll.u32 %v1658, 16
        %v1820 = vrot.slane %v1818, 5
        %v1821 = vor.u32 %v1817, %v1820
        %v1822 = vrot.slane %v1821, 4
        %v1824 = vshll.u32 %v1659, 16
        %v1826 = vrot.slane %v1824, 5
        %v1827 = vsel %vm340, %v1822, %v1826
        %v1828 = vshrl.u32 %v1659, 16
        %v1830 = vrot.slane %v1828, 4
        %v1831 = vor.u32 %v1830, %v1826
        %v1832 = vrot.slane %v1831, 4
        %v1834 = vshll.u32 %v1660, 16
        %v1836 = vrot.slane %v1834, 5
        %v1837 = vsel %vm340, %v1832, %v1836
        %v1839 = vshrl.u32 %v1661, 16
        %v1841 = vrot.slane %v1839, 4
        %v1842 = vshll.u32 %v1661, 16
        %v1844 = vrot.slane %v1842, 5
        %v1845 = vor.u32 %v1841, %v1844
        %v1846 = vrot.slane %v1845, 4
        %v1848 = vshll.u32 %v1662, 16
        %v1850 = vrot.slane %v1848, 5
        %v1851 = vsel %vm340, %v1846, %v1850
        %v1852 = vshrl.u32 %v1662, 16
        %v1854 = vrot.slane %v1852, 4
        %v1855 = vor.u32 %v1854, %v1850
        %v1856 = vrot.slane %v1855, 4
        %v1858 = vshll.u32 %v1663, 16
        %v1860 = vrot.slane %v1858, 5
        %v1861 = vsel %vm340, %v1856, %v1860
        %v1863 = vshrl.u32 %v1664, 16
        %v1865 = vrot.slane %v1863, 4
        %v1866 = vshll.u32 %v1664, 16
        %v1868 = vrot.slane %v1866, 5
        %v1869 = vor.u32 %v1865, %v1868
        %v1870 = vrot.slane %v1869, 4
        %v1872 = vshll.u32 %v1665, 16
        %v1874 = vrot.slane %v1872, 5
        %v1875 = vsel %vm340, %v1870, %v1874
        %v1876 = vshrl.u32 %v1665, 16
        %v1878 = vrot.slane %v1876, 4
        %v1879 = vor.u32 %v1878, %v1874
        %v1880 = vrot.slane %v1879, 4
        %v1882 = vshll.u32 %v1666, 16
        %v1884 = vrot.slane %v1882, 5
        %v1885 = vsel %vm340, %v1880, %v1884
        %v1887 = vshrl.u32 %v1667, 16
        %v1889 = vrot.slane %v1887, 4
        %v1890 = vshll.u32 %v1667, 16
        %v1892 = vrot.slane %v1890, 5
        %v1893 = vor.u32 %v1889, %v1892
        %v1894 = vrot.slane %v1893, 4
        %v1896 = vshll.u32 %v1668, 16
        %v1898 = vrot.slane %v1896, 5
        %v1899 = vsel %vm340, %v1894, %v1898
        %v1900 = vshrl.u32 %v1668, 16
        %v1902 = vrot.slane %v1900, 4
        %v1903 = vor.u32 %v1902, %v1898
        %v1904 = vrot.slane %v1903, 4
        %v1906 = vshll.u32 %v1669, 16
        %v1908 = vrot.slane %v1906, 5
        %v1909 = vsel %vm340, %v1904, %v1908
        %s1910 = scalar_lea.vmem [#allocation6], 256
        %v1911 = vld [vmem:[%s1910] sm:$0xf]
        %v1912 = vld [vmem:[%s1910 + $0x4] sm:$0xf]
        %v1913 = vld [vmem:[%s1910 + $0x8] sm:$0xf]
        %v1914 = vld [vmem:[%s1910 + $0xc] sm:$0xf]
        %v1915 = vld [vmem:[%s1910 + $0x10] sm:$0xf]
        %v1916 = vld [vmem:[%s1910 + $0x14] sm:$0xf]
        %v1917 = vld [vmem:[%s1910 + $0x18] sm:$0xf]
        %v1918 = vld [vmem:[%s1910 + $0x1c] sm:$0xf]
        %v1919 = vld [vmem:[%s1910 + $0x20] sm:$0xf]
        %v1920 = vld [vmem:[%s1910 + $0x24] sm:$0xf]
        %v1921 = vld [vmem:[%s1910 + $0x28] sm:$0xf]
        %v1922 = vld [vmem:[%s1910 + $0x2c] sm:$0xf]
        %v1923 = vld [vmem:[%s1910 + $0x30] sm:$0xf]
        %v1924 = vld [vmem:[%s1910 + $0x34] sm:$0xf]
        %v1925 = vld [vmem:[%s1910 + $0x38] sm:$0xf]
        %v1926 = vld [vmem:[%s1910 + $0x3c] sm:$0xf]
        %v1927 = vunpack.c.l.b16 %v1683
        %v1928 = vunpack.c.l.b16 %v1693
        %v1929 = vunpack.c.l.b16 %v1707
        %v1930 = vunpack.c.l.b16 %v1717
        %v1931 = vunpack.c.l.b16 %v1731
        %v1932 = vunpack.c.l.b16 %v1741
        %v1933 = vunpack.c.l.b16 %v1755
        %v1934 = vunpack.c.l.b16 %v1765
        %v1935 = vunpack.c.l.b16 %v1779
        %v1936 = vunpack.c.l.b16 %v1789
        %v1937 = vunpack.c.l.b16 %v1803
        %v1938 = vunpack.c.l.b16 %v1813
        %v1939 = vunpack.c.l.b16 %v1827
        %v1940 = vunpack.c.l.b16 %v1837
        %v1941 = vunpack.c.l.b16 %v1851
        %v1942 = vunpack.c.l.b16 %v1861
        %v1943 = vunpack.c.l.b16 %v1875
        %v1944 = vunpack.c.l.b16 %v1885
        %v1945 = vunpack.c.l.b16 %v1899
        %v1946 = vunpack.c.l.b16 %v1909
        %v1947 = vpack.c.b16 %v1928, %v1927
        %v1948 = vpack.c.b16 %v1930, %v1929
        %v1949 = vpack.c.b16 %v1932, %v1931
        %v1950 = vpack.c.b16 %v1934, %v1933
        %v1951 = vpack.c.b16 %v1936, %v1935
        %v1952 = vpack.c.b16 %v1938, %v1937
        %v1953 = vpack.c.b16 %v1940, %v1939
        %v1954 = vpack.c.b16 %v1942, %v1941
        %v1955 = vpack.c.b16 %v1944, %v1943
        %v1956 = vpack.c.b16 %v1946, %v1945
        %v1983 = vunpack.c.l.b16 %v1911
        %v1984 = vunpack.c.l.b16 %v1912
        %v1985 = vunpack.c.l.b16 %v1913
        %v1986 = vunpack.c.l.b16 %v1914
        %v1987 = vunpack.c.l.b16 %v1915
        %v1988 = vunpack.c.l.b16 %v1916
        %v1989 = vunpack.c.l.b16 %v1917
        %v1990 = vunpack.c.l.b16 %v1918
        %v1991 = vunpack.c.l.b16 %v1919
        %v1992 = vunpack.c.l.b16 %v1920
        %v1993 = vunpack.c.l.b16 %v1921
        %v1994 = vunpack.c.l.b16 %v1922
        %v1995 = vunpack.c.l.b16 %v1923
        %v1996 = vunpack.c.l.b16 %v1924
        %v1997 = vunpack.c.l.b16 %v1925
        %v1998 = vunpack.c.l.b16 %v1926
        %v1999 = vpack.c.b16 %v1984, %v1983
        %v2000 = vpack.c.b16 %v1986, %v1985
        %v2001 = vpack.c.b16 %v1988, %v1987
        %v2002 = vpack.c.b16 %v1990, %v1989
        %v2003 = vpack.c.b16 %v1992, %v1991
        %v2004 = vpack.c.b16 %v1994, %v1993
        %v2005 = vpack.c.b16 %v1996, %v1995
        %v2006 = vpack.c.b16 %v1998, %v1997
        %2015 = vmatprep.subr.bf16.mxu0 0
        %2016 = vmatpush1.bf16.msra.mxu0 %v1999
        %2017 = vmatprep.subr.bf16.mxu0 0
        %2018 = vmatpush1.bf16.msra.mxu0 %v2000
        %2019 = vmatprep.subr.bf16.mxu0 0
        %2020 = vmatpush1.bf16.msra.mxu0 %v2001
        %2021 = vmatprep.subr.bf16.mxu0 0
        %2022 = vmatpush1.bf16.msra.mxu0 %v2002
        %2023 = vmatprep.subr.bf16.mxu0 0
        %2024 = vmatpush1.bf16.msra.mxu0 %v2003
        %2025 = vmatprep.subr.bf16.mxu0 0
        %2026 = vmatpush1.bf16.msra.mxu0 %v2004
        %2027 = vmatprep.subr.bf16.mxu0 0
        %2028 = vmatpush1.bf16.msra.mxu0 %v2005
        %2029 = vmatprep.subr.bf16.mxu0 0
        %2030 = vmatpush1.bf16.msra.mxu0 %v2006
        %2031 = vmatprep.subr.bf16.mxu0 0
        %2032 = vmatpush1.bf16.msra.mxu0 0
        %2033 = vmatprep.subr.bf16.mxu0 0
        %2034 = vmatpush1.bf16.msra.mxu0 0
        %2035 = vmatprep.subr.bf16.mxu0 0
        %2036 = vmatpush1.bf16.msra.mxu0 0
        %2037 = vmatprep.subr.bf16.mxu0 0
        %2038 = vmatpush1.bf16.msra.mxu0 0
        %2039 = vmatprep.subr.bf16.mxu0 0
        %2040 = vmatpush1.bf16.msra.mxu0 0
        %2041 = vmatprep.subr.bf16.mxu0 0
        %2042 = vmatpush1.bf16.msra.mxu0 0
        %2043 = vmatprep.subr.bf16.mxu0 0
        %2044 = vmatpush1.bf16.msra.mxu0 0
        %2045 = vmatprep.subr.bf16.mxu0 0
        %2046 = vmatpush1.bf16.msra.mxu0 0
        %2047 = vmatprep.mubr.bf16.mxu0 0
        %2048 = vmatmul.mubr.bf16.gmra.mrb[0].mxu0 %v1947
        %v2049 = vpop.f32.mrb[0].mxu0
        %v2050 = vadd.f32 0.0, %v2049
        %v2051 = vpop.f32.mrb[0].mxu0
        %v2052 = vpop.f32.mrb[0].mxu0
        %v2053 = vadd.f32 0.0, %v2052
        %v2054 = vpop.f32.mrb[0].mxu0
        %2055 = vmatprep.mubr.bf16.mxu0 0
        %2056 = vmatmul.mubr.bf16.gmra.mrb[0].mxu0 %v1948
        %v2057 = vpop.f32.mrb[0].mxu0
        %v2058 = vadd.f32 0.0, %v2057
        %v2059 = vpop.f32.mrb[0].mxu0
        %v2060 = vpop.f32.mrb[0].mxu0
        %v2061 = vadd.f32 0.0, %v2060
        %v2062 = vpop.f32.mrb[0].mxu0
        %2063 = vmatprep.mubr.bf16.mxu0 0
        %2064 = vmatmul.mubr.bf16.gmra.mrb[0].mxu0 %v1949
        %v2065 = vpop.f32.mrb[0].mxu0
        %v2066 = vadd.f32 0.0, %v2065
        %v2067 = vpop.f32.mrb[0].mxu0
        %v2068 = vpop.f32.mrb[0].mxu0
        %v2069 = vadd.f32 0.0, %v2068
        %v2070 = vpop.f32.mrb[0].mxu0
        %2071 = vmatprep.mubr.bf16.mxu0 0
        %2072 = vmatmul.mubr.bf16.gmra.mrb[0].mxu0 %v1950
        %v2073 = vpop.f32.mrb[0].mxu0
        %v2074 = vadd.f32 0.0, %v2073
        %v2075 = vpop.f32.mrb[0].mxu0
        %v2076 = vpop.f32.mrb[0].mxu0
        %v2077 = vadd.f32 0.0, %v2076
        %v2078 = vpop.f32.mrb[0].mxu0
        %2079 = vmatprep.mubr.bf16.mxu0 0
        %2080 = vmatmul.mubr.bf16.gmra.mrb[0].mxu0 %v1951
        %v2081 = vpop.f32.mrb[0].mxu0
        %v2082 = vadd.f32 0.0, %v2081
        %v2083 = vpop.f32.mrb[0].mxu0
        %v2084 = vpop.f32.mrb[0].mxu0
        %v2085 = vadd.f32 0.0, %v2084
        %v2086 = vpop.f32.mrb[0].mxu0
        %2087 = vmatprep.mubr.bf16.mxu0 0
        %2088 = vmatmul.mubr.bf16.gmra.mrb[0].mxu0 %v1952
        %v2089 = vpop.f32.mrb[0].mxu0
        %v2090 = vadd.f32 0.0, %v2089
        %v2091 = vpop.f32.mrb[0].mxu0
        %v2092 = vpop.f32.mrb[0].mxu0
        %v2093 = vadd.f32 0.0, %v2092
        %v2094 = vpop.f32.mrb[0].mxu0
        %2095 = vmatprep.mubr.bf16.mxu0 0
        %2096 = vmatmul.mubr.bf16.gmra.mrb[0].mxu0 %v1953
        %v2097 = vpop.f32.mrb[0].mxu0
        %v2098 = vadd.f32 0.0, %v2097
        %v2099 = vpop.f32.mrb[0].mxu0
        %v2100 = vpop.f32.mrb[0].mxu0
        %v2101 = vadd.f32 0.0, %v2100
        %v2102 = vpop.f32.mrb[0].mxu0
        %2103 = vmatprep.mubr.bf16.mxu0 0
        %2104 = vmatmul.mubr.bf16.gmra.mrb[0].mxu0 %v1954
        %v2105 = vpop.f32.mrb[0].mxu0
        %v2106 = vadd.f32 0.0, %v2105
        %v2107 = vpop.f32.mrb[0].mxu0
        %v2108 = vpop.f32.mrb[0].mxu0
        %v2109 = vadd.f32 0.0, %v2108
        %v2110 = vpop.f32.mrb[0].mxu0
        %2111 = vmatprep.mubr.bf16.mxu0 0
        %2112 = vmatmul.mubr.bf16.gmra.mrb[0].mxu0 %v1955
        %v2113 = vpop.f32.mrb[0].mxu0
        %v2114 = vadd.f32 0.0, %v2113
        %v2115 = vpop.f32.mrb[0].mxu0
        %v2116 = vpop.f32.mrb[0].mxu0
        %v2117 = vadd.f32 0.0, %v2116
        %v2118 = vpop.f32.mrb[0].mxu0
        %2119 = vmatprep.mubr.bf16.mxu0 0
        %2120 = vmatmul.mubr.bf16.gmra.mrb[0].mxu0 %v1956
        %v2121 = vpop.f32.mrb[0].mxu0
        %v2122 = vadd.f32 0.0, %v2121
        %v2123 = vpop.f32.mrb[0].mxu0
        %v2124 = vpop.f32.mrb[0].mxu0
        %v2125 = vadd.f32 0.0, %v2124
        %v2126 = vpop.f32.mrb[0].mxu0
        %2127 = vdwg.mxu0
        %v2128 = vadd.f32 %v1620, %v2050
        %v2129 = vadd.f32 %v1621, %v2053
        %v2130 = vadd.f32 %v1622, %v2058
        %v2131 = vadd.f32 %v1623, %v2061
        %v2132 = vadd.f32 %v1624, %v2066
        %v2133 = vadd.f32 %v1625, %v2069
        %v2134 = vadd.f32 %v1626, %v2074
        %v2135 = vadd.f32 %v1627, %v2077
        %v2136 = vadd.f32 %v1628, %v2082
        %v2137 = vadd.f32 %v1629, %v2085
        %v2138 = vadd.f32 %v1630, %v2090
        %v2139 = vadd.f32 %v1631, %v2093
        %v2140 = vadd.f32 %v1632, %v2098
        %v2141 = vadd.f32 %v1633, %v2101
        %v2142 = vadd.f32 %v1634, %v2106
        %v2143 = vadd.f32 %v1635, %v2109
        %v2144 = vadd.f32 %v1636, %v2114
        %v2145 = vadd.f32 %v1637, %v2117
        %v2146 = vadd.f32 %v1638, %v2122
        %v2147 = vadd.f32 %v1639, %v2125
        %v2148 = vld [vmem:[%s1361] sm:$0xe]
        %v2149 = vld [vmem:[%s1361 + $0xc] sm:$0xe]
        %v2150 = vld [vmem:[%s1361 + $0x18] sm:$0xe]
        %v2151 = vld [vmem:[%s1361 + $0x24] sm:$0xe]
        %v2152 = vld [vmem:[%s1361 + $0x30] sm:$0xe]
        %v2153 = vld [vmem:[%s1361 + $0x3c] sm:$0xe]
        %v2154 = vld [vmem:[%s1361 + $0x48] sm:$0xe]
        %v2155 = vld [vmem:[%s1361 + $0x54] sm:$0xe]
        %v2156 = vld [vmem:[%s1361 + $0x60] sm:$0xe]
        %v2157 = vld [vmem:[%s1361 + $0x6c] sm:$0xe]
        %v2188 = vrot.slane %v2148, 5
        %v2189 = vrot.slane %v2188, 4
        %v2190 = vrot.slane %v1641, 5
        %v2191 = vsel %vm1052, %v2189, %v2190
        %v2192 = vrot.slane %v2190, 4
        %v2193 = vrot.slane %v1642, 5
        %v2194 = vsel %vm1052, %v2192, %v2193
        %v2195 = vrot.slane %v2149, 5
        %v2196 = vrot.slane %v2195, 4
        %v2197 = vrot.slane %v1644, 5
        %v2198 = vsel %vm1052, %v2196, %v2197
        %v2199 = vrot.slane %v2197, 4
        %v2200 = vrot.slane %v1645, 5
        %v2201 = vsel %vm1052, %v2199, %v2200
        %v2202 = vrot.slane %v2150, 5
        %v2203 = vrot.slane %v2202, 4
        %v2204 = vrot.slane %v1647, 5
        %v2205 = vsel %vm1052, %v2203, %v2204
        %v2206 = vrot.slane %v2204, 4
        %v2207 = vrot.slane %v1648, 5
        %v2208 = vsel %vm1052, %v2206, %v2207
        %v2209 = vrot.slane %v2151, 5
        %v2210 = vrot.slane %v2209, 4
        %v2211 = vrot.slane %v1650, 5
        %v2212 = vsel %vm1052, %v2210, %v2211
        %v2213 = vrot.slane %v2211, 4
        %v2214 = vrot.slane %v1651, 5
        %v2215 = vsel %vm1052, %v2213, %v2214
        %v2216 = vrot.slane %v2152, 5
        %v2217 = vrot.slane %v2216, 4
        %v2218 = vrot.slane %v1653, 5
        %v2219 = vsel %vm1052, %v2217, %v2218
        %v2220 = vrot.slane %v2218, 4
        %v2221 = vrot.slane %v1654, 5
        %v2222 = vsel %vm1052, %v2220, %v2221
        %v2223 = vrot.slane %v2153, 5
        %v2224 = vrot.slane %v2223, 4
        %v2225 = vrot.slane %v1656, 5
        %v2226 = vsel %vm1052, %v2224, %v2225
        %v2227 = vrot.slane %v2225, 4
        %v2228 = vrot.slane %v1657, 5
        %v2229 = vsel %vm1052, %v2227, %v2228
        %v2230 = vrot.slane %v2154, 5
        %v2231 = vrot.slane %v2230, 4
        %v2232 = vrot.slane %v1659, 5
        %v2233 = vsel %vm1052, %v2231, %v2232
        %v2234 = vrot.slane %v2232, 4
        %v2235 = vrot.slane %v1660, 5
        %v2236 = vsel %vm1052, %v2234, %v2235
        %v2237 = vrot.slane %v2155, 5
        %v2238 = vrot.slane %v2237, 4
        %v2239 = vrot.slane %v1662, 5
        %v2240 = vsel %vm1052, %v2238, %v2239
        %v2241 = vrot.slane %v2239, 4
        %v2242 = vrot.slane %v1663, 5
        %v2243 = vsel %vm1052, %v2241, %v2242
        %v2244 = vrot.slane %v2156, 5
        %v2245 = vrot.slane %v2244, 4
        %v2246 = vrot.slane %v1665, 5
        %v2247 = vsel %vm1052, %v2245, %v2246
        %v2248 = vrot.slane %v2246, 4
        %v2249 = vrot.slane %v1666, 5
        %v2250 = vsel %vm1052, %v2248, %v2249
        %v2251 = vrot.slane %v2157, 5
        %v2252 = vrot.slane %v2251, 4
        %v2253 = vrot.slane %v1668, 5
        %v2254 = vsel %vm1052, %v2252, %v2253
        %v2255 = vrot.slane %v2253, 4
        %v2256 = vrot.slane %v1669, 5
        %v2257 = vsel %vm1052, %v2255, %v2256
        %s2258 = scalar_lea.vmem [#allocation6], 320
        %v2259 = vld [vmem:[%s2258] sm:$0xf]
        %v2260 = vld [vmem:[%s2258 + $0x4] sm:$0xf]
        %v2261 = vld [vmem:[%s2258 + $0x8] sm:$0xf]
        %v2262 = vld [vmem:[%s2258 + $0xc] sm:$0xf]
        %v2263 = vld [vmem:[%s2258 + $0x10] sm:$0xf]
        %v2264 = vld [vmem:[%s2258 + $0x14] sm:$0xf]
        %v2265 = vld [vmem:[%s2258 + $0x18] sm:$0xf]
        %v2266 = vld [vmem:[%s2258 + $0x1c] sm:$0xf]
        %v2267 = vld [vmem:[%s2258 + $0x20] sm:$0xf]
        %v2268 = vld [vmem:[%s2258 + $0x24] sm:$0xf]
        %v2269 = vld [vmem:[%s2258 + $0x28] sm:$0xf]
        %v2270 = vld [vmem:[%s2258 + $0x2c] sm:$0xf]
        %v2271 = vld [vmem:[%s2258 + $0x30] sm:$0xf]
        %v2272 = vld [vmem:[%s2258 + $0x34] sm:$0xf]
        %v2273 = vld [vmem:[%s2258 + $0x38] sm:$0xf]
        %v2274 = vld [vmem:[%s2258 + $0x3c] sm:$0xf]
        %v2275 = vunpack.c.l.b16 %v2191
        %v2276 = vunpack.c.l.b16 %v2194
        %v2277 = vunpack.c.l.b16 %v2198
        %v2278 = vunpack.c.l.b16 %v2201
        %v2279 = vunpack.c.l.b16 %v2205
        %v2280 = vunpack.c.l.b16 %v2208
        %v2281 = vunpack.c.l.b16 %v2212
        %v2282 = vunpack.c.l.b16 %v2215
        %v2283 = vunpack.c.l.b16 %v2219
        %v2284 = vunpack.c.l.b16 %v2222
        %v2285 = vunpack.c.l.b16 %v2226
        %v2286 = vunpack.c.l.b16 %v2229
        %v2287 = vunpack.c.l.b16 %v2233
        %v2288 = vunpack.c.l.b16 %v2236
        %v2289 = vunpack.c.l.b16 %v2240
        %v2290 = vunpack.c.l.b16 %v2243
        %v2291 = vunpack.c.l.b16 %v2247
        %v2292 = vunpack.c.l.b16 %v2250
        %v2293 = vunpack.c.l.b16 %v2254
        %v2294 = vunpack.c.l.b16 %v2257
        %v2295 = vpack.c.b16 %v2276, %v2275
        %v2296 = vpack.c.b16 %v2278, %v2277
        %v2297 = vpack.c.b16 %v2280, %v2279
        %v2298 = vpack.c.b16 %v2282, %v2281
        %v2299 = vpack.c.b16 %v2284, %v2283
        %v2300 = vpack.c.b16 %v2286, %v2285
        %v2301 = vpack.c.b16 %v2288, %v2287
        %v2302 = vpack.c.b16 %v2290, %v2289
        %v2303 = vpack.c.b16 %v2292, %v2291
        %v2304 = vpack.c.b16 %v2294, %v2293
        %v2331 = vunpack.c.l.b16 %v2259
        %v2332 = vunpack.c.l.b16 %v2260
        %v2333 = vunpack.c.l.b16 %v2261
        %v2334 = vunpack.c.l.b16 %v2262
        %v2335 = vunpack.c.l.b16 %v2263
        %v2336 = vunpack.c.l.b16 %v2264
        %v2337 = vunpack.c.l.b16 %v2265
        %v2338 = vunpack.c.l.b16 %v2266
        %v2339 = vunpack.c.l.b16 %v2267
        %v2340 = vunpack.c.l.b16 %v2268
        %v2341 = vunpack.c.l.b16 %v2269
        %v2342 = vunpack.c.l.b16 %v2270
        %v2343 = vunpack.c.l.b16 %v2271
        %v2344 = vunpack.c.l.b16 %v2272
        %v2345 = vunpack.c.l.b16 %v2273
        %v2346 = vunpack.c.l.b16 %v2274
        %v2347 = vpack.c.b16 %v2332, %v2331
        %v2348 = vpack.c.b16 %v2334, %v2333
        %v2349 = vpack.c.b16 %v2336, %v2335
        %v2350 = vpack.c.b16 %v2338, %v2337
        %v2351 = vpack.c.b16 %v2340, %v2339
        %v2352 = vpack.c.b16 %v2342, %v2341
        %v2353 = vpack.c.b16 %v2344, %v2343
        %v2354 = vpack.c.b16 %v2346, %v2345
        %2363 = vmatprep.subr.bf16.mxu0 0
        %2364 = vmatpush1.bf16.msra.mxu0 %v2347
        %2365 = vmatprep.subr.bf16.mxu0 0
        %2366 = vmatpush1.bf16.msra.mxu0 %v2348
        %2367 = vmatprep.subr.bf16.mxu0 0
        %2368 = vmatpush1.bf16.msra.mxu0 %v2349
        %2369 = vmatprep.subr.bf16.mxu0 0
        %2370 = vmatpush1.bf16.msra.mxu0 %v2350
        %2371 = vmatprep.subr.bf16.mxu0 0
        %2372 = vmatpush1.bf16.msra.mxu0 %v2351
        %2373 = vmatprep.subr.bf16.mxu0 0
        %2374 = vmatpush1.bf16.msra.mxu0 %v2352
        %2375 = vmatprep.subr.bf16.mxu0 0
        %2376 = vmatpush1.bf16.msra.mxu0 %v2353
        %2377 = vmatprep.subr.bf16.mxu0 0
        %2378 = vmatpush1.bf16.msra.mxu0 %v2354
        %2379 = vmatprep.subr.bf16.mxu0 0
        %2380 = vmatpush1.bf16.msra.mxu0 0
        %2381 = vmatprep.subr.bf16.mxu0 0
        %2382 = vmatpush1.bf16.msra.mxu0 0
        %2383 = vmatprep.subr.bf16.mxu0 0
        %2384 = vmatpush1.bf16.msra.mxu0 0
        %2385 = vmatprep.subr.bf16.mxu0 0
        %2386 = vmatpush1.bf16.msra.mxu0 0
        %2387 = vmatprep.subr.bf16.mxu0 0
        %2388 = vmatpush1.bf16.msra.mxu0 0
        %2389 = vmatprep.subr.bf16.mxu0 0
        %2390 = vmatpush1.bf16.msra.mxu0 0
        %2391 = vmatprep.subr.bf16.mxu0 0
        %2392 = vmatpush1.bf16.msra.mxu0 0
        %2393 = vmatprep.subr.bf16.mxu0 0
        %2394 = vmatpush1.bf16.msra.mxu0 0
        %2395 = vmatprep.mubr.bf16.mxu0 0
        %2396 = vmatmul.mubr.bf16.gmra.mrb[0].mxu0 %v2295
        %v2397 = vpop.f32.mrb[0].mxu0
        %v2398 = vadd.f32 0.0, %v2397
        %v2399 = vpop.f32.mrb[0].mxu0
        %v2400 = vpop.f32.mrb[0].mxu0
        %v2401 = vadd.f32 0.0, %v2400
        %v2402 = vpop.f32.mrb[0].mxu0
        %2403 = vmatprep.mubr.bf16.mxu0 0
        %2404 = vmatmul.mubr.bf16.gmra.mrb[0].mxu0 %v2296
        %v2405 = vpop.f32.mrb[0].mxu0
        %v2406 = vadd.f32 0.0, %v2405
        %v2407 = vpop.f32.mrb[0].mxu0
        %v2408 = vpop.f32.mrb[0].mxu0
        %v2409 = vadd.f32 0.0, %v2408
        %v2410 = vpop.f32.mrb[0].mxu0
        %2411 = vmatprep.mubr.bf16.mxu0 0
        %2412 = vmatmul.mubr.bf16.gmra.mrb[0].mxu0 %v2297
        %v2413 = vpop.f32.mrb[0].mxu0
        %v2414 = vadd.f32 0.0, %v2413
        %v2415 = vpop.f32.mrb[0].mxu0
        %v2416 = vpop.f32.mrb[0].mxu0
        %v2417 = vadd.f32 0.0, %v2416
        %v2418 = vpop.f32.mrb[0].mxu0
        %2419 = vmatprep.mubr.bf16.mxu0 0
        %2420 = vmatmul.mubr.bf16.gmra.mrb[0].mxu0 %v2298
        %v2421 = vpop.f32.mrb[0].mxu0
        %v2422 = vadd.f32 0.0, %v2421
        %v2423 = vpop.f32.mrb[0].mxu0
        %v2424 = vpop.f32.mrb[0].mxu0
        %v2425 = vadd.f32 0.0, %v2424
        %v2426 = vpop.f32.mrb[0].mxu0
        %2427 = vmatprep.mubr.bf16.mxu0 0
        %2428 = vmatmul.mubr.bf16.gmra.mrb[0].mxu0 %v2299
        %v2429 = vpop.f32.mrb[0].mxu0
        %v2430 = vadd.f32 0.0, %v2429
        %v2431 = vpop.f32.mrb[0].mxu0
        %v2432 = vpop.f32.mrb[0].mxu0
        %v2433 = vadd.f32 0.0, %v2432
        %v2434 = vpop.f32.mrb[0].mxu0
        %2435 = vmatprep.mubr.bf16.mxu0 0
        %2436 = vmatmul.mubr.bf16.gmra.mrb[0].mxu0 %v2300
        %v2437 = vpop.f32.mrb[0].mxu0
        %v2438 = vadd.f32 0.0, %v2437
        %v2439 = vpop.f32.mrb[0].mxu0
        %v2440 = vpop.f32.mrb[0].mxu0
        %v2441 = vadd.f32 0.0, %v2440
        %v2442 = vpop.f32.mrb[0].mxu0
        %2443 = vmatprep.mubr.bf16.mxu0 0
        %2444 = vmatmul.mubr.bf16.gmra.mrb[0].mxu0 %v2301
        %v2445 = vpop.f32.mrb[0].mxu0
        %v2446 = vadd.f32 0.0, %v2445
        %v2447 = vpop.f32.mrb[0].mxu0
        %v2448 = vpop.f32.mrb[0].mxu0
        %v2449 = vadd.f32 0.0, %v2448
        %v2450 = vpop.f32.mrb[0].mxu0
        %2451 = vmatprep.mubr.bf16.mxu0 0
        %2452 = vmatmul.mubr.bf16.gmra.mrb[0].mxu0 %v2302
        %v2453 = vpop.f32.mrb[0].mxu0
        %v2454 = vadd.f32 0.0, %v2453
        %v2455 = vpop.f32.mrb[0].mxu0
        %v2456 = vpop.f32.mrb[0].mxu0
        %v2457 = vadd.f32 0.0, %v2456
        %v2458 = vpop.f32.mrb[0].mxu0
        %2459 = vmatprep.mubr.bf16.mxu0 0
        %2460 = vmatmul.mubr.bf16.gmra.mrb[0].mxu0 %v2303
        %v2461 = vpop.f32.mrb[0].mxu0
        %v2462 = vadd.f32 0.0, %v2461
        %v2463 = vpop.f32.mrb[0].mxu0
        %v2464 = vpop.f32.mrb[0].mxu0
        %v2465 = vadd.f32 0.0, %v2464
        %v2466 = vpop.f32.mrb[0].mxu0
        %2467 = vmatprep.mubr.bf16.mxu0 0
        %2468 = vmatmul.mubr.bf16.gmra.mrb[0].mxu0 %v2304
        %v2469 = vpop.f32.mrb[0].mxu0
        %v2470 = vadd.f32 0.0, %v2469
        %v2471 = vpop.f32.mrb[0].mxu0
        %v2472 = vpop.f32.mrb[0].mxu0
        %v2473 = vadd.f32 0.0, %v2472
        %v2474 = vpop.f32.mrb[0].mxu0
        %2475 = vdwg.mxu0
        %v2476 = vadd.f32 %v2128, %v2398
        %v2477 = vadd.f32 %v2129, %v2401
        %v2478 = vadd.f32 %v2130, %v2406
        %v2479 = vadd.f32 %v2131, %v2409
        %v2480 = vadd.f32 %v2132, %v2414
        %v2481 = vadd.f32 %v2133, %v2417
        %v2482 = vadd.f32 %v2134, %v2422
        %v2483 = vadd.f32 %v2135, %v2425
        %v2484 = vadd.f32 %v2136, %v2430
        %v2485 = vadd.f32 %v2137, %v2433
        %v2486 = vadd.f32 %v2138, %v2438
        %v2487 = vadd.f32 %v2139, %v2441
        %v2488 = vadd.f32 %v2140, %v2446
        %v2489 = vadd.f32 %v2141, %v2449
        %v2490 = vadd.f32 %v2142, %v2454
        %v2491 = vadd.f32 %v2143, %v2457
        %v2492 = vadd.f32 %v2144, %v2462
        %v2493 = vadd.f32 %v2145, %v2465
        %v2494 = vadd.f32 %v2146, %v2470
        %v2495 = vadd.f32 %v2147, %v2473
        %s2496 = scalar_lea.vmem %s255, 24 [#allocation3]
        %v2497 = vld [vmem:[%s2496] sm:$0xf]
        %v2498 = vld [vmem:[%s2496 + $0x4] sm:$0xf]
        %v2499 = vld [vmem:[%s2496 + $0xc] sm:$0xf]
        %v2500 = vld [vmem:[%s2496 + $0x10] sm:$0xf]
        %v2501 = vld [vmem:[%s2496 + $0x18] sm:$0xf]
        %v2502 = vld [vmem:[%s2496 + $0x1c] sm:$0xf]
        %v2503 = vld [vmem:[%s2496 + $0x24] sm:$0xf]
        %v2504 = vld [vmem:[%s2496 + $0x28] sm:$0xf]
        %v2505 = vld [vmem:[%s2496 + $0x30] sm:$0xf]
        %v2506 = vld [vmem:[%s2496 + $0x34] sm:$0xf]
        %v2507 = vld [vmem:[%s2496 + $0x3c] sm:$0xf]
        %v2508 = vld [vmem:[%s2496 + $0x40] sm:$0xf]
        %v2509 = vld [vmem:[%s2496 + $0x48] sm:$0xf]
        %v2510 = vld [vmem:[%s2496 + $0x4c] sm:$0xf]
        %v2511 = vld [vmem:[%s2496 + $0x54] sm:$0xf]
        %v2512 = vld [vmem:[%s2496 + $0x58] sm:$0xf]
        %v2513 = vld [vmem:[%s2496 + $0x60] sm:$0xf]
        %v2514 = vld [vmem:[%s2496 + $0x64] sm:$0xf]
        %v2515 = vld [vmem:[%s2496 + $0x6c] sm:$0xf]
        %v2516 = vld [vmem:[%s2496 + $0x70] sm:$0xf]
        %s2517 = scalar_lea.vmem [#allocation6], 384
        %v2518 = vld [vmem:[%s2517] sm:$0xf]
        %v2519 = vld [vmem:[%s2517 + $0x4] sm:$0xf]
        %v2520 = vld [vmem:[%s2517 + $0x8] sm:$0xf]
        %v2521 = vld [vmem:[%s2517 + $0xc] sm:$0xf]
        %v2522 = vld [vmem:[%s2517 + $0x10] sm:$0xf]
        %v2523 = vld [vmem:[%s2517 + $0x14] sm:$0xf]
        %v2524 = vld [vmem:[%s2517 + $0x18] sm:$0xf]
        %v2525 = vld [vmem:[%s2517 + $0x1c] sm:$0xf]
        %v2526 = vld [vmem:[%s2517 + $0x20] sm:$0xf]
        %v2527 = vld [vmem:[%s2517 + $0x24] sm:$0xf]
        %v2528 = vld [vmem:[%s2517 + $0x28] sm:$0xf]
        %v2529 = vld [vmem:[%s2517 + $0x2c] sm:$0xf]
        %v2530 = vld [vmem:[%s2517 + $0x30] sm:$0xf]
        %v2531 = vld [vmem:[%s2517 + $0x34] sm:$0xf]
        %v2532 = vld [vmem:[%s2517 + $0x38] sm:$0xf]
        %v2533 = vld [vmem:[%s2517 + $0x3c] sm:$0xf]
        %v2554 = vunpack.c.l.b16 %v2497
        %v2555 = vunpack.c.l.b16 %v2498
        %v2556 = vunpack.c.l.b16 %v2499
        %v2557 = vunpack.c.l.b16 %v2500
        %v2558 = vunpack.c.l.b16 %v2501
        %v2559 = vunpack.c.l.b16 %v2502
        %v2560 = vunpack.c.l.b16 %v2503
        %v2561 = vunpack.c.l.b16 %v2504
        %v2562 = vunpack.c.l.b16 %v2505
        %v2563 = vunpack.c.l.b16 %v2506
        %v2564 = vunpack.c.l.b16 %v2507
        %v2565 = vunpack.c.l.b16 %v2508
        %v2566 = vunpack.c.l.b16 %v2509
        %v2567 = vunpack.c.l.b16 %v2510
        %v2568 = vunpack.c.l.b16 %v2511
        %v2569 = vunpack.c.l.b16 %v2512
        %v2570 = vunpack.c.l.b16 %v2513
        %v2571 = vunpack.c.l.b16 %v2514
        %v2572 = vunpack.c.l.b16 %v2515
        %v2573 = vunpack.c.l.b16 %v2516
        %v2574 = vpack.c.b16 %v2555, %v2554
        %v2575 = vpack.c.b16 %v2557, %v2556
        %v2576 = vpack.c.b16 %v2559, %v2558
        %v2577 = vpack.c.b16 %v2561, %v2560
        %v2578 = vpack.c.b16 %v2563, %v2562
        %v2579 = vpack.c.b16 %v2565, %v2564
        %v2580 = vpack.c.b16 %v2567, %v2566
        %v2581 = vpack.c.b16 %v2569, %v2568
        %v2582 = vpack.c.b16 %v2571, %v2570
        %v2583 = vpack.c.b16 %v2573, %v2572
        %v2610 = vunpack.c.l.b16 %v2518
        %v2611 = vunpack.c.l.b16 %v2519
        %v2612 = vunpack.c.l.b16 %v2520
        %v2613 = vunpack.c.l.b16 %v2521
        %v2614 = vunpack.c.l.b16 %v2522
        %v2615 = vunpack.c.l.b16 %v2523
        %v2616 = vunpack.c.l.b16 %v2524
        %v2617 = vunpack.c.l.b16 %v2525
        %v2618 = vunpack.c.l.b16 %v2526
        %v2619 = vunpack.c.l.b16 %v2527
        %v2620 = vunpack.c.l.b16 %v2528
        %v2621 = vunpack.c.l.b16 %v2529
        %v2622 = vunpack.c.l.b16 %v2530
        %v2623 = vunpack.c.l.b16 %v2531
        %v2624 = vunpack.c.l.b16 %v2532
        %v2625 = vunpack.c.l.b16 %v2533
        %v2626 = vpack.c.b16 %v2611, %v2610
        %v2627 = vpack.c.b16 %v2613, %v2612
        %v2628 = vpack.c.b16 %v2615, %v2614
        %v2629 = vpack.c.b16 %v2617, %v2616
        %v2630 = vpack.c.b16 %v2619, %v2618
        %v2631 = vpack.c.b16 %v2621, %v2620
        %v2632 = vpack.c.b16 %v2623, %v2622
        %v2633 = vpack.c.b16 %v2625, %v2624
        %2642 = vmatprep.subr.bf16.mxu0 0
        %2643 = vmatpush1.bf16.msra.mxu0 %v2626
        %2644 = vmatprep.subr.bf16.mxu0 0
        %2645 = vmatpush1.bf16.msra.mxu0 %v2627
        %2646 = vmatprep.subr.bf16.mxu0 0
        %2647 = vmatpush1.bf16.msra.mxu0 %v2628
        %2648 = vmatprep.subr.bf16.mxu0 0
        %2649 = vmatpush1.bf16.msra.mxu0 %v2629
        %2650 = vmatprep.subr.bf16.mxu0 0
        %2651 = vmatpush1.bf16.msra.mxu0 %v2630
        %2652 = vmatprep.subr.bf16.mxu0 0
        %2653 = vmatpush1.bf16.msra.mxu0 %v2631
        %2654 = vmatprep.subr.bf16.mxu0 0
        %2655 = vmatpush1.bf16.msra.mxu0 %v2632
        %2656 = vmatprep.subr.bf16.mxu0 0
        %2657 = vmatpush1.bf16.msra.mxu0 %v2633
        %2658 = vmatprep.subr.bf16.mxu0 0
        %2659 = vmatpush1.bf16.msra.mxu0 0
        %2660 = vmatprep.subr.bf16.mxu0 0
        %2661 = vmatpush1.bf16.msra.mxu0 0
        %2662 = vmatprep.subr.bf16.mxu0 0
        %2663 = vmatpush1.bf16.msra.mxu0 0
        %2664 = vmatprep.subr.bf16.mxu0 0
        %2665 = vmatpush1.bf16.msra.mxu0 0
        %2666 = vmatprep.subr.bf16.mxu0 0
        %2667 = vmatpush1.bf16.msra.mxu0 0
        %2668 = vmatprep.subr.bf16.mxu0 0
        %2669 = vmatpush1.bf16.msra.mxu0 0
        %2670 = vmatprep.subr.bf16.mxu0 0
        %2671 = vmatpush1.bf16.msra.mxu0 0
        %2672 = vmatprep.subr.bf16.mxu0 0
        %2673 = vmatpush1.bf16.msra.mxu0 0
        %2674 = vmatprep.mubr.bf16.mxu0 0
        %2675 = vmatmul.mubr.bf16.gmra.mrb[0].mxu0 %v2574
        %v2676 = vpop.f32.mrb[0].mxu0
        %v2677 = vadd.f32 0.0, %v2676
        %v2678 = vpop.f32.mrb[0].mxu0
        %v2679 = vpop.f32.mrb[0].mxu0
        %v2680 = vadd.f32 0.0, %v2679
        %v2681 = vpop.f32.mrb[0].mxu0
        %2682 = vmatprep.mubr.bf16.mxu0 0
        %2683 = vmatmul.mubr.bf16.gmra.mrb[0].mxu0 %v2575
        %v2684 = vpop.f32.mrb[0].mxu0
        %v2685 = vadd.f32 0.0, %v2684
        %v2686 = vpop.f32.mrb[0].mxu0
        %v2687 = vpop.f32.mrb[0].mxu0
        %v2688 = vadd.f32 0.0, %v2687
        %v2689 = vpop.f32.mrb[0].mxu0
        %2690 = vmatprep.mubr.bf16.mxu0 0
        %2691 = vmatmul.mubr.bf16.gmra.mrb[0].mxu0 %v2576
        %v2692 = vpop.f32.mrb[0].mxu0
        %v2693 = vadd.f32 0.0, %v2692
        %v2694 = vpop.f32.mrb[0].mxu0
        %v2695 = vpop.f32.mrb[0].mxu0
        %v2696 = vadd.f32 0.0, %v2695
        %v2697 = vpop.f32.mrb[0].mxu0
        %2698 = vmatprep.mubr.bf16.mxu0 0
        %2699 = vmatmul.mubr.bf16.gmra.mrb[0].mxu0 %v2577
        %v2700 = vpop.f32.mrb[0].mxu0
        %v2701 = vadd.f32 0.0, %v2700
        %v2702 = vpop.f32.mrb[0].mxu0
        %v2703 = vpop.f32.mrb[0].mxu0
        %v2704 = vadd.f32 0.0, %v2703
        %v2705 = vpop.f32.mrb[0].mxu0
        %2706 = vmatprep.mubr.bf16.mxu0 0
        %2707 = vmatmul.mubr.bf16.gmra.mrb[0].mxu0 %v2578
        %v2708 = vpop.f32.mrb[0].mxu0
        %v2709 = vadd.f32 0.0, %v2708
        %v2710 = vpop.f32.mrb[0].mxu0
        %v2711 = vpop.f32.mrb[0].mxu0
        %v2712 = vadd.f32 0.0, %v2711
        %v2713 = vpop.f32.mrb[0].mxu0
        %2714 = vmatprep.mubr.bf16.mxu0 0
        %2715 = vmatmul.mubr.bf16.gmra.mrb[0].mxu0 %v2579
        %v2716 = vpop.f32.mrb[0].mxu0
        %v2717 = vadd.f32 0.0, %v2716
        %v2718 = vpop.f32.mrb[0].mxu0
        %v2719 = vpop.f32.mrb[0].mxu0
        %v2720 = vadd.f32 0.0, %v2719
        %v2721 = vpop.f32.mrb[0].mxu0
        %2722 = vmatprep.mubr.bf16.mxu0 0
        %2723 = vmatmul.mubr.bf16.gmra.mrb[0].mxu0 %v2580
        %v2724 = vpop.f32.mrb[0].mxu0
        %v2725 = vadd.f32 0.0, %v2724
        %v2726 = vpop.f32.mrb[0].mxu0
        %v2727 = vpop.f32.mrb[0].mxu0
        %v2728 = vadd.f32 0.0, %v2727
        %v2729 = vpop.f32.mrb[0].mxu0
        %2730 = vmatprep.mubr.bf16.mxu0 0
        %2731 = vmatmul.mubr.bf16.gmra.mrb[0].mxu0 %v2581
        %v2732 = vpop.f32.mrb[0].mxu0
        %v2733 = vadd.f32 0.0, %v2732
        %v2734 = vpop.f32.mrb[0].mxu0
        %v2735 = vpop.f32.mrb[0].mxu0
        %v2736 = vadd.f32 0.0, %v2735
        %v2737 = vpop.f32.mrb[0].mxu0
        %2738 = vmatprep.mubr.bf16.mxu0 0
        %2739 = vmatmul.mubr.bf16.gmra.mrb[0].mxu0 %v2582
        %v2740 = vpop.f32.mrb[0].mxu0
        %v2741 = vadd.f32 0.0, %v2740
        %v2742 = vpop.f32.mrb[0].mxu0
        %v2743 = vpop.f32.mrb[0].mxu0
        %v2744 = vadd.f32 0.0, %v2743
        %v2745 = vpop.f32.mrb[0].mxu0
        %2746 = vmatprep.mubr.bf16.mxu0 0
        %2747 = vmatmul.mubr.bf16.gmra.mrb[0].mxu0 %v2583
        %v2748 = vpop.f32.mrb[0].mxu0
        %v2749 = vadd.f32 0.0, %v2748
        %v2750 = vpop.f32.mrb[0].mxu0
        %v2751 = vpop.f32.mrb[0].mxu0
        %v2752 = vadd.f32 0.0, %v2751
        %v2753 = vpop.f32.mrb[0].mxu0
        %2754 = vdwg.mxu0
        %v2755 = vadd.f32 %v2476, %v2677
        %v2756 = vadd.f32 %v2477, %v2680
        %v2757 = vadd.f32 %v2478, %v2685
        %v2758 = vadd.f32 %v2479, %v2688
        %v2759 = vadd.f32 %v2480, %v2693
        %v2760 = vadd.f32 %v2481, %v2696
        %v2761 = vadd.f32 %v2482, %v2701
        %v2762 = vadd.f32 %v2483, %v2704
        %v2763 = vadd.f32 %v2484, %v2709
        %v2764 = vadd.f32 %v2485, %v2712
        %v2765 = vadd.f32 %v2486, %v2717
        %v2766 = vadd.f32 %v2487, %v2720
        %v2767 = vadd.f32 %v2488, %v2725
        %v2768 = vadd.f32 %v2489, %v2728
        %v2769 = vadd.f32 %v2490, %v2733
        %v2770 = vadd.f32 %v2491, %v2736
        %v2771 = vadd.f32 %v2492, %v2741
        %v2772 = vadd.f32 %v2493, %v2744
        %v2773 = vadd.f32 %v2494, %v2749
        %v2774 = vadd.f32 %v2495, %v2752
        %v2775 = vld [vmem:[%s2496] sm:$0xf]
        %v2776 = vld [vmem:[%s2496 + $0x4] sm:$0xf]
        %v2777 = vld [vmem:[%s2496 + $0x8] sm:$0x1]
        %v2778 = vld [vmem:[%s2496 + $0xc] sm:$0xf]
        %v2779 = vld [vmem:[%s2496 + $0x10] sm:$0xf]
        %v2780 = vld [vmem:[%s2496 + $0x14] sm:$0x1]
        %v2781 = vld [vmem:[%s2496 + $0x18] sm:$0xf]
        %v2782 = vld [vmem:[%s2496 + $0x1c] sm:$0xf]
        %v2783 = vld [vmem:[%s2496 + $0x20] sm:$0x1]
        %v2784 = vld [vmem:[%s2496 + $0x24] sm:$0xf]
        %v2785 = vld [vmem:[%s2496 + $0x28] sm:$0xf]
        %v2786 = vld [vmem:[%s2496 + $0x2c] sm:$0x1]
        %v2787 = vld [vmem:[%s2496 + $0x30] sm:$0xf]
        %v2788 = vld [vmem:[%s2496 + $0x34] sm:$0xf]
        %v2789 = vld [vmem:[%s2496 + $0x38] sm:$0x1]
        %v2790 = vld [vmem:[%s2496 + $0x3c] sm:$0xf]
        %v2791 = vld [vmem:[%s2496 + $0x40] sm:$0xf]
        %v2792 = vld [vmem:[%s2496 + $0x44] sm:$0x1]
        %v2793 = vld [vmem:[%s2496 + $0x48] sm:$0xf]
        %v2794 = vld [vmem:[%s2496 + $0x4c] sm:$0xf]
        %v2795 = vld [vmem:[%s2496 + $0x50] sm:$0x1]
        %v2796 = vld [vmem:[%s2496 + $0x54] sm:$0xf]
        %v2797 = vld [vmem:[%s2496 + $0x58] sm:$0xf]
        %v2798 = vld [vmem:[%s2496 + $0x5c] sm:$0x1]
        %v2799 = vld [vmem:[%s2496 + $0x60] sm:$0xf]
        %v2800 = vld [vmem:[%s2496 + $0x64] sm:$0xf]
        %v2801 = vld [vmem:[%s2496 + $0x68] sm:$0x1]
        %v2802 = vld [vmem:[%s2496 + $0x6c] sm:$0xf]
        %v2803 = vld [vmem:[%s2496 + $0x70] sm:$0xf]
        %v2804 = vld [vmem:[%s2496 + $0x74] sm:$0x1]
        %v2806 = vshrl.u32 %v2775, 16
        %v2808 = vrot.slane %v2806, 4
        %v2809 = vshll.u32 %v2775, 16
        %v2811 = vrot.slane %v2809, 5
        %v2812 = vor.u32 %v2808, %v2811
        %v2813 = vrot.slane %v2812, 4
        %v2815 = vshll.u32 %v2776, 16
        %v2817 = vrot.slane %v2815, 5
        %v2818 = vsel %vm340, %v2813, %v2817
        %v2819 = vshrl.u32 %v2776, 16
        %v2821 = vrot.slane %v2819, 4
        %v2822 = vor.u32 %v2821, %v2817
        %v2823 = vrot.slane %v2822, 4
        %v2825 = vshll.u32 %v2777, 16
        %v2827 = vrot.slane %v2825, 5
        %v2828 = vsel %vm340, %v2823, %v2827
        %v2830 = vshrl.u32 %v2778, 16
        %v2832 = vrot.slane %v2830, 4
        %v2833 = vshll.u32 %v2778, 16
        %v2835 = vrot.slane %v2833, 5
        %v2836 = vor.u32 %v2832, %v2835
        %v2837 = vrot.slane %v2836, 4
        %v2839 = vshll.u32 %v2779, 16
        %v2841 = vrot.slane %v2839, 5
        %v2842 = vsel %vm340, %v2837, %v2841
        %v2843 = vshrl.u32 %v2779, 16
        %v2845 = vrot.slane %v2843, 4
        %v2846 = vor.u32 %v2845, %v2841
        %v2847 = vrot.slane %v2846, 4
        %v2849 = vshll.u32 %v2780, 16
        %v2851 = vrot.slane %v2849, 5
        %v2852 = vsel %vm340, %v2847, %v2851
        %v2854 = vshrl.u32 %v2781, 16
        %v2856 = vrot.slane %v2854, 4
        %v2857 = vshll.u32 %v2781, 16
        %v2859 = vrot.slane %v2857, 5
        %v2860 = vor.u32 %v2856, %v2859
        %v2861 = vrot.slane %v2860, 4
        %v2863 = vshll.u32 %v2782, 16
        %v2865 = vrot.slane %v2863, 5
        %v2866 = vsel %vm340, %v2861, %v2865
        %v2867 = vshrl.u32 %v2782, 16
        %v2869 = vrot.slane %v2867, 4
        %v2870 = vor.u32 %v2869, %v2865
        %v2871 = vrot.slane %v2870, 4
        %v2873 = vshll.u32 %v2783, 16
        %v2875 = vrot.slane %v2873, 5
        %v2876 = vsel %vm340, %v2871, %v2875
        %v2878 = vshrl.u32 %v2784, 16
        %v2880 = vrot.slane %v2878, 4
        %v2881 = vshll.u32 %v2784, 16
        %v2883 = vrot.slane %v2881, 5
        %v2884 = vor.u32 %v2880, %v2883
        %v2885 = vrot.slane %v2884, 4
        %v2887 = vshll.u32 %v2785, 16
        %v2889 = vrot.slane %v2887, 5
        %v2890 = vsel %vm340, %v2885, %v2889
        %v2891 = vshrl.u32 %v2785, 16
        %v2893 = vrot.slane %v2891, 4
        %v2894 = vor.u32 %v2893, %v2889
        %v2895 = vrot.slane %v2894, 4
        %v2897 = vshll.u32 %v2786, 16
        %v2899 = vrot.slane %v2897, 5
        %v2900 = vsel %vm340, %v2895, %v2899
        %v2902 = vshrl.u32 %v2787, 16
        %v2904 = vrot.slane %v2902, 4
        %v2905 = vshll.u32 %v2787, 16
        %v2907 = vrot.slane %v2905, 5
        %v2908 = vor.u32 %v2904, %v2907
        %v2909 = vrot.slane %v2908, 4
        %v2911 = vshll.u32 %v2788, 16
        %v2913 = vrot.slane %v2911, 5
        %v2914 = vsel %vm340, %v2909, %v2913
        %v2915 = vshrl.u32 %v2788, 16
        %v2917 = vrot.slane %v2915, 4
        %v2918 = vor.u32 %v2917, %v2913
        %v2919 = vrot.slane %v2918, 4
        %v2921 = vshll.u32 %v2789, 16
        %v2923 = vrot.slane %v2921, 5
        %v2924 = vsel %vm340, %v2919, %v2923
        %v2926 = vshrl.u32 %v2790, 16
        %v2928 = vrot.slane %v2926, 4
        %v2929 = vshll.u32 %v2790, 16
        %v2931 = vrot.slane %v2929, 5
        %v2932 = vor.u32 %v2928, %v2931
        %v2933 = vrot.slane %v2932, 4
        %v2935 = vshll.u32 %v2791, 16
        %v2937 = vrot.slane %v2935, 5
        %v2938 = vsel %vm340, %v2933, %v2937
        %v2939 = vshrl.u32 %v2791, 16
        %v2941 = vrot.slane %v2939, 4
        %v2942 = vor.u32 %v2941, %v2937
        %v2943 = vrot.slane %v2942, 4
        %v2945 = vshll.u32 %v2792, 16
        %v2947 = vrot.slane %v2945, 5
        %v2948 = vsel %vm340, %v2943, %v2947
        %v2950 = vshrl.u32 %v2793, 16
        %v2952 = vrot.slane %v2950, 4
        %v2953 = vshll.u32 %v2793, 16
        %v2955 = vrot.slane %v2953, 5
        %v2956 = vor.u32 %v2952, %v2955
        %v2957 = vrot.slane %v2956, 4
        %v2959 = vshll.u32 %v2794, 16
        %v2961 = vrot.slane %v2959, 5
        %v2962 = vsel %vm340, %v2957, %v2961
        %v2963 = vshrl.u32 %v2794, 16
        %v2965 = vrot.slane %v2963, 4
        %v2966 = vor.u32 %v2965, %v2961
        %v2967 = vrot.slane %v2966, 4
        %v2969 = vshll.u32 %v2795, 16
        %v2971 = vrot.slane %v2969, 5
        %v2972 = vsel %vm340, %v2967, %v2971
        %v2974 = vshrl.u32 %v2796, 16
        %v2976 = vrot.slane %v2974, 4
        %v2977 = vshll.u32 %v2796, 16
        %v2979 = vrot.slane %v2977, 5
        %v2980 = vor.u32 %v2976, %v2979
        %v2981 = vrot.slane %v2980, 4
        %v2983 = vshll.u32 %v2797, 16
        %v2985 = vrot.slane %v2983, 5
        %v2986 = vsel %vm340, %v2981, %v2985
        %v2987 = vshrl.u32 %v2797, 16
        %v2989 = vrot.slane %v2987, 4
        %v2990 = vor.u32 %v2989, %v2985
        %v2991 = vrot.slane %v2990, 4
        %v2993 = vshll.u32 %v2798, 16
        %v2995 = vrot.slane %v2993, 5
        %v2996 = vsel %vm340, %v2991, %v2995
        %v2998 = vshrl.u32 %v2799, 16
        %v3000 = vrot.slane %v2998, 4
        %v3001 = vshll.u32 %v2799, 16
        %v3003 = vrot.slane %v3001, 5
        %v3004 = vor.u32 %v3000, %v3003
        %v3005 = vrot.slane %v3004, 4
        %v3007 = vshll.u32 %v2800, 16
        %v3009 = vrot.slane %v3007, 5
        %v3010 = vsel %vm340, %v3005, %v3009
        %v3011 = vshrl.u32 %v2800, 16
        %v3013 = vrot.slane %v3011, 4
        %v3014 = vor.u32 %v3013, %v3009
        %v3015 = vrot.slane %v3014, 4
        %v3017 = vshll.u32 %v2801, 16
        %v3019 = vrot.slane %v3017, 5
        %v3020 = vsel %vm340, %v3015, %v3019
        %v3022 = vshrl.u32 %v2802, 16
        %v3024 = vrot.slane %v3022, 4
        %v3025 = vshll.u32 %v2802, 16
        %v3027 = vrot.slane %v3025, 5
        %v3028 = vor.u32 %v3024, %v3027
        %v3029 = vrot.slane %v3028, 4
        %v3031 = vshll.u32 %v2803, 16
        %v3033 = vrot.slane %v3031, 5
        %v3034 = vsel %vm340, %v3029, %v3033
        %v3035 = vshrl.u32 %v2803, 16
        %v3037 = vrot.slane %v3035, 4
        %v3038 = vor.u32 %v3037, %v3033
        %v3039 = vrot.slane %v3038, 4
        %v3041 = vshll.u32 %v2804, 16
        %v3043 = vrot.slane %v3041, 5
        %v3044 = vsel %vm340, %v3039, %v3043
        %s3045 = scalar_lea.vmem [#allocation6], 448
        %v3046 = vld [vmem:[%s3045] sm:$0xf]
        %v3047 = vld [vmem:[%s3045 + $0x4] sm:$0xf]
        %v3048 = vld [vmem:[%s3045 + $0x8] sm:$0xf]
        %v3049 = vld [vmem:[%s3045 + $0xc] sm:$0xf]
        %v3050 = vld [vmem:[%s3045 + $0x10] sm:$0xf]
        %v3051 = vld [vmem:[%s3045 + $0x14] sm:$0xf]
        %v3052 = vld [vmem:[%s3045 + $0x18] sm:$0xf]
        %v3053 = vld [vmem:[%s3045 + $0x1c] sm:$0xf]
        %v3054 = vld [vmem:[%s3045 + $0x20] sm:$0xf]
        %v3055 = vld [vmem:[%s3045 + $0x24] sm:$0xf]
        %v3056 = vld [vmem:[%s3045 + $0x28] sm:$0xf]
        %v3057 = vld [vmem:[%s3045 + $0x2c] sm:$0xf]
        %v3058 = vld [vmem:[%s3045 + $0x30] sm:$0xf]
        %v3059 = vld [vmem:[%s3045 + $0x34] sm:$0xf]
        %v3060 = vld [vmem:[%s3045 + $0x38] sm:$0xf]
        %v3061 = vld [vmem:[%s3045 + $0x3c] sm:$0xf]
        %v3062 = vunpack.c.l.b16 %v2818
        %v3063 = vunpack.c.l.b16 %v2828
        %v3064 = vunpack.c.l.b16 %v2842
        %v3065 = vunpack.c.l.b16 %v2852
        %v3066 = vunpack.c.l.b16 %v2866
        %v3067 = vunpack.c.l.b16 %v2876
        %v3068 = vunpack.c.l.b16 %v2890
        %v3069 = vunpack.c.l.b16 %v2900
        %v3070 = vunpack.c.l.b16 %v2914
        %v3071 = vunpack.c.l.b16 %v2924
        %v3072 = vunpack.c.l.b16 %v2938
        %v3073 = vunpack.c.l.b16 %v2948
        %v3074 = vunpack.c.l.b16 %v2962
        %v3075 = vunpack.c.l.b16 %v2972
        %v3076 = vunpack.c.l.b16 %v2986
        %v3077 = vunpack.c.l.b16 %v2996
        %v3078 = vunpack.c.l.b16 %v3010
        %v3079 = vunpack.c.l.b16 %v3020
        %v3080 = vunpack.c.l.b16 %v3034
        %v3081 = vunpack.c.l.b16 %v3044
        %v3082 = vpack.c.b16 %v3063, %v3062
        %v3083 = vpack.c.b16 %v3065, %v3064
        %v3084 = vpack.c.b16 %v3067, %v3066
        %v3085 = vpack.c.b16 %v3069, %v3068
        %v3086 = vpack.c.b16 %v3071, %v3070
        %v3087 = vpack.c.b16 %v3073, %v3072
        %v3088 = vpack.c.b16 %v3075, %v3074
        %v3089 = vpack.c.b16 %v3077, %v3076
        %v3090 = vpack.c.b16 %v3079, %v3078
        %v3091 = vpack.c.b16 %v3081, %v3080
        %v3118 = vunpack.c.l.b16 %v3046
        %v3119 = vunpack.c.l.b16 %v3047
        %v3120 = vunpack.c.l.b16 %v3048
        %v3121 = vunpack.c.l.b16 %v3049
        %v3122 = vunpack.c.l.b16 %v3050
        %v3123 = vunpack.c.l.b16 %v3051
        %v3124 = vunpack.c.l.b16 %v3052
        %v3125 = vunpack.c.l.b16 %v3053
        %v3126 = vunpack.c.l.b16 %v3054
        %v3127 = vunpack.c.l.b16 %v3055
        %v3128 = vunpack.c.l.b16 %v3056
        %v3129 = vunpack.c.l.b16 %v3057
        %v3130 = vunpack.c.l.b16 %v3058
        %v3131 = vunpack.c.l.b16 %v3059
        %v3132 = vunpack.c.l.b16 %v3060
        %v3133 = vunpack.c.l.b16 %v3061
        %v3134 = vpack.c.b16 %v3119, %v3118
        %v3135 = vpack.c.b16 %v3121, %v3120
        %v3136 = vpack.c.b16 %v3123, %v3122
        %v3137 = vpack.c.b16 %v3125, %v3124
        %v3138 = vpack.c.b16 %v3127, %v3126
        %v3139 = vpack.c.b16 %v3129, %v3128
        %v3140 = vpack.c.b16 %v3131, %v3130
        %v3141 = vpack.c.b16 %v3133, %v3132
        %3150 = vmatprep.subr.bf16.mxu0 0
        %3151 = vmatpush1.bf16.msra.mxu0 %v3134
        %3152 = vmatprep.subr.bf16.mxu0 0
        %3153 = vmatpush1.bf16.msra.mxu0 %v3135
        %3154 = vmatprep.subr.bf16.mxu0 0
        %3155 = vmatpush1.bf16.msra.mxu0 %v3136
        %3156 = vmatprep.subr.bf16.mxu0 0
        %3157 = vmatpush1.bf16.msra.mxu0 %v3137
        %3158 = vmatprep.subr.bf16.mxu0 0
        %3159 = vmatpush1.bf16.msra.mxu0 %v3138
        %3160 = vmatprep.subr.bf16.mxu0 0
        %3161 = vmatpush1.bf16.msra.mxu0 %v3139
        %3162 = vmatprep.subr.bf16.mxu0 0
        %3163 = vmatpush1.bf16.msra.mxu0 %v3140
        %3164 = vmatprep.subr.bf16.mxu0 0
        %3165 = vmatpush1.bf16.msra.mxu0 %v3141
        %3166 = vmatprep.subr.bf16.mxu0 0
        %3167 = vmatpush1.bf16.msra.mxu0 0
        %3168 = vmatprep.subr.bf16.mxu0 0
        %3169 = vmatpush1.bf16.msra.mxu0 0
        %3170 = vmatprep.subr.bf16.mxu0 0
        %3171 = vmatpush1.bf16.msra.mxu0 0
        %3172 = vmatprep.subr.bf16.mxu0 0
        %3173 = vmatpush1.bf16.msra.mxu0 0
        %3174 = vmatprep.subr.bf16.mxu0 0
        %3175 = vmatpush1.bf16.msra.mxu0 0
        %3176 = vmatprep.subr.bf16.mxu0 0
        %3177 = vmatpush1.bf16.msra.mxu0 0
        %3178 = vmatprep.subr.bf16.mxu0 0
        %3179 = vmatpush1.bf16.msra.mxu0 0
        %3180 = vmatprep.subr.bf16.mxu0 0
        %3181 = vmatpush1.bf16.msra.mxu0 0
        %3182 = vmatprep.mubr.bf16.mxu0 0
        %3183 = vmatmul.mubr.bf16.gmra.mrb[0].mxu0 %v3082
        %v3184 = vpop.f32.mrb[0].mxu0
        %v3185 = vadd.f32 0.0, %v3184
        %v3186 = vpop.f32.mrb[0].mxu0
        %v3187 = vpop.f32.mrb[0].mxu0
        %v3188 = vadd.f32 0.0, %v3187
        %v3189 = vpop.f32.mrb[0].mxu0
        %3190 = vmatprep.mubr.bf16.mxu0 0
        %3191 = vmatmul.mubr.bf16.gmra.mrb[0].mxu0 %v3083
        %v3192 = vpop.f32.mrb[0].mxu0
        %v3193 = vadd.f32 0.0, %v3192
        %v3194 = vpop.f32.mrb[0].mxu0
        %v3195 = vpop.f32.mrb[0].mxu0
        %v3196 = vadd.f32 0.0, %v3195
        %v3197 = vpop.f32.mrb[0].mxu0
        %3198 = vmatprep.mubr.bf16.mxu0 0
        %3199 = vmatmul.mubr.bf16.gmra.mrb[0].mxu0 %v3084
        %v3200 = vpop.f32.mrb[0].mxu0
        %v3201 = vadd.f32 0.0, %v3200
        %v3202 = vpop.f32.mrb[0].mxu0
        %v3203 = vpop.f32.mrb[0].mxu0
        %v3204 = vadd.f32 0.0, %v3203
        %v3205 = vpop.f32.mrb[0].mxu0
        %3206 = vmatprep.mubr.bf16.mxu0 0
        %3207 = vmatmul.mubr.bf16.gmra.mrb[0].mxu0 %v3085
        %v3208 = vpop.f32.mrb[0].mxu0
        %v3209 = vadd.f32 0.0, %v3208
        %v3210 = vpop.f32.mrb[0].mxu0
        %v3211 = vpop.f32.mrb[0].mxu0
        %v3212 = vadd.f32 0.0, %v3211
        %v3213 = vpop.f32.mrb[0].mxu0
        %3214 = vmatprep.mubr.bf16.mxu0 0
        %3215 = vmatmul.mubr.bf16.gmra.mrb[0].mxu0 %v3086
        %v3216 = vpop.f32.mrb[0].mxu0
        %v3217 = vadd.f32 0.0, %v3216
        %v3218 = vpop.f32.mrb[0].mxu0
        %v3219 = vpop.f32.mrb[0].mxu0
        %v3220 = vadd.f32 0.0, %v3219
        %v3221 = vpop.f32.mrb[0].mxu0
        %3222 = vmatprep.mubr.bf16.mxu0 0
        %3223 = vmatmul.mubr.bf16.gmra.mrb[0].mxu0 %v3087
        %v3224 = vpop.f32.mrb[0].mxu0
        %v3225 = vadd.f32 0.0, %v3224
        %v3226 = vpop.f32.mrb[0].mxu0
        %v3227 = vpop.f32.mrb[0].mxu0
        %v3228 = vadd.f32 0.0, %v3227
        %v3229 = vpop.f32.mrb[0].mxu0
        %3230 = vmatprep.mubr.bf16.mxu0 0
        %3231 = vmatmul.mubr.bf16.gmra.mrb[0].mxu0 %v3088
        %v3232 = vpop.f32.mrb[0].mxu0
        %v3233 = vadd.f32 0.0, %v3232
        %v3234 = vpop.f32.mrb[0].mxu0
        %v3235 = vpop.f32.mrb[0].mxu0
        %v3236 = vadd.f32 0.0, %v3235
        %v3237 = vpop.f32.mrb[0].mxu0
        %3238 = vmatprep.mubr.bf16.mxu0 0
        %3239 = vmatmul.mubr.bf16.gmra.mrb[0].mxu0 %v3089
        %v3240 = vpop.f32.mrb[0].mxu0
        %v3241 = vadd.f32 0.0, %v3240
        %v3242 = vpop.f32.mrb[0].mxu0
        %v3243 = vpop.f32.mrb[0].mxu0
        %v3244 = vadd.f32 0.0, %v3243
        %v3245 = vpop.f32.mrb[0].mxu0
        %3246 = vmatprep.mubr.bf16.mxu0 0
        %3247 = vmatmul.mubr.bf16.gmra.mrb[0].mxu0 %v3090
        %v3248 = vpop.f32.mrb[0].mxu0
        %v3249 = vadd.f32 0.0, %v3248
        %v3250 = vpop.f32.mrb[0].mxu0
        %v3251 = vpop.f32.mrb[0].mxu0
        %v3252 = vadd.f32 0.0, %v3251
        %v3253 = vpop.f32.mrb[0].mxu0
        %3254 = vmatprep.mubr.bf16.mxu0 0
        %3255 = vmatmul.mubr.bf16.gmra.mrb[0].mxu0 %v3091
        %v3256 = vpop.f32.mrb[0].mxu0
        %v3257 = vadd.f32 0.0, %v3256
        %v3258 = vpop.f32.mrb[0].mxu0
        %v3259 = vpop.f32.mrb[0].mxu0
        %v3260 = vadd.f32 0.0, %v3259
        %v3261 = vpop.f32.mrb[0].mxu0
        %3262 = vdwg.mxu0
        %v3263 = vadd.f32 %v2755, %v3185
        %v3264 = vadd.f32 %v2756, %v3188
        %v3265 = vadd.f32 %v2757, %v3193
        %v3266 = vadd.f32 %v2758, %v3196
        %v3267 = vadd.f32 %v2759, %v3201
        %v3268 = vadd.f32 %v2760, %v3204
        %v3269 = vadd.f32 %v2761, %v3209
        %v3270 = vadd.f32 %v2762, %v3212
        %v3271 = vadd.f32 %v2763, %v3217
        %v3272 = vadd.f32 %v2764, %v3220
        %v3273 = vadd.f32 %v2765, %v3225
        %v3274 = vadd.f32 %v2766, %v3228
        %v3275 = vadd.f32 %v2767, %v3233
        %v3276 = vadd.f32 %v2768, %v3236
        %v3277 = vadd.f32 %v2769, %v3241
        %v3278 = vadd.f32 %v2770, %v3244
        %v3279 = vadd.f32 %v2771, %v3249
        %v3280 = vadd.f32 %v2772, %v3252
        %v3281 = vadd.f32 %v2773, %v3257
        %v3282 = vadd.f32 %v2774, %v3260
        %v3283 = vld [vmem:[%s2496] sm:$0xe]
        %v3284 = vld [vmem:[%s2496 + $0xc] sm:$0xe]
        %v3285 = vld [vmem:[%s2496 + $0x18] sm:$0xe]
        %v3286 = vld [vmem:[%s2496 + $0x24] sm:$0xe]
        %v3287 = vld [vmem:[%s2496 + $0x30] sm:$0xe]
        %v3288 = vld [vmem:[%s2496 + $0x3c] sm:$0xe]
        %v3289 = vld [vmem:[%s2496 + $0x48] sm:$0xe]
        %v3290 = vld [vmem:[%s2496 + $0x54] sm:$0xe]
        %v3291 = vld [vmem:[%s2496 + $0x60] sm:$0xe]
        %v3292 = vld [vmem:[%s2496 + $0x6c] sm:$0xe]
        %v3323 = vrot.slane %v3283, 5
        %v3324 = vrot.slane %v3323, 4
        %v3325 = vrot.slane %v2776, 5
        %v3326 = vsel %vm1052, %v3324, %v3325
        %v3327 = vrot.slane %v3325, 4
        %v3328 = vrot.slane %v2777, 5
        %v3329 = vsel %vm1052, %v3327, %v3328
        %v3330 = vrot.slane %v3284, 5
        %v3331 = vrot.slane %v3330, 4
        %v3332 = vrot.slane %v2779, 5
        %v3333 = vsel %vm1052, %v3331, %v3332
        %v3334 = vrot.slane %v3332, 4
        %v3335 = vrot.slane %v2780, 5
        %v3336 = vsel %vm1052, %v3334, %v3335
        %v3337 = vrot.slane %v3285, 5
        %v3338 = vrot.slane %v3337, 4
        %v3339 = vrot.slane %v2782, 5
        %v3340 = vsel %vm1052, %v3338, %v3339
        %v3341 = vrot.slane %v3339, 4
        %v3342 = vrot.slane %v2783, 5
        %v3343 = vsel %vm1052, %v3341, %v3342
        %v3344 = vrot.slane %v3286, 5
        %v3345 = vrot.slane %v3344, 4
        %v3346 = vrot.slane %v2785, 5
        %v3347 = vsel %vm1052, %v3345, %v3346
        %v3348 = vrot.slane %v3346, 4
        %v3349 = vrot.slane %v2786, 5
        %v3350 = vsel %vm1052, %v3348, %v3349
        %v3351 = vrot.slane %v3287, 5
        %v3352 = vrot.slane %v3351, 4
        %v3353 = vrot.slane %v2788, 5
        %v3354 = vsel %vm1052, %v3352, %v3353
        %v3355 = vrot.slane %v3353, 4
        %v3356 = vrot.slane %v2789, 5
        %v3357 = vsel %vm1052, %v3355, %v3356
        %v3358 = vrot.slane %v3288, 5
        %v3359 = vrot.slane %v3358, 4
        %v3360 = vrot.slane %v2791, 5
        %v3361 = vsel %vm1052, %v3359, %v3360
        %v3362 = vrot.slane %v3360, 4
        %v3363 = vrot.slane %v2792, 5
        %v3364 = vsel %vm1052, %v3362, %v3363
        %v3365 = vrot.slane %v3289, 5
        %v3366 = vrot.slane %v3365, 4
        %v3367 = vrot.slane %v2794, 5
        %v3368 = vsel %vm1052, %v3366, %v3367
        %v3369 = vrot.slane %v3367, 4
        %v3370 = vrot.slane %v2795, 5
        %v3371 = vsel %vm1052, %v3369, %v3370
        %v3372 = vrot.slane %v3290, 5
        %v3373 = vrot.slane %v3372, 4
        %v3374 = vrot.slane %v2797, 5
        %v3375 = vsel %vm1052, %v3373, %v3374
        %v3376 = vrot.slane %v3374, 4
        %v3377 = vrot.slane %v2798, 5
        %v3378 = vsel %vm1052, %v3376, %v3377
        %v3379 = vrot.slane %v3291, 5
        %v3380 = vrot.slane %v3379, 4
        %v3381 = vrot.slane %v2800, 5
        %v3382 = vsel %vm1052, %v3380, %v3381
        %v3383 = vrot.slane %v3381, 4
        %v3384 = vrot.slane %v2801, 5
        %v3385 = vsel %vm1052, %v3383, %v3384
        %v3386 = vrot.slane %v3292, 5
        %v3387 = vrot.slane %v3386, 4
        %v3388 = vrot.slane %v2803, 5
        %v3389 = vsel %vm1052, %v3387, %v3388
        %v3390 = vrot.slane %v3388, 4
        %v3391 = vrot.slane %v2804, 5
        %v3392 = vsel %vm1052, %v3390, %v3391
        %s3393 = scalar_lea.vmem [#allocation6], 512
        %v3394 = vld [vmem:[%s3393] sm:$0xf]
        %v3395 = vld [vmem:[%s3393 + $0x4] sm:$0xf]
        %v3396 = vld [vmem:[%s3393 + $0x8] sm:$0xf]
        %v3397 = vld [vmem:[%s3393 + $0xc] sm:$0xf]
        %v3398 = vld [vmem:[%s3393 + $0x10] sm:$0xf]
        %v3399 = vld [vmem:[%s3393 + $0x14] sm:$0xf]
        %v3400 = vld [vmem:[%s3393 + $0x18] sm:$0xf]
        %v3401 = vld [vmem:[%s3393 + $0x1c] sm:$0xf]
        %v3402 = vld [vmem:[%s3393 + $0x20] sm:$0xf]
        %v3403 = vld [vmem:[%s3393 + $0x24] sm:$0xf]
        %v3404 = vld [vmem:[%s3393 + $0x28] sm:$0xf]
        %v3405 = vld [vmem:[%s3393 + $0x2c] sm:$0xf]
        %v3406 = vld [vmem:[%s3393 + $0x30] sm:$0xf]
        %v3407 = vld [vmem:[%s3393 + $0x34] sm:$0xf]
        %v3408 = vld [vmem:[%s3393 + $0x38] sm:$0xf]
        %v3409 = vld [vmem:[%s3393 + $0x3c] sm:$0xf]
        %v3410 = vunpack.c.l.b16 %v3326
        %v3411 = vunpack.c.l.b16 %v3329
        %v3412 = vunpack.c.l.b16 %v3333
        %v3413 = vunpack.c.l.b16 %v3336
        %v3414 = vunpack.c.l.b16 %v3340
        %v3415 = vunpack.c.l.b16 %v3343
        %v3416 = vunpack.c.l.b16 %v3347
        %v3417 = vunpack.c.l.b16 %v3350
        %v3418 = vunpack.c.l.b16 %v3354
        %v3419 = vunpack.c.l.b16 %v3357
        %v3420 = vunpack.c.l.b16 %v3361
        %v3421 = vunpack.c.l.b16 %v3364
        %v3422 = vunpack.c.l.b16 %v3368
        %v3423 = vunpack.c.l.b16 %v3371
        %v3424 = vunpack.c.l.b16 %v3375
        %v3425 = vunpack.c.l.b16 %v3378
        %v3426 = vunpack.c.l.b16 %v3382
        %v3427 = vunpack.c.l.b16 %v3385
        %v3428 = vunpack.c.l.b16 %v3389
        %v3429 = vunpack.c.l.b16 %v3392
        %v3430 = vpack.c.b16 %v3411, %v3410
        %v3431 = vpack.c.b16 %v3413, %v3412
        %v3432 = vpack.c.b16 %v3415, %v3414
        %v3433 = vpack.c.b16 %v3417, %v3416
        %v3434 = vpack.c.b16 %v3419, %v3418
        %v3435 = vpack.c.b16 %v3421, %v3420
        %v3436 = vpack.c.b16 %v3423, %v3422
        %v3437 = vpack.c.b16 %v3425, %v3424
        %v3438 = vpack.c.b16 %v3427, %v3426
        %v3439 = vpack.c.b16 %v3429, %v3428
        %v3466 = vunpack.c.l.b16 %v3394
        %v3467 = vunpack.c.l.b16 %v3395
        %v3468 = vunpack.c.l.b16 %v3396
        %v3469 = vunpack.c.l.b16 %v3397
        %v3470 = vunpack.c.l.b16 %v3398
        %v3471 = vunpack.c.l.b16 %v3399
        %v3472 = vunpack.c.l.b16 %v3400
        %v3473 = vunpack.c.l.b16 %v3401
        %v3474 = vunpack.c.l.b16 %v3402
        %v3475 = vunpack.c.l.b16 %v3403
        %v3476 = vunpack.c.l.b16 %v3404
        %v3477 = vunpack.c.l.b16 %v3405
        %v3478 = vunpack.c.l.b16 %v3406
        %v3479 = vunpack.c.l.b16 %v3407
        %v3480 = vunpack.c.l.b16 %v3408
        %v3481 = vunpack.c.l.b16 %v3409
        %v3482 = vpack.c.b16 %v3467, %v3466
        %v3483 = vpack.c.b16 %v3469, %v3468
        %v3484 = vpack.c.b16 %v3471, %v3470
        %v3485 = vpack.c.b16 %v3473, %v3472
        %v3486 = vpack.c.b16 %v3475, %v3474
        %v3487 = vpack.c.b16 %v3477, %v3476
        %v3488 = vpack.c.b16 %v3479, %v3478
        %v3489 = vpack.c.b16 %v3481, %v3480
        %3498 = vmatprep.subr.bf16.mxu0 0
        %3499 = vmatpush1.bf16.msra.mxu0 %v3482
        %3500 = vmatprep.subr.bf16.mxu0 0
        %3501 = vmatpush1.bf16.msra.mxu0 %v3483
        %3502 = vmatprep.subr.bf16.mxu0 0
        %3503 = vmatpush1.bf16.msra.mxu0 %v3484
        %3504 = vmatprep.subr.bf16.mxu0 0
        %3505 = vmatpush1.bf16.msra.mxu0 %v3485
        %3506 = vmatprep.subr.bf16.mxu0 0
        %3507 = vmatpush1.bf16.msra.mxu0 %v3486
        %3508 = vmatprep.subr.bf16.mxu0 0
        %3509 = vmatpush1.bf16.msra.mxu0 %v3487
        %3510 = vmatprep.subr.bf16.mxu0 0
        %3511 = vmatpush1.bf16.msra.mxu0 %v3488
        %3512 = vmatprep.subr.bf16.mxu0 0
        %3513 = vmatpush1.bf16.msra.mxu0 %v3489
        %3514 = vmatprep.subr.bf16.mxu0 0
        %3515 = vmatpush1.bf16.msra.mxu0 0
        %3516 = vmatprep.subr.bf16.mxu0 0
        %3517 = vmatpush1.bf16.msra.mxu0 0
        %3518 = vmatprep.subr.bf16.mxu0 0
        %3519 = vmatpush1.bf16.msra.mxu0 0
        %3520 = vmatprep.subr.bf16.mxu0 0
        %3521 = vmatpush1.bf16.msra.mxu0 0
        %3522 = vmatprep.subr.bf16.mxu0 0
        %3523 = vmatpush1.bf16.msra.mxu0 0
        %3524 = vmatprep.subr.bf16.mxu0 0
        %3525 = vmatpush1.bf16.msra.mxu0 0
        %3526 = vmatprep.subr.bf16.mxu0 0
        %3527 = vmatpush1.bf16.msra.mxu0 0
        %3528 = vmatprep.subr.bf16.mxu0 0
        %3529 = vmatpush1.bf16.msra.mxu0 0
        %3530 = vmatprep.mubr.bf16.mxu0 0
        %3531 = vmatmul.mubr.bf16.gmra.mrb[0].mxu0 %v3430
        %v3532 = vpop.f32.mrb[0].mxu0
        %v3533 = vadd.f32 0.0, %v3532
        %v3534 = vpop.f32.mrb[0].mxu0
        %v3535 = vpop.f32.mrb[0].mxu0
        %v3536 = vadd.f32 0.0, %v3535
        %v3537 = vpop.f32.mrb[0].mxu0
        %3538 = vmatprep.mubr.bf16.mxu0 0
        %3539 = vmatmul.mubr.bf16.gmra.mrb[0].mxu0 %v3431
        %v3540 = vpop.f32.mrb[0].mxu0
        %v3541 = vadd.f32 0.0, %v3540
        %v3542 = vpop.f32.mrb[0].mxu0
        %v3543 = vpop.f32.mrb[0].mxu0
        %v3544 = vadd.f32 0.0, %v3543
        %v3545 = vpop.f32.mrb[0].mxu0
        %3546 = vmatprep.mubr.bf16.mxu0 0
        %3547 = vmatmul.mubr.bf16.gmra.mrb[0].mxu0 %v3432
        %v3548 = vpop.f32.mrb[0].mxu0
        %v3549 = vadd.f32 0.0, %v3548
        %v3550 = vpop.f32.mrb[0].mxu0
        %v3551 = vpop.f32.mrb[0].mxu0
        %v3552 = vadd.f32 0.0, %v3551
        %v3553 = vpop.f32.mrb[0].mxu0
        %3554 = vmatprep.mubr.bf16.mxu0 0
        %3555 = vmatmul.mubr.bf16.gmra.mrb[0].mxu0 %v3433
        %v3556 = vpop.f32.mrb[0].mxu0
        %v3557 = vadd.f32 0.0, %v3556
        %v3558 = vpop.f32.mrb[0].mxu0
        %v3559 = vpop.f32.mrb[0].mxu0
        %v3560 = vadd.f32 0.0, %v3559
        %v3561 = vpop.f32.mrb[0].mxu0
        %3562 = vmatprep.mubr.bf16.mxu0 0
        %3563 = vmatmul.mubr.bf16.gmra.mrb[0].mxu0 %v3434
        %v3564 = vpop.f32.mrb[0].mxu0
        %v3565 = vadd.f32 0.0, %v3564
        %v3566 = vpop.f32.mrb[0].mxu0
        %v3567 = vpop.f32.mrb[0].mxu0
        %v3568 = vadd.f32 0.0, %v3567
        %v3569 = vpop.f32.mrb[0].mxu0
        %3570 = vmatprep.mubr.bf16.mxu0 0
        %3571 = vmatmul.mubr.bf16.gmra.mrb[0].mxu0 %v3435
        %v3572 = vpop.f32.mrb[0].mxu0
        %v3573 = vadd.f32 0.0, %v3572
        %v3574 = vpop.f32.mrb[0].mxu0
        %v3575 = vpop.f32.mrb[0].mxu0
        %v3576 = vadd.f32 0.0, %v3575
        %v3577 = vpop.f32.mrb[0].mxu0
        %3578 = vmatprep.mubr.bf16.mxu0 0
        %3579 = vmatmul.mubr.bf16.gmra.mrb[0].mxu0 %v3436
        %v3580 = vpop.f32.mrb[0].mxu0
        %v3581 = vadd.f32 0.0, %v3580
        %v3582 = vpop.f32.mrb[0].mxu0
        %v3583 = vpop.f32.mrb[0].mxu0
        %v3584 = vadd.f32 0.0, %v3583
        %v3585 = vpop.f32.mrb[0].mxu0
        %3586 = vmatprep.mubr.bf16.mxu0 0
        %3587 = vmatmul.mubr.bf16.gmra.mrb[0].mxu0 %v3437
        %v3588 = vpop.f32.mrb[0].mxu0
        %v3589 = vadd.f32 0.0, %v3588
        %v3590 = vpop.f32.mrb[0].mxu0
        %v3591 = vpop.f32.mrb[0].mxu0
        %v3592 = vadd.f32 0.0, %v3591
        %v3593 = vpop.f32.mrb[0].mxu0
        %3594 = vmatprep.mubr.bf16.mxu0 0
        %3595 = vmatmul.mubr.bf16.gmra.mrb[0].mxu0 %v3438
        %v3596 = vpop.f32.mrb[0].mxu0
        %v3597 = vadd.f32 0.0, %v3596
        %v3598 = vpop.f32.mrb[0].mxu0
        %v3599 = vpop.f32.mrb[0].mxu0
        %v3600 = vadd.f32 0.0, %v3599
        %v3601 = vpop.f32.mrb[0].mxu0
        %3602 = vmatprep.mubr.bf16.mxu0 0
        %3603 = vmatmul.mubr.bf16.gmra.mrb[0].mxu0 %v3439
        %v3604 = vpop.f32.mrb[0].mxu0
        %v3605 = vadd.f32 0.0, %v3604
        %v3606 = vpop.f32.mrb[0].mxu0
        %v3607 = vpop.f32.mrb[0].mxu0
        %v3608 = vadd.f32 0.0, %v3607
        %v3609 = vpop.f32.mrb[0].mxu0
        %3610 = vdwg.mxu0
        %v3611 = vadd.f32 %v3263, %v3533
        %v3612 = vadd.f32 %v3264, %v3536
        %v3613 = vadd.f32 %v3265, %v3541
        %v3614 = vadd.f32 %v3266, %v3544
        %v3615 = vadd.f32 %v3267, %v3549
        %v3616 = vadd.f32 %v3268, %v3552
        %v3617 = vadd.f32 %v3269, %v3557
        %v3618 = vadd.f32 %v3270, %v3560
        %v3619 = vadd.f32 %v3271, %v3565
        %v3620 = vadd.f32 %v3272, %v3568
        %v3621 = vadd.f32 %v3273, %v3573
        %v3622 = vadd.f32 %v3274, %v3576
        %v3623 = vadd.f32 %v3275, %v3581
        %v3624 = vadd.f32 %v3276, %v3584
        %v3625 = vadd.f32 %v3277, %v3589
        %v3626 = vadd.f32 %v3278, %v3592
        %v3627 = vadd.f32 %v3279, %v3597
        %v3628 = vadd.f32 %v3280, %v3600
        %v3629 = vadd.f32 %v3281, %v3605
        %v3630 = vadd.f32 %v3282, %v3608
        %v3631 = vld [vmem:[%s2] sm:$0x1]
        %v3633 = vlaneseq
        %v3634 = vshrl.u32 %v3633, 7
        %v3635 = vsub.s32 0, %v3634
        %v3636 = vrot.slane %v3631, %v3635
        %v3638 = vadd.f32 %v3611, %v3636
        %v3639 = vadd.f32 %v3612, %v3636
        %v3640 = vadd.f32 %v3613, %v3636
        %v3641 = vadd.f32 %v3614, %v3636
        %v3642 = vadd.f32 %v3615, %v3636
        %v3643 = vadd.f32 %v3616, %v3636
        %v3644 = vadd.f32 %v3617, %v3636
        %v3645 = vadd.f32 %v3618, %v3636
        %v3646 = vadd.f32 %v3619, %v3636
        %v3647 = vadd.f32 %v3620, %v3636
        %v3648 = vadd.f32 %v3621, %v3636
        %v3649 = vadd.f32 %v3622, %v3636
        %v3650 = vadd.f32 %v3623, %v3636
        %v3651 = vadd.f32 %v3624, %v3636
        %v3652 = vadd.f32 %v3625, %v3636
        %v3653 = vadd.f32 %v3626, %v3636
        %v3654 = vadd.f32 %v3627, %v3636
        %v3655 = vadd.f32 %v3628, %v3636
        %v3656 = vadd.f32 %v3629, %v3636
        %v3657 = vadd.f32 %v3630, %v3636
        %v3658 = vmax.f32 %v3638, 0.0
        %v3659 = vmax.f32 %v3639, 0.0
        %v3660 = vmax.f32 %v3640, 0.0
        %v3661 = vmax.f32 %v3641, 0.0
        %v3662 = vmax.f32 %v3642, 0.0
        %v3663 = vmax.f32 %v3643, 0.0
        %v3664 = vmax.f32 %v3644, 0.0
        %v3665 = vmax.f32 %v3645, 0.0
        %v3666 = vmax.f32 %v3646, 0.0
        %v3667 = vmax.f32 %v3647, 0.0
        %v3668 = vmax.f32 %v3648, 0.0
        %v3669 = vmax.f32 %v3649, 0.0
        %v3670 = vmax.f32 %v3650, 0.0
        %v3671 = vmax.f32 %v3651, 0.0
        %v3672 = vmax.f32 %v3652, 0.0
        %v3673 = vmax.f32 %v3653, 0.0
        %v3674 = vmax.f32 %v3654, 0.0
        %v3675 = vmax.f32 %v3655, 0.0
        %v3676 = vmax.f32 %v3656, 0.0
        %v3677 = vmax.f32 %v3657, 0.0
        %3678 = vst [vmem:[#allocation2 + $0x7] sm:$0x1] 0.0
        %3679 = vst [vmem:[#allocation2 + $0x27] sm:$0x1] 0.0
        %3680 = vst [vmem:[#allocation2 + $0x47] sm:$0x1] 0.0
        %3681 = vst [vmem:[#allocation2 + $0x67] sm:$0x1] 0.0
        %3682 = vst [vmem:[#allocation2 + $0x87] sm:$0x1] 0.0
        %3683 = vst [vmem:[#allocation2 + $0xa7] sm:$0x1] 0.0
        %3684 = vst [vmem:[#allocation2 + $0xc7] sm:$0x1] 0.0
        %3685 = vst [vmem:[#allocation2 + $0xe7] sm:$0x1] 0.0
        %3686 = vst [vmem:[#allocation2 + $0x107] sm:$0x1] 0.0
        %3687 = vst [vmem:[#allocation2 + $0x127] sm:$0x1] 0.0
        %3688 = vst [vmem:[#allocation2 + $0x18] sm:$0x1] 0.0
        %3689 = vst [vmem:[#allocation2 + $0x38] sm:$0x1] 0.0
        %3690 = vst [vmem:[#allocation2 + $0x58] sm:$0x1] 0.0
        %3691 = vst [vmem:[#allocation2 + $0x78] sm:$0x1] 0.0
        %3692 = vst [vmem:[#allocation2 + $0x98] sm:$0x1] 0.0
        %3693 = vst [vmem:[#allocation2 + $0xb8] sm:$0x1] 0.0
        %3694 = vst [vmem:[#allocation2 + $0xd8] sm:$0x1] 0.0
        %3695 = vst [vmem:[#allocation2 + $0xf8] sm:$0x1] 0.0
        %3696 = vst [vmem:[#allocation2 + $0x118] sm:$0x1] 0.0
        %3697 = vst [vmem:[#allocation2 + $0x138] sm:$0x1] 0.0
        %3698 = vst [vmem:[#allocation2 + $0x8] sm:$0xff] %v3658
        %3699 = vst [vmem:[#allocation2 + $0x10] sm:$0xff] %v3659
        %3700 = vst [vmem:[#allocation2 + $0x28] sm:$0xff] %v3660
        %3701 = vst [vmem:[#allocation2 + $0x30] sm:$0xff] %v3661
        %3702 = vst [vmem:[#allocation2 + $0x48] sm:$0xff] %v3662
        %3703 = vst [vmem:[#allocation2 + $0x50] sm:$0xff] %v3663
        %3704 = vst [vmem:[#allocation2 + $0x68] sm:$0xff] %v3664
        %3705 = vst [vmem:[#allocation2 + $0x70] sm:$0xff] %v3665
        %3706 = vst [vmem:[#allocation2 + $0x88] sm:$0xff] %v3666
        %3707 = vst [vmem:[#allocation2 + $0x90] sm:$0xff] %v3667
        %3708 = vst [vmem:[#allocation2 + $0xa8] sm:$0xff] %v3668
        %3709 = vst [vmem:[#allocation2 + $0xb0] sm:$0xff] %v3669
        %3710 = vst [vmem:[#allocation2 + $0xc8] sm:$0xff] %v3670
        %3711 = vst [vmem:[#allocation2 + $0xd0] sm:$0xff] %v3671
        %3712 = vst [vmem:[#allocation2 + $0xe8] sm:$0xff] %v3672
        %3713 = vst [vmem:[#allocation2 + $0xf0] sm:$0xff] %v3673
        %3714 = vst [vmem:[#allocation2 + $0x108] sm:$0xff] %v3674
        %3715 = vst [vmem:[#allocation2 + $0x110] sm:$0xff] %v3675
        %3716 = vst [vmem:[#allocation2 + $0x128] sm:$0xff] %v3676
        %3717 = vst [vmem:[#allocation2 + $0x130] sm:$0xff] %v3677
        %p3718 = scmp.eq.s32.totalorder %s28, 0
        // Predicated region
        $region53: #{tpu_custom_call.1} parent=39 // pred_check
          %p3719 = pneg %p3718
        $region54: #{tpu_custom_call.1} parent=39 // pred_check_branch
          %3721 = sbr.rel (%p3719) target = $region56
        $region55: #{tpu_custom_call.1} parent=39 // pred_region
          %3722 = vst [vmem:[#allocation2 + $0x7] sm:$0xff] 0.0
          %3723 = vst [vmem:[#allocation2 + $0xf] sm:$0xff] 0.0
          %3724 = vst [vmem:[#allocation2 + $0x17] sm:$0x3] 0.0
        $region56: #{tpu_custom_call.1} parent=39 // pred_fallthru
          _
        %p3725 = scmp.eq.s32.totalorder %s28, 1
        // Predicated region
        $region57: #{tpu_custom_call.1} parent=39 // pred_check
          %p3726 = pneg %p3725
        $region58: #{tpu_custom_call.1} parent=39 // pred_check_branch
          %3728 = sbr.rel (%p3726) target = $region60
        $region59: #{tpu_custom_call.1} parent=39 // pred_region
          %s3729 = scalar_lea.vmem [#allocation2], 288
          %3730 = vst [vmem:[%s3729 + $0x7] sm:$0xff] 0.0
          %3731 = vst [vmem:[%s3729 + $0xf] sm:$0xff] 0.0
          %3732 = vst [vmem:[%s3729 + $0x17] sm:$0x3] 0.0
        $region60: #{tpu_custom_call.1} parent=39 // pred_fallthru
          _
        %v3733 = vld [vmem:[#allocation2 + $0x7] sm:$0xff]
        %v3734 = vld [vmem:[#allocation2 + $0xf] sm:$0xff]
        %v3735 = vld [vmem:[#allocation2 + $0x27] sm:$0xff]
        %v3736 = vld [vmem:[#allocation2 + $0x2f] sm:$0xff]
        %v3737 = vld [vmem:[#allocation2 + $0x47] sm:$0xff]
        %v3738 = vld [vmem:[#allocation2 + $0x4f] sm:$0xff]
        %v3739 = vld [vmem:[#allocation2 + $0x67] sm:$0xff]
        %v3740 = vld [vmem:[#allocation2 + $0x6f] sm:$0xff]
        %v3741 = vld [vmem:[#allocation2 + $0x87] sm:$0xff]
        %v3742 = vld [vmem:[#allocation2 + $0x8f] sm:$0xff]
        %v3743 = vld [vmem:[#allocation2 + $0xa7] sm:$0xff]
        %v3744 = vld [vmem:[#allocation2 + $0xaf] sm:$0xff]
        %v3745 = vld [vmem:[#allocation2 + $0xc7] sm:$0xff]
        %v3746 = vld [vmem:[#allocation2 + $0xcf] sm:$0xff]
        %v3747 = vld [vmem:[#allocation2 + $0xe7] sm:$0xff]
        %v3748 = vld [vmem:[#allocation2 + $0xef] sm:$0xff]
        %v3749 = vpack.c.bf16 %v3734, %v3733
        %v3750 = vpack.c.bf16 %v3736, %v3735
        %v3751 = vpack.c.bf16 %v3738, %v3737
        %v3752 = vpack.c.bf16 %v3740, %v3739
        %v3753 = vpack.c.bf16 %v3742, %v3741
        %v3754 = vpack.c.bf16 %v3744, %v3743
        %v3755 = vpack.c.bf16 %v3746, %v3745
        %v3756 = vpack.c.bf16 %v3748, %v3747
        %v3757 = vld [vmem:[#allocation8] sm:$0xf]
        %v3758 = vld [vmem:[#allocation8 + $0x4] sm:$0xf]
        %v3759 = vld [vmem:[#allocation8 + $0x8] sm:$0xf]
        %v3760 = vld [vmem:[#allocation8 + $0xc] sm:$0xf]
        %v3761 = vld [vmem:[#allocation8 + $0x10] sm:$0xf]
        %v3762 = vld [vmem:[#allocation8 + $0x14] sm:$0xf]
        %v3763 = vld [vmem:[#allocation8 + $0x18] sm:$0xf]
        %v3764 = vld [vmem:[#allocation8 + $0x1c] sm:$0xf]
        %v3765 = vld [vmem:[#allocation8 + $0x20] sm:$0xf]
        %v3766 = vld [vmem:[#allocation8 + $0x24] sm:$0xf]
        %v3767 = vld [vmem:[#allocation8 + $0x28] sm:$0xf]
        %v3768 = vld [vmem:[#allocation8 + $0x2c] sm:$0xf]
        %v3769 = vld [vmem:[#allocation8 + $0x30] sm:$0xf]
        %v3770 = vld [vmem:[#allocation8 + $0x34] sm:$0xf]
        %v3771 = vld [vmem:[#allocation8 + $0x38] sm:$0xf]
        %v3772 = vld [vmem:[#allocation8 + $0x3c] sm:$0xf]
        %v3773 = vld [vmem:[#allocation2 + $0x8] sm:$0xff]
        %v3774 = vld [vmem:[#allocation2 + $0x10] sm:$0xff]
        %v3775 = vld [vmem:[#allocation2 + $0x28] sm:$0xff]
        %v3776 = vld [vmem:[#allocation2 + $0x30] sm:$0xff]
        %v3777 = vld [vmem:[#allocation2 + $0x48] sm:$0xff]
        %v3778 = vld [vmem:[#allocation2 + $0x50] sm:$0xff]
        %v3779 = vld [vmem:[#allocation2 + $0x68] sm:$0xff]
        %v3780 = vld [vmem:[#allocation2 + $0x70] sm:$0xff]
        %v3781 = vld [vmem:[#allocation2 + $0x88] sm:$0xff]
        %v3782 = vld [vmem:[#allocation2 + $0x90] sm:$0xff]
        %v3783 = vld [vmem:[#allocation2 + $0xa8] sm:$0xff]
        %v3784 = vld [vmem:[#allocation2 + $0xb0] sm:$0xff]
        %v3785 = vld [vmem:[#allocation2 + $0xc8] sm:$0xff]
        %v3786 = vld [vmem:[#allocation2 + $0xd0] sm:$0xff]
        %v3787 = vld [vmem:[#allocation2 + $0xe8] sm:$0xff]
        %v3788 = vld [vmem:[#allocation2 + $0xf0] sm:$0xff]
        %v3789 = vpack.c.bf16 %v3774, %v3773
        %v3790 = vpack.c.bf16 %v3776, %v3775
        %v3791 = vpack.c.bf16 %v3778, %v3777
        %v3792 = vpack.c.bf16 %v3780, %v3779
        %v3793 = vpack.c.bf16 %v3782, %v3781
        %v3794 = vpack.c.bf16 %v3784, %v3783
        %v3795 = vpack.c.bf16 %v3786, %v3785
        %v3796 = vpack.c.bf16 %v3788, %v3787
        %s3797 = scalar_lea.vmem [#allocation8], 64
        %v3798 = vld [vmem:[%s3797] sm:$0xf]
        %v3799 = vld [vmem:[%s3797 + $0x4] sm:$0xf]
        %v3800 = vld [vmem:[%s3797 + $0x8] sm:$0xf]
        %v3801 = vld [vmem:[%s3797 + $0xc] sm:$0xf]
        %v3802 = vld [vmem:[%s3797 + $0x10] sm:$0xf]
        %v3803 = vld [vmem:[%s3797 + $0x14] sm:$0xf]
        %v3804 = vld [vmem:[%s3797 + $0x18] sm:$0xf]
        %v3805 = vld [vmem:[%s3797 + $0x1c] sm:$0xf]
        %v3806 = vld [vmem:[%s3797 + $0x20] sm:$0xf]
        %v3807 = vld [vmem:[%s3797 + $0x24] sm:$0xf]
        %v3808 = vld [vmem:[%s3797 + $0x28] sm:$0xf]
        %v3809 = vld [vmem:[%s3797 + $0x2c] sm:$0xf]
        %v3810 = vld [vmem:[%s3797 + $0x30] sm:$0xf]
        %v3811 = vld [vmem:[%s3797 + $0x34] sm:$0xf]
        %v3812 = vld [vmem:[%s3797 + $0x38] sm:$0xf]
        %v3813 = vld [vmem:[%s3797 + $0x3c] sm:$0xf]
        %v3830 = vunpack.c.l.b16 %v3798
        %v3831 = vunpack.c.l.b16 %v3799
        %v3832 = vunpack.c.l.b16 %v3800
        %v3833 = vunpack.c.l.b16 %v3801
        %v3834 = vunpack.c.l.b16 %v3802
        %v3835 = vunpack.c.l.b16 %v3803
        %v3836 = vunpack.c.l.b16 %v3804
        %v3837 = vunpack.c.l.b16 %v3805
        %v3838 = vunpack.c.l.b16 %v3806
        %v3839 = vunpack.c.l.b16 %v3807
        %v3840 = vunpack.c.l.b16 %v3808
        %v3841 = vunpack.c.l.b16 %v3809
        %v3842 = vunpack.c.l.b16 %v3810
        %v3843 = vunpack.c.l.b16 %v3811
        %v3844 = vunpack.c.l.b16 %v3812
        %v3845 = vunpack.c.l.b16 %v3813
        %v3846 = vpack.c.b16 %v3831, %v3830
        %v3847 = vpack.c.b16 %v3833, %v3832
        %v3848 = vpack.c.b16 %v3835, %v3834
        %v3849 = vpack.c.b16 %v3837, %v3836
        %v3850 = vpack.c.b16 %v3839, %v3838
        %v3851 = vpack.c.b16 %v3841, %v3840
        %v3852 = vpack.c.b16 %v3843, %v3842
        %v3853 = vpack.c.b16 %v3845, %v3844
        %3862 = vmatprep.subr.bf16.mxu0 0
        %3863 = vmatpush1.bf16.msra.mxu0 %v3846
        %3864 = vmatprep.subr.bf16.mxu0 0
        %3865 = vmatpush1.bf16.msra.mxu0 %v3847
        %3866 = vmatprep.subr.bf16.mxu0 0
        %3867 = vmatpush1.bf16.msra.mxu0 %v3848
        %3868 = vmatprep.subr.bf16.mxu0 0
        %3869 = vmatpush1.bf16.msra.mxu0 %v3849
        %3870 = vmatprep.subr.bf16.mxu0 0
        %3871 = vmatpush1.bf16.msra.mxu0 %v3850
        %3872 = vmatprep.subr.bf16.mxu0 0
        %3873 = vmatpush1.bf16.msra.mxu0 %v3851
        %3874 = vmatprep.subr.bf16.mxu0 0
        %3875 = vmatpush1.bf16.msra.mxu0 %v3852
        %3876 = vmatprep.subr.bf16.mxu0 0
        %3877 = vmatpush1.bf16.msra.mxu0 %v3853
        %3878 = vmatprep.subr.bf16.mxu0 0
        %3879 = vmatpush1.bf16.msra.mxu0 0
        %3880 = vmatprep.subr.bf16.mxu0 0
        %3881 = vmatpush1.bf16.msra.mxu0 0
        %3882 = vmatprep.subr.bf16.mxu0 0
        %3883 = vmatpush1.bf16.msra.mxu0 0
        %3884 = vmatprep.subr.bf16.mxu0 0
        %3885 = vmatpush1.bf16.msra.mxu0 0
        %3886 = vmatprep.subr.bf16.mxu0 0
        %3887 = vmatpush1.bf16.msra.mxu0 0
        %3888 = vmatprep.subr.bf16.mxu0 0
        %3889 = vmatpush1.bf16.msra.mxu0 0
        %3890 = vmatprep.subr.bf16.mxu0 0
        %3891 = vmatpush1.bf16.msra.mxu0 0
        %3892 = vmatprep.subr.bf16.mxu0 0
        %3893 = vmatpush1.bf16.msra.mxu0 0
        %3894 = vmatprep.mubr.bf16.mxu0 0
        %3895 = vmatmul.mubr.bf16.gmra.mrb[0].mxu0 %v3789
        %v3896 = vpop.f32.mrb[0].mxu0
        %v3897 = vadd.f32 0.0, %v3896
        %v3898 = vpop.f32.mrb[0].mxu0
        %v3899 = vpop.f32.mrb[0].mxu0
        %v3900 = vadd.f32 0.0, %v3899
        %v3901 = vpop.f32.mrb[0].mxu0
        %3902 = vmatprep.mubr.bf16.mxu0 0
        %3903 = vmatmul.mubr.bf16.gmra.mrb[0].mxu0 %v3790
        %v3904 = vpop.f32.mrb[0].mxu0
        %v3905 = vadd.f32 0.0, %v3904
        %v3906 = vpop.f32.mrb[0].mxu0
        %v3907 = vpop.f32.mrb[0].mxu0
        %v3908 = vadd.f32 0.0, %v3907
        %v3909 = vpop.f32.mrb[0].mxu0
        %3910 = vmatprep.mubr.bf16.mxu0 0
        %3911 = vmatmul.mubr.bf16.gmra.mrb[0].mxu0 %v3791
        %v3912 = vpop.f32.mrb[0].mxu0
        %v3913 = vadd.f32 0.0, %v3912
        %v3914 = vpop.f32.mrb[0].mxu0
        %v3915 = vpop.f32.mrb[0].mxu0
        %v3916 = vadd.f32 0.0, %v3915
        %v3917 = vpop.f32.mrb[0].mxu0
        %3918 = vmatprep.mubr.bf16.mxu0 0
        %3919 = vmatmul.mubr.bf16.gmra.mrb[0].mxu0 %v3792
        %v3920 = vpop.f32.mrb[0].mxu0
        %v3921 = vadd.f32 0.0, %v3920
        %v3922 = vpop.f32.mrb[0].mxu0
        %v3923 = vpop.f32.mrb[0].mxu0
        %v3924 = vadd.f32 0.0, %v3923
        %v3925 = vpop.f32.mrb[0].mxu0
        %3926 = vmatprep.mubr.bf16.mxu0 0
        %3927 = vmatmul.mubr.bf16.gmra.mrb[0].mxu0 %v3793
        %v3928 = vpop.f32.mrb[0].mxu0
        %v3929 = vadd.f32 0.0, %v3928
        %v3930 = vpop.f32.mrb[0].mxu0
        %v3931 = vpop.f32.mrb[0].mxu0
        %v3932 = vadd.f32 0.0, %v3931
        %v3933 = vpop.f32.mrb[0].mxu0
        %3934 = vmatprep.mubr.bf16.mxu0 0
        %3935 = vmatmul.mubr.bf16.gmra.mrb[0].mxu0 %v3794
        %v3936 = vpop.f32.mrb[0].mxu0
        %v3937 = vadd.f32 0.0, %v3936
        %v3938 = vpop.f32.mrb[0].mxu0
        %v3939 = vpop.f32.mrb[0].mxu0
        %v3940 = vadd.f32 0.0, %v3939
        %v3941 = vpop.f32.mrb[0].mxu0
        %3942 = vmatprep.mubr.bf16.mxu0 0
        %3943 = vmatmul.mubr.bf16.gmra.mrb[0].mxu0 %v3795
        %v3944 = vpop.f32.mrb[0].mxu0
        %v3945 = vadd.f32 0.0, %v3944
        %v3946 = vpop.f32.mrb[0].mxu0
        %v3947 = vpop.f32.mrb[0].mxu0
        %v3948 = vadd.f32 0.0, %v3947
        %v3949 = vpop.f32.mrb[0].mxu0
        %3950 = vmatprep.mubr.bf16.mxu0 0
        %3951 = vmatmul.mubr.bf16.gmra.mrb[0].mxu0 %v3796
        %v3952 = vpop.f32.mrb[0].mxu0
        %v3953 = vadd.f32 0.0, %v3952
        %v3954 = vpop.f32.mrb[0].mxu0
        %v3955 = vpop.f32.mrb[0].mxu0
        %v3956 = vadd.f32 0.0, %v3955
        %v3957 = vpop.f32.mrb[0].mxu0
        %3958 = vdwg.mxu0
        %v3975 = vunpack.c.l.b16 %v3757
        %v3976 = vunpack.c.l.b16 %v3758
        %v3977 = vunpack.c.l.b16 %v3759
        %v3978 = vunpack.c.l.b16 %v3760
        %v3979 = vunpack.c.l.b16 %v3761
        %v3980 = vunpack.c.l.b16 %v3762
        %v3981 = vunpack.c.l.b16 %v3763
        %v3982 = vunpack.c.l.b16 %v3764
        %v3983 = vunpack.c.l.b16 %v3765
        %v3984 = vunpack.c.l.b16 %v3766
        %v3985 = vunpack.c.l.b16 %v3767
        %v3986 = vunpack.c.l.b16 %v3768
        %v3987 = vunpack.c.l.b16 %v3769
        %v3988 = vunpack.c.l.b16 %v3770
        %v3989 = vunpack.c.l.b16 %v3771
        %v3990 = vunpack.c.l.b16 %v3772
        %v3991 = vpack.c.b16 %v3976, %v3975
        %v3992 = vpack.c.b16 %v3978, %v3977
        %v3993 = vpack.c.b16 %v3980, %v3979
        %v3994 = vpack.c.b16 %v3982, %v3981
        %v3995 = vpack.c.b16 %v3984, %v3983
        %v3996 = vpack.c.b16 %v3986, %v3985
        %v3997 = vpack.c.b16 %v3988, %v3987
        %v3998 = vpack.c.b16 %v3990, %v3989
        %4007 = vmatprep.subr.bf16.mxu0 0
        %4008 = vmatpush1.bf16.msra.mxu0 %v3991
        %4009 = vmatprep.subr.bf16.mxu0 0
        %4010 = vmatpush1.bf16.msra.mxu0 %v3992
        %4011 = vmatprep.subr.bf16.mxu0 0
        %4012 = vmatpush1.bf16.msra.mxu0 %v3993
        %4013 = vmatprep.subr.bf16.mxu0 0
        %4014 = vmatpush1.bf16.msra.mxu0 %v3994
        %4015 = vmatprep.subr.bf16.mxu0 0
        %4016 = vmatpush1.bf16.msra.mxu0 %v3995
        %4017 = vmatprep.subr.bf16.mxu0 0
        %4018 = vmatpush1.bf16.msra.mxu0 %v3996
        %4019 = vmatprep.subr.bf16.mxu0 0
        %4020 = vmatpush1.bf16.msra.mxu0 %v3997
        %4021 = vmatprep.subr.bf16.mxu0 0
        %4022 = vmatpush1.bf16.msra.mxu0 %v3998
        %4023 = vmatprep.subr.bf16.mxu0 0
        %4024 = vmatpush1.bf16.msra.mxu0 0
        %4025 = vmatprep.subr.bf16.mxu0 0
        %4026 = vmatpush1.bf16.msra.mxu0 0
        %4027 = vmatprep.subr.bf16.mxu0 0
        %4028 = vmatpush1.bf16.msra.mxu0 0
        %4029 = vmatprep.subr.bf16.mxu0 0
        %4030 = vmatpush1.bf16.msra.mxu0 0
        %4031 = vmatprep.subr.bf16.mxu0 0
        %4032 = vmatpush1.bf16.msra.mxu0 0
        %4033 = vmatprep.subr.bf16.mxu0 0
        %4034 = vmatpush1.bf16.msra.mxu0 0
        %4035 = vmatprep.subr.bf16.mxu0 0
        %4036 = vmatpush1.bf16.msra.mxu0 0
        %4037 = vmatprep.subr.bf16.mxu0 0
        %4038 = vmatpush1.bf16.msra.mxu0 0
        %4039 = vmatprep.mubr.bf16.mxu0 0
        %4040 = vmatmul.mubr.bf16.gmra.mrb[0].mxu0 %v3749
        %v4041 = vpop.f32.mrb[0].mxu0
        %v4042 = vadd.f32 %v3897, %v4041
        %v4043 = vpop.f32.mrb[0].mxu0
        %v4044 = vpop.f32.mrb[0].mxu0
        %v4045 = vadd.f32 %v3900, %v4044
        %v4046 = vpop.f32.mrb[0].mxu0
        %4047 = vmatprep.mubr.bf16.mxu0 0
        %4048 = vmatmul.mubr.bf16.gmra.mrb[0].mxu0 %v3750
        %v4049 = vpop.f32.mrb[0].mxu0
        %v4050 = vadd.f32 %v3905, %v4049
        %v4051 = vpop.f32.mrb[0].mxu0
        %v4052 = vpop.f32.mrb[0].mxu0
        %v4053 = vadd.f32 %v3908, %v4052
        %v4054 = vpop.f32.mrb[0].mxu0
        %4055 = vmatprep.mubr.bf16.mxu0 0
        %4056 = vmatmul.mubr.bf16.gmra.mrb[0].mxu0 %v3751
        %v4057 = vpop.f32.mrb[0].mxu0
        %v4058 = vadd.f32 %v3913, %v4057
        %v4059 = vpop.f32.mrb[0].mxu0
        %v4060 = vpop.f32.mrb[0].mxu0
        %v4061 = vadd.f32 %v3916, %v4060
        %v4062 = vpop.f32.mrb[0].mxu0
        %4063 = vmatprep.mubr.bf16.mxu0 0
        %4064 = vmatmul.mubr.bf16.gmra.mrb[0].mxu0 %v3752
        %v4065 = vpop.f32.mrb[0].mxu0
        %v4066 = vadd.f32 %v3921, %v4065
        %v4067 = vpop.f32.mrb[0].mxu0
        %v4068 = vpop.f32.mrb[0].mxu0
        %v4069 = vadd.f32 %v3924, %v4068
        %v4070 = vpop.f32.mrb[0].mxu0
        %4071 = vmatprep.mubr.bf16.mxu0 0
        %4072 = vmatmul.mubr.bf16.gmra.mrb[0].mxu0 %v3753
        %v4073 = vpop.f32.mrb[0].mxu0
        %v4074 = vadd.f32 %v3929, %v4073
        %v4075 = vpop.f32.mrb[0].mxu0
        %v4076 = vpop.f32.mrb[0].mxu0
        %v4077 = vadd.f32 %v3932, %v4076
        %v4078 = vpop.f32.mrb[0].mxu0
        %4079 = vmatprep.mubr.bf16.mxu0 0
        %4080 = vmatmul.mubr.bf16.gmra.mrb[0].mxu0 %v3754
        %v4081 = vpop.f32.mrb[0].mxu0
        %v4082 = vadd.f32 %v3937, %v4081
        %v4083 = vpop.f32.mrb[0].mxu0
        %v4084 = vpop.f32.mrb[0].mxu0
        %v4085 = vadd.f32 %v3940, %v4084
        %v4086 = vpop.f32.mrb[0].mxu0
        %4087 = vmatprep.mubr.bf16.mxu0 0
        %4088 = vmatmul.mubr.bf16.gmra.mrb[0].mxu0 %v3755
        %v4089 = vpop.f32.mrb[0].mxu0
        %v4090 = vadd.f32 %v3945, %v4089
        %v4091 = vpop.f32.mrb[0].mxu0
        %v4092 = vpop.f32.mrb[0].mxu0
        %v4093 = vadd.f32 %v3948, %v4092
        %v4094 = vpop.f32.mrb[0].mxu0
        %4095 = vmatprep.mubr.bf16.mxu0 0
        %4096 = vmatmul.mubr.bf16.gmra.mrb[0].mxu0 %v3756
        %v4097 = vpop.f32.mrb[0].mxu0
        %v4098 = vadd.f32 %v3953, %v4097
        %v4099 = vpop.f32.mrb[0].mxu0
        %v4100 = vpop.f32.mrb[0].mxu0
        %v4101 = vadd.f32 %v3956, %v4100
        %v4102 = vpop.f32.mrb[0].mxu0
        %4103 = vdwg.mxu0
        %v4104 = vld [vmem:[#allocation2 + $0x9] sm:$0xff]
        %v4105 = vld [vmem:[#allocation2 + $0x11] sm:$0xff]
        %v4106 = vld [vmem:[#allocation2 + $0x29] sm:$0xff]
        %v4107 = vld [vmem:[#allocation2 + $0x31] sm:$0xff]
        %v4108 = vld [vmem:[#allocation2 + $0x49] sm:$0xff]
        %v4109 = vld [vmem:[#allocation2 + $0x51] sm:$0xff]
        %v4110 = vld [vmem:[#allocation2 + $0x69] sm:$0xff]
        %v4111 = vld [vmem:[#allocation2 + $0x71] sm:$0xff]
        %v4112 = vld [vmem:[#allocation2 + $0x89] sm:$0xff]
        %v4113 = vld [vmem:[#allocation2 + $0x91] sm:$0xff]
        %v4114 = vld [vmem:[#allocation2 + $0xa9] sm:$0xff]
        %v4115 = vld [vmem:[#allocation2 + $0xb1] sm:$0xff]
        %v4116 = vld [vmem:[#allocation2 + $0xc9] sm:$0xff]
        %v4117 = vld [vmem:[#allocation2 + $0xd1] sm:$0xff]
        %v4118 = vld [vmem:[#allocation2 + $0xe9] sm:$0xff]
        %v4119 = vld [vmem:[#allocation2 + $0xf1] sm:$0xff]
        %v4120 = vpack.c.bf16 %v4105, %v4104
        %v4121 = vpack.c.bf16 %v4107, %v4106
        %v4122 = vpack.c.bf16 %v4109, %v4108
        %v4123 = vpack.c.bf16 %v4111, %v4110
        %v4124 = vpack.c.bf16 %v4113, %v4112
        %v4125 = vpack.c.bf16 %v4115, %v4114
        %v4126 = vpack.c.bf16 %v4117, %v4116
        %v4127 = vpack.c.bf16 %v4119, %v4118
        %s4128 = scalar_lea.vmem [#allocation8], 128
        %v4129 = vld [vmem:[%s4128] sm:$0xf]
        %v4130 = vld [vmem:[%s4128 + $0x4] sm:$0xf]
        %v4131 = vld [vmem:[%s4128 + $0x8] sm:$0xf]
        %v4132 = vld [vmem:[%s4128 + $0xc] sm:$0xf]
        %v4133 = vld [vmem:[%s4128 + $0x10] sm:$0xf]
        %v4134 = vld [vmem:[%s4128 + $0x14] sm:$0xf]
        %v4135 = vld [vmem:[%s4128 + $0x18] sm:$0xf]
        %v4136 = vld [vmem:[%s4128 + $0x1c] sm:$0xf]
        %v4137 = vld [vmem:[%s4128 + $0x20] sm:$0xf]
        %v4138 = vld [vmem:[%s4128 + $0x24] sm:$0xf]
        %v4139 = vld [vmem:[%s4128 + $0x28] sm:$0xf]
        %v4140 = vld [vmem:[%s4128 + $0x2c] sm:$0xf]
        %v4141 = vld [vmem:[%s4128 + $0x30] sm:$0xf]
        %v4142 = vld [vmem:[%s4128 + $0x34] sm:$0xf]
        %v4143 = vld [vmem:[%s4128 + $0x38] sm:$0xf]
        %v4144 = vld [vmem:[%s4128 + $0x3c] sm:$0xf]
        %v4161 = vunpack.c.l.b16 %v4129
        %v4162 = vunpack.c.l.b16 %v4130
        %v4163 = vunpack.c.l.b16 %v4131
        %v4164 = vunpack.c.l.b16 %v4132
        %v4165 = vunpack.c.l.b16 %v4133
        %v4166 = vunpack.c.l.b16 %v4134
        %v4167 = vunpack.c.l.b16 %v4135
        %v4168 = vunpack.c.l.b16 %v4136
        %v4169 = vunpack.c.l.b16 %v4137
        %v4170 = vunpack.c.l.b16 %v4138
        %v4171 = vunpack.c.l.b16 %v4139
        %v4172 = vunpack.c.l.b16 %v4140
        %v4173 = vunpack.c.l.b16 %v4141
        %v4174 = vunpack.c.l.b16 %v4142
        %v4175 = vunpack.c.l.b16 %v4143
        %v4176 = vunpack.c.l.b16 %v4144
        %v4177 = vpack.c.b16 %v4162, %v4161
        %v4178 = vpack.c.b16 %v4164, %v4163
        %v4179 = vpack.c.b16 %v4166, %v4165
        %v4180 = vpack.c.b16 %v4168, %v4167
        %v4181 = vpack.c.b16 %v4170, %v4169
        %v4182 = vpack.c.b16 %v4172, %v4171
        %v4183 = vpack.c.b16 %v4174, %v4173
        %v4184 = vpack.c.b16 %v4176, %v4175
        %4193 = vmatprep.subr.bf16.mxu0 0
        %4194 = vmatpush1.bf16.msra.mxu0 %v4177
        %4195 = vmatprep.subr.bf16.mxu0 0
        %4196 = vmatpush1.bf16.msra.mxu0 %v4178
        %4197 = vmatprep.subr.bf16.mxu0 0
        %4198 = vmatpush1.bf16.msra.mxu0 %v4179
        %4199 = vmatprep.subr.bf16.mxu0 0
        %4200 = vmatpush1.bf16.msra.mxu0 %v4180
        %4201 = vmatprep.subr.bf16.mxu0 0
        %4202 = vmatpush1.bf16.msra.mxu0 %v4181
        %4203 = vmatprep.subr.bf16.mxu0 0
        %4204 = vmatpush1.bf16.msra.mxu0 %v4182
        %4205 = vmatprep.subr.bf16.mxu0 0
        %4206 = vmatpush1.bf16.msra.mxu0 %v4183
        %4207 = vmatprep.subr.bf16.mxu0 0
        %4208 = vmatpush1.bf16.msra.mxu0 %v4184
        %4209 = vmatprep.subr.bf16.mxu0 0
        %4210 = vmatpush1.bf16.msra.mxu0 0
        %4211 = vmatprep.subr.bf16.mxu0 0
        %4212 = vmatpush1.bf16.msra.mxu0 0
        %4213 = vmatprep.subr.bf16.mxu0 0
        %4214 = vmatpush1.bf16.msra.mxu0 0
        %4215 = vmatprep.subr.bf16.mxu0 0
        %4216 = vmatpush1.bf16.msra.mxu0 0
        %4217 = vmatprep.subr.bf16.mxu0 0
        %4218 = vmatpush1.bf16.msra.mxu0 0
        %4219 = vmatprep.subr.bf16.mxu0 0
        %4220 = vmatpush1.bf16.msra.mxu0 0
        %4221 = vmatprep.subr.bf16.mxu0 0
        %4222 = vmatpush1.bf16.msra.mxu0 0
        %4223 = vmatprep.subr.bf16.mxu0 0
        %4224 = vmatpush1.bf16.msra.mxu0 0
        %4225 = vmatprep.mubr.bf16.mxu0 0
        %4226 = vmatmul.mubr.bf16.gmra.mrb[0].mxu0 %v4120
        %v4227 = vpop.f32.mrb[0].mxu0
        %v4228 = vadd.f32 0.0, %v4227
        %v4229 = vpop.f32.mrb[0].mxu0
        %v4230 = vpop.f32.mrb[0].mxu0
        %v4231 = vadd.f32 0.0, %v4230
        %v4232 = vpop.f32.mrb[0].mxu0
        %4233 = vmatprep.mubr.bf16.mxu0 0
        %4234 = vmatmul.mubr.bf16.gmra.mrb[0].mxu0 %v4121
        %v4235 = vpop.f32.mrb[0].mxu0
        %v4236 = vadd.f32 0.0, %v4235
        %v4237 = vpop.f32.mrb[0].mxu0
        %v4238 = vpop.f32.mrb[0].mxu0
        %v4239 = vadd.f32 0.0, %v4238
        %v4240 = vpop.f32.mrb[0].mxu0
        %4241 = vmatprep.mubr.bf16.mxu0 0
        %4242 = vmatmul.mubr.bf16.gmra.mrb[0].mxu0 %v4122
        %v4243 = vpop.f32.mrb[0].mxu0
        %v4244 = vadd.f32 0.0, %v4243
        %v4245 = vpop.f32.mrb[0].mxu0
        %v4246 = vpop.f32.mrb[0].mxu0
        %v4247 = vadd.f32 0.0, %v4246
        %v4248 = vpop.f32.mrb[0].mxu0
        %4249 = vmatprep.mubr.bf16.mxu0 0
        %4250 = vmatmul.mubr.bf16.gmra.mrb[0].mxu0 %v4123
        %v4251 = vpop.f32.mrb[0].mxu0
        %v4252 = vadd.f32 0.0, %v4251
        %v4253 = vpop.f32.mrb[0].mxu0
        %v4254 = vpop.f32.mrb[0].mxu0
        %v4255 = vadd.f32 0.0, %v4254
        %v4256 = vpop.f32.mrb[0].mxu0
        %4257 = vmatprep.mubr.bf16.mxu0 0
        %4258 = vmatmul.mubr.bf16.gmra.mrb[0].mxu0 %v4124
        %v4259 = vpop.f32.mrb[0].mxu0
        %v4260 = vadd.f32 0.0, %v4259
        %v4261 = vpop.f32.mrb[0].mxu0
        %v4262 = vpop.f32.mrb[0].mxu0
        %v4263 = vadd.f32 0.0, %v4262
        %v4264 = vpop.f32.mrb[0].mxu0
        %4265 = vmatprep.mubr.bf16.mxu0 0
        %4266 = vmatmul.mubr.bf16.gmra.mrb[0].mxu0 %v4125
        %v4267 = vpop.f32.mrb[0].mxu0
        %v4268 = vadd.f32 0.0, %v4267
        %v4269 = vpop.f32.mrb[0].mxu0
        %v4270 = vpop.f32.mrb[0].mxu0
        %v4271 = vadd.f32 0.0, %v4270
        %v4272 = vpop.f32.mrb[0].mxu0
        %4273 = vmatprep.mubr.bf16.mxu0 0
        %4274 = vmatmul.mubr.bf16.gmra.mrb[0].mxu0 %v4126
        %v4275 = vpop.f32.mrb[0].mxu0
        %v4276 = vadd.f32 0.0, %v4275
        %v4277 = vpop.f32.mrb[0].mxu0
        %v4278 = vpop.f32.mrb[0].mxu0
        %v4279 = vadd.f32 0.0, %v4278
        %v4280 = vpop.f32.mrb[0].mxu0
        %4281 = vmatprep.mubr.bf16.mxu0 0
        %4282 = vmatmul.mubr.bf16.gmra.mrb[0].mxu0 %v4127
        %v4283 = vpop.f32.mrb[0].mxu0
        %v4284 = vadd.f32 0.0, %v4283
        %v4285 = vpop.f32.mrb[0].mxu0
        %v4286 = vpop.f32.mrb[0].mxu0
        %v4287 = vadd.f32 0.0, %v4286
        %v4288 = vpop.f32.mrb[0].mxu0
        %4289 = vdwg.mxu0
        %v4290 = vadd.f32 %v4042, %v4228
        %v4291 = vadd.f32 %v4045, %v4231
        %v4292 = vadd.f32 %v4050, %v4236
        %v4293 = vadd.f32 %v4053, %v4239
        %v4294 = vadd.f32 %v4058, %v4244
        %v4295 = vadd.f32 %v4061, %v4247
        %v4296 = vadd.f32 %v4066, %v4252
        %v4297 = vadd.f32 %v4069, %v4255
        %v4298 = vadd.f32 %v4074, %v4260
        %v4299 = vadd.f32 %v4077, %v4263
        %v4300 = vadd.f32 %v4082, %v4268
        %v4301 = vadd.f32 %v4085, %v4271
        %v4302 = vadd.f32 %v4090, %v4276
        %v4303 = vadd.f32 %v4093, %v4279
        %v4304 = vadd.f32 %v4098, %v4284
        %v4305 = vadd.f32 %v4101, %v4287
        %s4306 = scalar_lea.vmem [#allocation2], 32
        %v4307 = vld [vmem:[%s4306 + $0x7] sm:$0xff]
        %v4308 = vld [vmem:[%s4306 + $0xf] sm:$0xff]
        %v4309 = vld [vmem:[%s4306 + $0x27] sm:$0xff]
        %v4310 = vld [vmem:[%s4306 + $0x2f] sm:$0xff]
        %v4311 = vld [vmem:[%s4306 + $0x47] sm:$0xff]
        %v4312 = vld [vmem:[%s4306 + $0x4f] sm:$0xff]
        %v4313 = vld [vmem:[%s4306 + $0x67] sm:$0xff]
        %v4314 = vld [vmem:[%s4306 + $0x6f] sm:$0xff]
        %v4315 = vld [vmem:[%s4306 + $0x87] sm:$0xff]
        %v4316 = vld [vmem:[%s4306 + $0x8f] sm:$0xff]
        %v4317 = vld [vmem:[%s4306 + $0xa7] sm:$0xff]
        %v4318 = vld [vmem:[%s4306 + $0xaf] sm:$0xff]
        %v4319 = vld [vmem:[%s4306 + $0xc7] sm:$0xff]
        %v4320 = vld [vmem:[%s4306 + $0xcf] sm:$0xff]
        %v4321 = vld [vmem:[%s4306 + $0xe7] sm:$0xff]
        %v4322 = vld [vmem:[%s4306 + $0xef] sm:$0xff]
        %v4323 = vpack.c.bf16 %v4308, %v4307
        %v4324 = vpack.c.bf16 %v4310, %v4309
        %v4325 = vpack.c.bf16 %v4312, %v4311
        %v4326 = vpack.c.bf16 %v4314, %v4313
        %v4327 = vpack.c.bf16 %v4316, %v4315
        %v4328 = vpack.c.bf16 %v4318, %v4317
        %v4329 = vpack.c.bf16 %v4320, %v4319
        %v4330 = vpack.c.bf16 %v4322, %v4321
        %s4331 = scalar_lea.vmem [#allocation8], 192
        %v4332 = vld [vmem:[%s4331] sm:$0xf]
        %v4333 = vld [vmem:[%s4331 + $0x4] sm:$0xf]
        %v4334 = vld [vmem:[%s4331 + $0x8] sm:$0xf]
        %v4335 = vld [vmem:[%s4331 + $0xc] sm:$0xf]
        %v4336 = vld [vmem:[%s4331 + $0x10] sm:$0xf]
        %v4337 = vld [vmem:[%s4331 + $0x14] sm:$0xf]
        %v4338 = vld [vmem:[%s4331 + $0x18] sm:$0xf]
        %v4339 = vld [vmem:[%s4331 + $0x1c] sm:$0xf]
        %v4340 = vld [vmem:[%s4331 + $0x20] sm:$0xf]
        %v4341 = vld [vmem:[%s4331 + $0x24] sm:$0xf]
        %v4342 = vld [vmem:[%s4331 + $0x28] sm:$0xf]
        %v4343 = vld [vmem:[%s4331 + $0x2c] sm:$0xf]
        %v4344 = vld [vmem:[%s4331 + $0x30] sm:$0xf]
        %v4345 = vld [vmem:[%s4331 + $0x34] sm:$0xf]
        %v4346 = vld [vmem:[%s4331 + $0x38] sm:$0xf]
        %v4347 = vld [vmem:[%s4331 + $0x3c] sm:$0xf]
        %v4364 = vunpack.c.l.b16 %v4332
        %v4365 = vunpack.c.l.b16 %v4333
        %v4366 = vunpack.c.l.b16 %v4334
        %v4367 = vunpack.c.l.b16 %v4335
        %v4368 = vunpack.c.l.b16 %v4336
        %v4369 = vunpack.c.l.b16 %v4337
        %v4370 = vunpack.c.l.b16 %v4338
        %v4371 = vunpack.c.l.b16 %v4339
        %v4372 = vunpack.c.l.b16 %v4340
        %v4373 = vunpack.c.l.b16 %v4341
        %v4374 = vunpack.c.l.b16 %v4342
        %v4375 = vunpack.c.l.b16 %v4343
        %v4376 = vunpack.c.l.b16 %v4344
        %v4377 = vunpack.c.l.b16 %v4345
        %v4378 = vunpack.c.l.b16 %v4346
        %v4379 = vunpack.c.l.b16 %v4347
        %v4380 = vpack.c.b16 %v4365, %v4364
        %v4381 = vpack.c.b16 %v4367, %v4366
        %v4382 = vpack.c.b16 %v4369, %v4368
        %v4383 = vpack.c.b16 %v4371, %v4370
        %v4384 = vpack.c.b16 %v4373, %v4372
        %v4385 = vpack.c.b16 %v4375, %v4374
        %v4386 = vpack.c.b16 %v4377, %v4376
        %v4387 = vpack.c.b16 %v4379, %v4378
        %4396 = vmatprep.subr.bf16.mxu0 0
        %4397 = vmatpush1.bf16.msra.mxu0 %v4380
        %4398 = vmatprep.subr.bf16.mxu0 0
        %4399 = vmatpush1.bf16.msra.mxu0 %v4381
        %4400 = vmatprep.subr.bf16.mxu0 0
        %4401 = vmatpush1.bf16.msra.mxu0 %v4382
        %4402 = vmatprep.subr.bf16.mxu0 0
        %4403 = vmatpush1.bf16.msra.mxu0 %v4383
        %4404 = vmatprep.subr.bf16.mxu0 0
        %4405 = vmatpush1.bf16.msra.mxu0 %v4384
        %4406 = vmatprep.subr.bf16.mxu0 0
        %4407 = vmatpush1.bf16.msra.mxu0 %v4385
        %4408 = vmatprep.subr.bf16.mxu0 0
        %4409 = vmatpush1.bf16.msra.mxu0 %v4386
        %4410 = vmatprep.subr.bf16.mxu0 0
        %4411 = vmatpush1.bf16.msra.mxu0 %v4387
        %4412 = vmatprep.subr.bf16.mxu0 0
        %4413 = vmatpush1.bf16.msra.mxu0 0
        %4414 = vmatprep.subr.bf16.mxu0 0
        %4415 = vmatpush1.bf16.msra.mxu0 0
        %4416 = vmatprep.subr.bf16.mxu0 0
        %4417 = vmatpush1.bf16.msra.mxu0 0
        %4418 = vmatprep.subr.bf16.mxu0 0
        %4419 = vmatpush1.bf16.msra.mxu0 0
        %4420 = vmatprep.subr.bf16.mxu0 0
        %4421 = vmatpush1.bf16.msra.mxu0 0
        %4422 = vmatprep.subr.bf16.mxu0 0
        %4423 = vmatpush1.bf16.msra.mxu0 0
        %4424 = vmatprep.subr.bf16.mxu0 0
        %4425 = vmatpush1.bf16.msra.mxu0 0
        %4426 = vmatprep.subr.bf16.mxu0 0
        %4427 = vmatpush1.bf16.msra.mxu0 0
        %4428 = vmatprep.mubr.bf16.mxu0 0
        %4429 = vmatmul.mubr.bf16.gmra.mrb[0].mxu0 %v4323
        %v4430 = vpop.f32.mrb[0].mxu0
        %v4431 = vadd.f32 0.0, %v4430
        %v4432 = vpop.f32.mrb[0].mxu0
        %v4433 = vpop.f32.mrb[0].mxu0
        %v4434 = vadd.f32 0.0, %v4433
        %v4435 = vpop.f32.mrb[0].mxu0
        %4436 = vmatprep.mubr.bf16.mxu0 0
        %4437 = vmatmul.mubr.bf16.gmra.mrb[0].mxu0 %v4324
        %v4438 = vpop.f32.mrb[0].mxu0
        %v4439 = vadd.f32 0.0, %v4438
        %v4440 = vpop.f32.mrb[0].mxu0
        %v4441 = vpop.f32.mrb[0].mxu0
        %v4442 = vadd.f32 0.0, %v4441
        %v4443 = vpop.f32.mrb[0].mxu0
        %4444 = vmatprep.mubr.bf16.mxu0 0
        %4445 = vmatmul.mubr.bf16.gmra.mrb[0].mxu0 %v4325
        %v4446 = vpop.f32.mrb[0].mxu0
        %v4447 = vadd.f32 0.0, %v4446
        %v4448 = vpop.f32.mrb[0].mxu0
        %v4449 = vpop.f32.mrb[0].mxu0
        %v4450 = vadd.f32 0.0, %v4449
        %v4451 = vpop.f32.mrb[0].mxu0
        %4452 = vmatprep.mubr.bf16.mxu0 0
        %4453 = vmatmul.mubr.bf16.gmra.mrb[0].mxu0 %v4326
        %v4454 = vpop.f32.mrb[0].mxu0
        %v4455 = vadd.f32 0.0, %v4454
        %v4456 = vpop.f32.mrb[0].mxu0
        %v4457 = vpop.f32.mrb[0].mxu0
        %v4458 = vadd.f32 0.0, %v4457
        %v4459 = vpop.f32.mrb[0].mxu0
        %4460 = vmatprep.mubr.bf16.mxu0 0
        %4461 = vmatmul.mubr.bf16.gmra.mrb[0].mxu0 %v4327
        %v4462 = vpop.f32.mrb[0].mxu0
        %v4463 = vadd.f32 0.0, %v4462
        %v4464 = vpop.f32.mrb[0].mxu0
        %v4465 = vpop.f32.mrb[0].mxu0
        %v4466 = vadd.f32 0.0, %v4465
        %v4467 = vpop.f32.mrb[0].mxu0
        %4468 = vmatprep.mubr.bf16.mxu0 0
        %4469 = vmatmul.mubr.bf16.gmra.mrb[0].mxu0 %v4328
        %v4470 = vpop.f32.mrb[0].mxu0
        %v4471 = vadd.f32 0.0, %v4470
        %v4472 = vpop.f32.mrb[0].mxu0
        %v4473 = vpop.f32.mrb[0].mxu0
        %v4474 = vadd.f32 0.0, %v4473
        %v4475 = vpop.f32.mrb[0].mxu0
        %4476 = vmatprep.mubr.bf16.mxu0 0
        %4477 = vmatmul.mubr.bf16.gmra.mrb[0].mxu0 %v4329
        %v4478 = vpop.f32.mrb[0].mxu0
        %v4479 = vadd.f32 0.0, %v4478
        %v4480 = vpop.f32.mrb[0].mxu0
        %v4481 = vpop.f32.mrb[0].mxu0
        %v4482 = vadd.f32 0.0, %v4481
        %v4483 = vpop.f32.mrb[0].mxu0
        %4484 = vmatprep.mubr.bf16.mxu0 0
        %4485 = vmatmul.mubr.bf16.gmra.mrb[0].mxu0 %v4330
        %v4486 = vpop.f32.mrb[0].mxu0
        %v4487 = vadd.f32 0.0, %v4486
        %v4488 = vpop.f32.mrb[0].mxu0
        %v4489 = vpop.f32.mrb[0].mxu0
        %v4490 = vadd.f32 0.0, %v4489
        %v4491 = vpop.f32.mrb[0].mxu0
        %4492 = vdwg.mxu0
        %v4493 = vadd.f32 %v4290, %v4431
        %v4494 = vadd.f32 %v4291, %v4434
        %v4495 = vadd.f32 %v4292, %v4439
        %v4496 = vadd.f32 %v4293, %v4442
        %v4497 = vadd.f32 %v4294, %v4447
        %v4498 = vadd.f32 %v4295, %v4450
        %v4499 = vadd.f32 %v4296, %v4455
        %v4500 = vadd.f32 %v4297, %v4458
        %v4501 = vadd.f32 %v4298, %v4463
        %v4502 = vadd.f32 %v4299, %v4466
        %v4503 = vadd.f32 %v4300, %v4471
        %v4504 = vadd.f32 %v4301, %v4474
        %v4505 = vadd.f32 %v4302, %v4479
        %v4506 = vadd.f32 %v4303, %v4482
        %v4507 = vadd.f32 %v4304, %v4487
        %v4508 = vadd.f32 %v4305, %v4490
        %v4509 = vld [vmem:[%s4306 + $0x8] sm:$0xff]
        %v4510 = vld [vmem:[%s4306 + $0x10] sm:$0xff]
        %v4511 = vld [vmem:[%s4306 + $0x28] sm:$0xff]
        %v4512 = vld [vmem:[%s4306 + $0x30] sm:$0xff]
        %v4513 = vld [vmem:[%s4306 + $0x48] sm:$0xff]
        %v4514 = vld [vmem:[%s4306 + $0x50] sm:$0xff]
        %v4515 = vld [vmem:[%s4306 + $0x68] sm:$0xff]
        %v4516 = vld [vmem:[%s4306 + $0x70] sm:$0xff]
        %v4517 = vld [vmem:[%s4306 + $0x88] sm:$0xff]
        %v4518 = vld [vmem:[%s4306 + $0x90] sm:$0xff]
        %v4519 = vld [vmem:[%s4306 + $0xa8] sm:$0xff]
        %v4520 = vld [vmem:[%s4306 + $0xb0] sm:$0xff]
        %v4521 = vld [vmem:[%s4306 + $0xc8] sm:$0xff]
        %v4522 = vld [vmem:[%s4306 + $0xd0] sm:$0xff]
        %v4523 = vld [vmem:[%s4306 + $0xe8] sm:$0xff]
        %v4524 = vld [vmem:[%s4306 + $0xf0] sm:$0xff]
        %v4525 = vpack.c.bf16 %v4510, %v4509
        %v4526 = vpack.c.bf16 %v4512, %v4511
        %v4527 = vpack.c.bf16 %v4514, %v4513
        %v4528 = vpack.c.bf16 %v4516, %v4515
        %v4529 = vpack.c.bf16 %v4518, %v4517
        %v4530 = vpack.c.bf16 %v4520, %v4519
        %v4531 = vpack.c.bf16 %v4522, %v4521
        %v4532 = vpack.c.bf16 %v4524, %v4523
        %s4533 = scalar_lea.vmem [#allocation8], 256
        %v4534 = vld [vmem:[%s4533] sm:$0xf]
        %v4535 = vld [vmem:[%s4533 + $0x4] sm:$0xf]
        %v4536 = vld [vmem:[%s4533 + $0x8] sm:$0xf]
        %v4537 = vld [vmem:[%s4533 + $0xc] sm:$0xf]
        %v4538 = vld [vmem:[%s4533 + $0x10] sm:$0xf]
        %v4539 = vld [vmem:[%s4533 + $0x14] sm:$0xf]
        %v4540 = vld [vmem:[%s4533 + $0x18] sm:$0xf]
        %v4541 = vld [vmem:[%s4533 + $0x1c] sm:$0xf]
        %v4542 = vld [vmem:[%s4533 + $0x20] sm:$0xf]
        %v4543 = vld [vmem:[%s4533 + $0x24] sm:$0xf]
        %v4544 = vld [vmem:[%s4533 + $0x28] sm:$0xf]
        %v4545 = vld [vmem:[%s4533 + $0x2c] sm:$0xf]
        %v4546 = vld [vmem:[%s4533 + $0x30] sm:$0xf]
        %v4547 = vld [vmem:[%s4533 + $0x34] sm:$0xf]
        %v4548 = vld [vmem:[%s4533 + $0x38] sm:$0xf]
        %v4549 = vld [vmem:[%s4533 + $0x3c] sm:$0xf]
        %v4566 = vunpack.c.l.b16 %v4534
        %v4567 = vunpack.c.l.b16 %v4535
        %v4568 = vunpack.c.l.b16 %v4536
        %v4569 = vunpack.c.l.b16 %v4537
        %v4570 = vunpack.c.l.b16 %v4538
        %v4571 = vunpack.c.l.b16 %v4539
        %v4572 = vunpack.c.l.b16 %v4540
        %v4573 = vunpack.c.l.b16 %v4541
        %v4574 = vunpack.c.l.b16 %v4542
        %v4575 = vunpack.c.l.b16 %v4543
        %v4576 = vunpack.c.l.b16 %v4544
        %v4577 = vunpack.c.l.b16 %v4545
        %v4578 = vunpack.c.l.b16 %v4546
        %v4579 = vunpack.c.l.b16 %v4547
        %v4580 = vunpack.c.l.b16 %v4548
        %v4581 = vunpack.c.l.b16 %v4549
        %v4582 = vpack.c.b16 %v4567, %v4566
        %v4583 = vpack.c.b16 %v4569, %v4568
        %v4584 = vpack.c.b16 %v4571, %v4570
        %v4585 = vpack.c.b16 %v4573, %v4572
        %v4586 = vpack.c.b16 %v4575, %v4574
        %v4587 = vpack.c.b16 %v4577, %v4576
        %v4588 = vpack.c.b16 %v4579, %v4578
        %v4589 = vpack.c.b16 %v4581, %v4580
        %4598 = vmatprep.subr.bf16.mxu0 0
        %4599 = vmatpush1.bf16.msra.mxu0 %v4582
        %4600 = vmatprep.subr.bf16.mxu0 0
        %4601 = vmatpush1.bf16.msra.mxu0 %v4583
        %4602 = vmatprep.subr.bf16.mxu0 0
        %4603 = vmatpush1.bf16.msra.mxu0 %v4584
        %4604 = vmatprep.subr.bf16.mxu0 0
        %4605 = vmatpush1.bf16.msra.mxu0 %v4585
        %4606 = vmatprep.subr.bf16.mxu0 0
        %4607 = vmatpush1.bf16.msra.mxu0 %v4586
        %4608 = vmatprep.subr.bf16.mxu0 0
        %4609 = vmatpush1.bf16.msra.mxu0 %v4587
        %4610 = vmatprep.subr.bf16.mxu0 0
        %4611 = vmatpush1.bf16.msra.mxu0 %v4588
        %4612 = vmatprep.subr.bf16.mxu0 0
        %4613 = vmatpush1.bf16.msra.mxu0 %v4589
        %4614 = vmatprep.subr.bf16.mxu0 0
        %4615 = vmatpush1.bf16.msra.mxu0 0
        %4616 = vmatprep.subr.bf16.mxu0 0
        %4617 = vmatpush1.bf16.msra.mxu0 0
        %4618 = vmatprep.subr.bf16.mxu0 0
        %4619 = vmatpush1.bf16.msra.mxu0 0
        %4620 = vmatprep.subr.bf16.mxu0 0
        %4621 = vmatpush1.bf16.msra.mxu0 0
        %4622 = vmatprep.subr.bf16.mxu0 0
        %4623 = vmatpush1.bf16.msra.mxu0 0
        %4624 = vmatprep.subr.bf16.mxu0 0
        %4625 = vmatpush1.bf16.msra.mxu0 0
        %4626 = vmatprep.subr.bf16.mxu0 0
        %4627 = vmatpush1.bf16.msra.mxu0 0
        %4628 = vmatprep.subr.bf16.mxu0 0
        %4629 = vmatpush1.bf16.msra.mxu0 0
        %4630 = vmatprep.mubr.bf16.mxu0 0
        %4631 = vmatmul.mubr.bf16.gmra.mrb[0].mxu0 %v4525
        %v4632 = vpop.f32.mrb[0].mxu0
        %v4633 = vadd.f32 0.0, %v4632
        %v4634 = vpop.f32.mrb[0].mxu0
        %v4635 = vpop.f32.mrb[0].mxu0
        %v4636 = vadd.f32 0.0, %v4635
        %v4637 = vpop.f32.mrb[0].mxu0
        %4638 = vmatprep.mubr.bf16.mxu0 0
        %4639 = vmatmul.mubr.bf16.gmra.mrb[0].mxu0 %v4526
        %v4640 = vpop.f32.mrb[0].mxu0
        %v4641 = vadd.f32 0.0, %v4640
        %v4642 = vpop.f32.mrb[0].mxu0
        %v4643 = vpop.f32.mrb[0].mxu0
        %v4644 = vadd.f32 0.0, %v4643
        %v4645 = vpop.f32.mrb[0].mxu0
        %4646 = vmatprep.mubr.bf16.mxu0 0
        %4647 = vmatmul.mubr.bf16.gmra.mrb[0].mxu0 %v4527
        %v4648 = vpop.f32.mrb[0].mxu0
        %v4649 = vadd.f32 0.0, %v4648
        %v4650 = vpop.f32.mrb[0].mxu0
        %v4651 = vpop.f32.mrb[0].mxu0
        %v4652 = vadd.f32 0.0, %v4651
        %v4653 = vpop.f32.mrb[0].mxu0
        %4654 = vmatprep.mubr.bf16.mxu0 0
        %4655 = vmatmul.mubr.bf16.gmra.mrb[0].mxu0 %v4528
        %v4656 = vpop.f32.mrb[0].mxu0
        %v4657 = vadd.f32 0.0, %v4656
        %v4658 = vpop.f32.mrb[0].mxu0
        %v4659 = vpop.f32.mrb[0].mxu0
        %v4660 = vadd.f32 0.0, %v4659
        %v4661 = vpop.f32.mrb[0].mxu0
        %4662 = vmatprep.mubr.bf16.mxu0 0
        %4663 = vmatmul.mubr.bf16.gmra.mrb[0].mxu0 %v4529
        %v4664 = vpop.f32.mrb[0].mxu0
        %v4665 = vadd.f32 0.0, %v4664
        %v4666 = vpop.f32.mrb[0].mxu0
        %v4667 = vpop.f32.mrb[0].mxu0
        %v4668 = vadd.f32 0.0, %v4667
        %v4669 = vpop.f32.mrb[0].mxu0
        %4670 = vmatprep.mubr.bf16.mxu0 0
        %4671 = vmatmul.mubr.bf16.gmra.mrb[0].mxu0 %v4530
        %v4672 = vpop.f32.mrb[0].mxu0
        %v4673 = vadd.f32 0.0, %v4672
        %v4674 = vpop.f32.mrb[0].mxu0
        %v4675 = vpop.f32.mrb[0].mxu0
        %v4676 = vadd.f32 0.0, %v4675
        %v4677 = vpop.f32.mrb[0].mxu0
        %4678 = vmatprep.mubr.bf16.mxu0 0
        %4679 = vmatmul.mubr.bf16.gmra.mrb[0].mxu0 %v4531
        %v4680 = vpop.f32.mrb[0].mxu0
        %v4681 = vadd.f32 0.0, %v4680
        %v4682 = vpop.f32.mrb[0].mxu0
        %v4683 = vpop.f32.mrb[0].mxu0
        %v4684 = vadd.f32 0.0, %v4683
        %v4685 = vpop.f32.mrb[0].mxu0
        %4686 = vmatprep.mubr.bf16.mxu0 0
        %4687 = vmatmul.mubr.bf16.gmra.mrb[0].mxu0 %v4532
        %v4688 = vpop.f32.mrb[0].mxu0
        %v4689 = vadd.f32 0.0, %v4688
        %v4690 = vpop.f32.mrb[0].mxu0
        %v4691 = vpop.f32.mrb[0].mxu0
        %v4692 = vadd.f32 0.0, %v4691
        %v4693 = vpop.f32.mrb[0].mxu0
        %4694 = vdwg.mxu0
        %v4695 = vadd.f32 %v4493, %v4633
        %v4696 = vadd.f32 %v4494, %v4636
        %v4697 = vadd.f32 %v4495, %v4641
        %v4698 = vadd.f32 %v4496, %v4644
        %v4699 = vadd.f32 %v4497, %v4649
        %v4700 = vadd.f32 %v4498, %v4652
        %v4701 = vadd.f32 %v4499, %v4657
        %v4702 = vadd.f32 %v4500, %v4660
        %v4703 = vadd.f32 %v4501, %v4665
        %v4704 = vadd.f32 %v4502, %v4668
        %v4705 = vadd.f32 %v4503, %v4673
        %v4706 = vadd.f32 %v4504, %v4676
        %v4707 = vadd.f32 %v4505, %v4681
        %v4708 = vadd.f32 %v4506, %v4684
        %v4709 = vadd.f32 %v4507, %v4689
        %v4710 = vadd.f32 %v4508, %v4692
        %v4711 = vld [vmem:[%s4306 + $0x9] sm:$0xff]
        %v4712 = vld [vmem:[%s4306 + $0x11] sm:$0xff]
        %v4713 = vld [vmem:[%s4306 + $0x29] sm:$0xff]
        %v4714 = vld [vmem:[%s4306 + $0x31] sm:$0xff]
        %v4715 = vld [vmem:[%s4306 + $0x49] sm:$0xff]
        %v4716 = vld [vmem:[%s4306 + $0x51] sm:$0xff]
        %v4717 = vld [vmem:[%s4306 + $0x69] sm:$0xff]
        %v4718 = vld [vmem:[%s4306 + $0x71] sm:$0xff]
        %v4719 = vld [vmem:[%s4306 + $0x89] sm:$0xff]
        %v4720 = vld [vmem:[%s4306 + $0x91] sm:$0xff]
        %v4721 = vld [vmem:[%s4306 + $0xa9] sm:$0xff]
        %v4722 = vld [vmem:[%s4306 + $0xb1] sm:$0xff]
        %v4723 = vld [vmem:[%s4306 + $0xc9] sm:$0xff]
        %v4724 = vld [vmem:[%s4306 + $0xd1] sm:$0xff]
        %v4725 = vld [vmem:[%s4306 + $0xe9] sm:$0xff]
        %v4726 = vld [vmem:[%s4306 + $0xf1] sm:$0xff]
        %v4727 = vpack.c.bf16 %v4712, %v4711
        %v4728 = vpack.c.bf16 %v4714, %v4713
        %v4729 = vpack.c.bf16 %v4716, %v4715
        %v4730 = vpack.c.bf16 %v4718, %v4717
        %v4731 = vpack.c.bf16 %v4720, %v4719
        %v4732 = vpack.c.bf16 %v4722, %v4721
        %v4733 = vpack.c.bf16 %v4724, %v4723
        %v4734 = vpack.c.bf16 %v4726, %v4725
        %s4735 = scalar_lea.vmem [#allocation8], 320
        %v4736 = vld [vmem:[%s4735] sm:$0xf]
        %v4737 = vld [vmem:[%s4735 + $0x4] sm:$0xf]
        %v4738 = vld [vmem:[%s4735 + $0x8] sm:$0xf]
        %v4739 = vld [vmem:[%s4735 + $0xc] sm:$0xf]
        %v4740 = vld [vmem:[%s4735 + $0x10] sm:$0xf]
        %v4741 = vld [vmem:[%s4735 + $0x14] sm:$0xf]
        %v4742 = vld [vmem:[%s4735 + $0x18] sm:$0xf]
        %v4743 = vld [vmem:[%s4735 + $0x1c] sm:$0xf]
        %v4744 = vld [vmem:[%s4735 + $0x20] sm:$0xf]
        %v4745 = vld [vmem:[%s4735 + $0x24] sm:$0xf]
        %v4746 = vld [vmem:[%s4735 + $0x28] sm:$0xf]
        %v4747 = vld [vmem:[%s4735 + $0x2c] sm:$0xf]
        %v4748 = vld [vmem:[%s4735 + $0x30] sm:$0xf]
        %v4749 = vld [vmem:[%s4735 + $0x34] sm:$0xf]
        %v4750 = vld [vmem:[%s4735 + $0x38] sm:$0xf]
        %v4751 = vld [vmem:[%s4735 + $0x3c] sm:$0xf]
        %v4768 = vunpack.c.l.b16 %v4736
        %v4769 = vunpack.c.l.b16 %v4737
        %v4770 = vunpack.c.l.b16 %v4738
        %v4771 = vunpack.c.l.b16 %v4739
        %v4772 = vunpack.c.l.b16 %v4740
        %v4773 = vunpack.c.l.b16 %v4741
        %v4774 = vunpack.c.l.b16 %v4742
        %v4775 = vunpack.c.l.b16 %v4743
        %v4776 = vunpack.c.l.b16 %v4744
        %v4777 = vunpack.c.l.b16 %v4745
        %v4778 = vunpack.c.l.b16 %v4746
        %v4779 = vunpack.c.l.b16 %v4747
        %v4780 = vunpack.c.l.b16 %v4748
        %v4781 = vunpack.c.l.b16 %v4749
        %v4782 = vunpack.c.l.b16 %v4750
        %v4783 = vunpack.c.l.b16 %v4751
        %v4784 = vpack.c.b16 %v4769, %v4768
        %v4785 = vpack.c.b16 %v4771, %v4770
        %v4786 = vpack.c.b16 %v4773, %v4772
        %v4787 = vpack.c.b16 %v4775, %v4774
        %v4788 = vpack.c.b16 %v4777, %v4776
        %v4789 = vpack.c.b16 %v4779, %v4778
        %v4790 = vpack.c.b16 %v4781, %v4780
        %v4791 = vpack.c.b16 %v4783, %v4782
        %4800 = vmatprep.subr.bf16.mxu0 0
        %4801 = vmatpush1.bf16.msra.mxu0 %v4784
        %4802 = vmatprep.subr.bf16.mxu0 0
        %4803 = vmatpush1.bf16.msra.mxu0 %v4785
        %4804 = vmatprep.subr.bf16.mxu0 0
        %4805 = vmatpush1.bf16.msra.mxu0 %v4786
        %4806 = vmatprep.subr.bf16.mxu0 0
        %4807 = vmatpush1.bf16.msra.mxu0 %v4787
        %4808 = vmatprep.subr.bf16.mxu0 0
        %4809 = vmatpush1.bf16.msra.mxu0 %v4788
        %4810 = vmatprep.subr.bf16.mxu0 0
        %4811 = vmatpush1.bf16.msra.mxu0 %v4789
        %4812 = vmatprep.subr.bf16.mxu0 0
        %4813 = vmatpush1.bf16.msra.mxu0 %v4790
        %4814 = vmatprep.subr.bf16.mxu0 0
        %4815 = vmatpush1.bf16.msra.mxu0 %v4791
        %4816 = vmatprep.subr.bf16.mxu0 0
        %4817 = vmatpush1.bf16.msra.mxu0 0
        %4818 = vmatprep.subr.bf16.mxu0 0
        %4819 = vmatpush1.bf16.msra.mxu0 0
        %4820 = vmatprep.subr.bf16.mxu0 0
        %4821 = vmatpush1.bf16.msra.mxu0 0
        %4822 = vmatprep.subr.bf16.mxu0 0
        %4823 = vmatpush1.bf16.msra.mxu0 0
        %4824 = vmatprep.subr.bf16.mxu0 0
        %4825 = vmatpush1.bf16.msra.mxu0 0
        %4826 = vmatprep.subr.bf16.mxu0 0
        %4827 = vmatpush1.bf16.msra.mxu0 0
        %4828 = vmatprep.subr.bf16.mxu0 0
        %4829 = vmatpush1.bf16.msra.mxu0 0
        %4830 = vmatprep.subr.bf16.mxu0 0
        %4831 = vmatpush1.bf16.msra.mxu0 0
        %4832 = vmatprep.mubr.bf16.mxu0 0
        %4833 = vmatmul.mubr.bf16.gmra.mrb[0].mxu0 %v4727
        %v4834 = vpop.f32.mrb[0].mxu0
        %v4835 = vadd.f32 0.0, %v4834
        %v4836 = vpop.f32.mrb[0].mxu0
        %v4837 = vpop.f32.mrb[0].mxu0
        %v4838 = vadd.f32 0.0, %v4837
        %v4839 = vpop.f32.mrb[0].mxu0
        %4840 = vmatprep.mubr.bf16.mxu0 0
        %4841 = vmatmul.mubr.bf16.gmra.mrb[0].mxu0 %v4728
        %v4842 = vpop.f32.mrb[0].mxu0
        %v4843 = vadd.f32 0.0, %v4842
        %v4844 = vpop.f32.mrb[0].mxu0
        %v4845 = vpop.f32.mrb[0].mxu0
        %v4846 = vadd.f32 0.0, %v4845
        %v4847 = vpop.f32.mrb[0].mxu0
        %4848 = vmatprep.mubr.bf16.mxu0 0
        %4849 = vmatmul.mubr.bf16.gmra.mrb[0].mxu0 %v4729
        %v4850 = vpop.f32.mrb[0].mxu0
        %v4851 = vadd.f32 0.0, %v4850
        %v4852 = vpop.f32.mrb[0].mxu0
        %v4853 = vpop.f32.mrb[0].mxu0
        %v4854 = vadd.f32 0.0, %v4853
        %v4855 = vpop.f32.mrb[0].mxu0
        %4856 = vmatprep.mubr.bf16.mxu0 0
        %4857 = vmatmul.mubr.bf16.gmra.mrb[0].mxu0 %v4730
        %v4858 = vpop.f32.mrb[0].mxu0
        %v4859 = vadd.f32 0.0, %v4858
        %v4860 = vpop.f32.mrb[0].mxu0
        %v4861 = vpop.f32.mrb[0].mxu0
        %v4862 = vadd.f32 0.0, %v4861
        %v4863 = vpop.f32.mrb[0].mxu0
        %4864 = vmatprep.mubr.bf16.mxu0 0
        %4865 = vmatmul.mubr.bf16.gmra.mrb[0].mxu0 %v4731
        %v4866 = vpop.f32.mrb[0].mxu0
        %v4867 = vadd.f32 0.0, %v4866
        %v4868 = vpop.f32.mrb[0].mxu0
        %v4869 = vpop.f32.mrb[0].mxu0
        %v4870 = vadd.f32 0.0, %v4869
        %v4871 = vpop.f32.mrb[0].mxu0
        %4872 = vmatprep.mubr.bf16.mxu0 0
        %4873 = vmatmul.mubr.bf16.gmra.mrb[0].mxu0 %v4732
        %v4874 = vpop.f32.mrb[0].mxu0
        %v4875 = vadd.f32 0.0, %v4874
        %v4876 = vpop.f32.mrb[0].mxu0
        %v4877 = vpop.f32.mrb[0].mxu0
        %v4878 = vadd.f32 0.0, %v4877
        %v4879 = vpop.f32.mrb[0].mxu0
        %4880 = vmatprep.mubr.bf16.mxu0 0
        %4881 = vmatmul.mubr.bf16.gmra.mrb[0].mxu0 %v4733
        %v4882 = vpop.f32.mrb[0].mxu0
        %v4883 = vadd.f32 0.0, %v4882
        %v4884 = vpop.f32.mrb[0].mxu0
        %v4885 = vpop.f32.mrb[0].mxu0
        %v4886 = vadd.f32 0.0, %v4885
        %v4887 = vpop.f32.mrb[0].mxu0
        %4888 = vmatprep.mubr.bf16.mxu0 0
        %4889 = vmatmul.mubr.bf16.gmra.mrb[0].mxu0 %v4734
        %v4890 = vpop.f32.mrb[0].mxu0
        %v4891 = vadd.f32 0.0, %v4890
        %v4892 = vpop.f32.mrb[0].mxu0
        %v4893 = vpop.f32.mrb[0].mxu0
        %v4894 = vadd.f32 0.0, %v4893
        %v4895 = vpop.f32.mrb[0].mxu0
        %4896 = vdwg.mxu0
        %v4897 = vadd.f32 %v4695, %v4835
        %v4898 = vadd.f32 %v4696, %v4838
        %v4899 = vadd.f32 %v4697, %v4843
        %v4900 = vadd.f32 %v4698, %v4846
        %v4901 = vadd.f32 %v4699, %v4851
        %v4902 = vadd.f32 %v4700, %v4854
        %v4903 = vadd.f32 %v4701, %v4859
        %v4904 = vadd.f32 %v4702, %v4862
        %v4905 = vadd.f32 %v4703, %v4867
        %v4906 = vadd.f32 %v4704, %v4870
        %v4907 = vadd.f32 %v4705, %v4875
        %v4908 = vadd.f32 %v4706, %v4878
        %v4909 = vadd.f32 %v4707, %v4883
        %v4910 = vadd.f32 %v4708, %v4886
        %v4911 = vadd.f32 %v4709, %v4891
        %v4912 = vadd.f32 %v4710, %v4894
        %s4913 = scalar_lea.vmem [#allocation2], 64
        %v4914 = vld [vmem:[%s4913 + $0x7] sm:$0xff]
        %v4915 = vld [vmem:[%s4913 + $0xf] sm:$0xff]
        %v4916 = vld [vmem:[%s4913 + $0x27] sm:$0xff]
        %v4917 = vld [vmem:[%s4913 + $0x2f] sm:$0xff]
        %v4918 = vld [vmem:[%s4913 + $0x47] sm:$0xff]
        %v4919 = vld [vmem:[%s4913 + $0x4f] sm:$0xff]
        %v4920 = vld [vmem:[%s4913 + $0x67] sm:$0xff]
        %v4921 = vld [vmem:[%s4913 + $0x6f] sm:$0xff]
        %v4922 = vld [vmem:[%s4913 + $0x87] sm:$0xff]
        %v4923 = vld [vmem:[%s4913 + $0x8f] sm:$0xff]
        %v4924 = vld [vmem:[%s4913 + $0xa7] sm:$0xff]
        %v4925 = vld [vmem:[%s4913 + $0xaf] sm:$0xff]
        %v4926 = vld [vmem:[%s4913 + $0xc7] sm:$0xff]
        %v4927 = vld [vmem:[%s4913 + $0xcf] sm:$0xff]
        %v4928 = vld [vmem:[%s4913 + $0xe7] sm:$0xff]
        %v4929 = vld [vmem:[%s4913 + $0xef] sm:$0xff]
        %v4930 = vpack.c.bf16 %v4915, %v4914
        %v4931 = vpack.c.bf16 %v4917, %v4916
        %v4932 = vpack.c.bf16 %v4919, %v4918
        %v4933 = vpack.c.bf16 %v4921, %v4920
        %v4934 = vpack.c.bf16 %v4923, %v4922
        %v4935 = vpack.c.bf16 %v4925, %v4924
        %v4936 = vpack.c.bf16 %v4927, %v4926
        %v4937 = vpack.c.bf16 %v4929, %v4928
        %s4938 = scalar_lea.vmem [#allocation8], 384
        %v4939 = vld [vmem:[%s4938] sm:$0xf]
        %v4940 = vld [vmem:[%s4938 + $0x4] sm:$0xf]
        %v4941 = vld [vmem:[%s4938 + $0x8] sm:$0xf]
        %v4942 = vld [vmem:[%s4938 + $0xc] sm:$0xf]
        %v4943 = vld [vmem:[%s4938 + $0x10] sm:$0xf]
        %v4944 = vld [vmem:[%s4938 + $0x14] sm:$0xf]
        %v4945 = vld [vmem:[%s4938 + $0x18] sm:$0xf]
        %v4946 = vld [vmem:[%s4938 + $0x1c] sm:$0xf]
        %v4947 = vld [vmem:[%s4938 + $0x20] sm:$0xf]
        %v4948 = vld [vmem:[%s4938 + $0x24] sm:$0xf]
        %v4949 = vld [vmem:[%s4938 + $0x28] sm:$0xf]
        %v4950 = vld [vmem:[%s4938 + $0x2c] sm:$0xf]
        %v4951 = vld [vmem:[%s4938 + $0x30] sm:$0xf]
        %v4952 = vld [vmem:[%s4938 + $0x34] sm:$0xf]
        %v4953 = vld [vmem:[%s4938 + $0x38] sm:$0xf]
        %v4954 = vld [vmem:[%s4938 + $0x3c] sm:$0xf]
        %v4971 = vunpack.c.l.b16 %v4939
        %v4972 = vunpack.c.l.b16 %v4940
        %v4973 = vunpack.c.l.b16 %v4941
        %v4974 = vunpack.c.l.b16 %v4942
        %v4975 = vunpack.c.l.b16 %v4943
        %v4976 = vunpack.c.l.b16 %v4944
        %v4977 = vunpack.c.l.b16 %v4945
        %v4978 = vunpack.c.l.b16 %v4946
        %v4979 = vunpack.c.l.b16 %v4947
        %v4980 = vunpack.c.l.b16 %v4948
        %v4981 = vunpack.c.l.b16 %v4949
        %v4982 = vunpack.c.l.b16 %v4950
        %v4983 = vunpack.c.l.b16 %v4951
        %v4984 = vunpack.c.l.b16 %v4952
        %v4985 = vunpack.c.l.b16 %v4953
        %v4986 = vunpack.c.l.b16 %v4954
        %v4987 = vpack.c.b16 %v4972, %v4971
        %v4988 = vpack.c.b16 %v4974, %v4973
        %v4989 = vpack.c.b16 %v4976, %v4975
        %v4990 = vpack.c.b16 %v4978, %v4977
        %v4991 = vpack.c.b16 %v4980, %v4979
        %v4992 = vpack.c.b16 %v4982, %v4981
        %v4993 = vpack.c.b16 %v4984, %v4983
        %v4994 = vpack.c.b16 %v4986, %v4985
        %5003 = vmatprep.subr.bf16.mxu0 0
        %5004 = vmatpush1.bf16.msra.mxu0 %v4987
        %5005 = vmatprep.subr.bf16.mxu0 0
        %5006 = vmatpush1.bf16.msra.mxu0 %v4988
        %5007 = vmatprep.subr.bf16.mxu0 0
        %5008 = vmatpush1.bf16.msra.mxu0 %v4989
        %5009 = vmatprep.subr.bf16.mxu0 0
        %5010 = vmatpush1.bf16.msra.mxu0 %v4990
        %5011 = vmatprep.subr.bf16.mxu0 0
        %5012 = vmatpush1.bf16.msra.mxu0 %v4991
        %5013 = vmatprep.subr.bf16.mxu0 0
        %5014 = vmatpush1.bf16.msra.mxu0 %v4992
        %5015 = vmatprep.subr.bf16.mxu0 0
        %5016 = vmatpush1.bf16.msra.mxu0 %v4993
        %5017 = vmatprep.subr.bf16.mxu0 0
        %5018 = vmatpush1.bf16.msra.mxu0 %v4994
        %5019 = vmatprep.subr.bf16.mxu0 0
        %5020 = vmatpush1.bf16.msra.mxu0 0
        %5021 = vmatprep.subr.bf16.mxu0 0
        %5022 = vmatpush1.bf16.msra.mxu0 0
        %5023 = vmatprep.subr.bf16.mxu0 0
        %5024 = vmatpush1.bf16.msra.mxu0 0
        %5025 = vmatprep.subr.bf16.mxu0 0
        %5026 = vmatpush1.bf16.msra.mxu0 0
        %5027 = vmatprep.subr.bf16.mxu0 0
        %5028 = vmatpush1.bf16.msra.mxu0 0
        %5029 = vmatprep.subr.bf16.mxu0 0
        %5030 = vmatpush1.bf16.msra.mxu0 0
        %5031 = vmatprep.subr.bf16.mxu0 0
        %5032 = vmatpush1.bf16.msra.mxu0 0
        %5033 = vmatprep.subr.bf16.mxu0 0
        %5034 = vmatpush1.bf16.msra.mxu0 0
        %5035 = vmatprep.mubr.bf16.mxu0 0
        %5036 = vmatmul.mubr.bf16.gmra.mrb[0].mxu0 %v4930
        %v5037 = vpop.f32.mrb[0].mxu0
        %v5038 = vadd.f32 0.0, %v5037
        %v5039 = vpop.f32.mrb[0].mxu0
        %v5040 = vpop.f32.mrb[0].mxu0
        %v5041 = vadd.f32 0.0, %v5040
        %v5042 = vpop.f32.mrb[0].mxu0
        %5043 = vmatprep.mubr.bf16.mxu0 0
        %5044 = vmatmul.mubr.bf16.gmra.mrb[0].mxu0 %v4931
        %v5045 = vpop.f32.mrb[0].mxu0
        %v5046 = vadd.f32 0.0, %v5045
        %v5047 = vpop.f32.mrb[0].mxu0
        %v5048 = vpop.f32.mrb[0].mxu0
        %v5049 = vadd.f32 0.0, %v5048
        %v5050 = vpop.f32.mrb[0].mxu0
        %5051 = vmatprep.mubr.bf16.mxu0 0
        %5052 = vmatmul.mubr.bf16.gmra.mrb[0].mxu0 %v4932
        %v5053 = vpop.f32.mrb[0].mxu0
        %v5054 = vadd.f32 0.0, %v5053
        %v5055 = vpop.f32.mrb[0].mxu0
        %v5056 = vpop.f32.mrb[0].mxu0
        %v5057 = vadd.f32 0.0, %v5056
        %v5058 = vpop.f32.mrb[0].mxu0
        %5059 = vmatprep.mubr.bf16.mxu0 0
        %5060 = vmatmul.mubr.bf16.gmra.mrb[0].mxu0 %v4933
        %v5061 = vpop.f32.mrb[0].mxu0
        %v5062 = vadd.f32 0.0, %v5061
        %v5063 = vpop.f32.mrb[0].mxu0
        %v5064 = vpop.f32.mrb[0].mxu0
        %v5065 = vadd.f32 0.0, %v5064
        %v5066 = vpop.f32.mrb[0].mxu0
        %5067 = vmatprep.mubr.bf16.mxu0 0
        %5068 = vmatmul.mubr.bf16.gmra.mrb[0].mxu0 %v4934
        %v5069 = vpop.f32.mrb[0].mxu0
        %v5070 = vadd.f32 0.0, %v5069
        %v5071 = vpop.f32.mrb[0].mxu0
        %v5072 = vpop.f32.mrb[0].mxu0
        %v5073 = vadd.f32 0.0, %v5072
        %v5074 = vpop.f32.mrb[0].mxu0
        %5075 = vmatprep.mubr.bf16.mxu0 0
        %5076 = vmatmul.mubr.bf16.gmra.mrb[0].mxu0 %v4935
        %v5077 = vpop.f32.mrb[0].mxu0
        %v5078 = vadd.f32 0.0, %v5077
        %v5079 = vpop.f32.mrb[0].mxu0
        %v5080 = vpop.f32.mrb[0].mxu0
        %v5081 = vadd.f32 0.0, %v5080
        %v5082 = vpop.f32.mrb[0].mxu0
        %5083 = vmatprep.mubr.bf16.mxu0 0
        %5084 = vmatmul.mubr.bf16.gmra.mrb[0].mxu0 %v4936
        %v5085 = vpop.f32.mrb[0].mxu0
        %v5086 = vadd.f32 0.0, %v5085
        %v5087 = vpop.f32.mrb[0].mxu0
        %v5088 = vpop.f32.mrb[0].mxu0
        %v5089 = vadd.f32 0.0, %v5088
        %v5090 = vpop.f32.mrb[0].mxu0
        %5091 = vmatprep.mubr.bf16.mxu0 0
        %5092 = vmatmul.mubr.bf16.gmra.mrb[0].mxu0 %v4937
        %v5093 = vpop.f32.mrb[0].mxu0
        %v5094 = vadd.f32 0.0, %v5093
        %v5095 = vpop.f32.mrb[0].mxu0
        %v5096 = vpop.f32.mrb[0].mxu0
        %v5097 = vadd.f32 0.0, %v5096
        %v5098 = vpop.f32.mrb[0].mxu0
        %5099 = vdwg.mxu0
        %v5100 = vadd.f32 %v4897, %v5038
        %v5101 = vadd.f32 %v4898, %v5041
        %v5102 = vadd.f32 %v4899, %v5046
        %v5103 = vadd.f32 %v4900, %v5049
        %v5104 = vadd.f32 %v4901, %v5054
        %v5105 = vadd.f32 %v4902, %v5057
        %v5106 = vadd.f32 %v4903, %v5062
        %v5107 = vadd.f32 %v4904, %v5065
        %v5108 = vadd.f32 %v4905, %v5070
        %v5109 = vadd.f32 %v4906, %v5073
        %v5110 = vadd.f32 %v4907, %v5078
        %v5111 = vadd.f32 %v4908, %v5081
        %v5112 = vadd.f32 %v4909, %v5086
        %v5113 = vadd.f32 %v4910, %v5089
        %v5114 = vadd.f32 %v4911, %v5094
        %v5115 = vadd.f32 %v4912, %v5097
        %v5116 = vld [vmem:[%s4913 + $0x8] sm:$0xff]
        %v5117 = vld [vmem:[%s4913 + $0x10] sm:$0xff]
        %v5118 = vld [vmem:[%s4913 + $0x28] sm:$0xff]
        %v5119 = vld [vmem:[%s4913 + $0x30] sm:$0xff]
        %v5120 = vld [vmem:[%s4913 + $0x48] sm:$0xff]
        %v5121 = vld [vmem:[%s4913 + $0x50] sm:$0xff]
        %v5122 = vld [vmem:[%s4913 + $0x68] sm:$0xff]
        %v5123 = vld [vmem:[%s4913 + $0x70] sm:$0xff]
        %v5124 = vld [vmem:[%s4913 + $0x88] sm:$0xff]
        %v5125 = vld [vmem:[%s4913 + $0x90] sm:$0xff]
        %v5126 = vld [vmem:[%s4913 + $0xa8] sm:$0xff]
        %v5127 = vld [vmem:[%s4913 + $0xb0] sm:$0xff]
        %v5128 = vld [vmem:[%s4913 + $0xc8] sm:$0xff]
        %v5129 = vld [vmem:[%s4913 + $0xd0] sm:$0xff]
        %v5130 = vld [vmem:[%s4913 + $0xe8] sm:$0xff]
        %v5131 = vld [vmem:[%s4913 + $0xf0] sm:$0xff]
        %v5132 = vpack.c.bf16 %v5117, %v5116
        %v5133 = vpack.c.bf16 %v5119, %v5118
        %v5134 = vpack.c.bf16 %v5121, %v5120
        %v5135 = vpack.c.bf16 %v5123, %v5122
        %v5136 = vpack.c.bf16 %v5125, %v5124
        %v5137 = vpack.c.bf16 %v5127, %v5126
        %v5138 = vpack.c.bf16 %v5129, %v5128
        %v5139 = vpack.c.bf16 %v5131, %v5130
        %s5140 = scalar_lea.vmem [#allocation8], 448
        %v5141 = vld [vmem:[%s5140] sm:$0xf]
        %v5142 = vld [vmem:[%s5140 + $0x4] sm:$0xf]
        %v5143 = vld [vmem:[%s5140 + $0x8] sm:$0xf]
        %v5144 = vld [vmem:[%s5140 + $0xc] sm:$0xf]
        %v5145 = vld [vmem:[%s5140 + $0x10] sm:$0xf]
        %v5146 = vld [vmem:[%s5140 + $0x14] sm:$0xf]
        %v5147 = vld [vmem:[%s5140 + $0x18] sm:$0xf]
        %v5148 = vld [vmem:[%s5140 + $0x1c] sm:$0xf]
        %v5149 = vld [vmem:[%s5140 + $0x20] sm:$0xf]
        %v5150 = vld [vmem:[%s5140 + $0x24] sm:$0xf]
        %v5151 = vld [vmem:[%s5140 + $0x28] sm:$0xf]
        %v5152 = vld [vmem:[%s5140 + $0x2c] sm:$0xf]
        %v5153 = vld [vmem:[%s5140 + $0x30] sm:$0xf]
        %v5154 = vld [vmem:[%s5140 + $0x34] sm:$0xf]
        %v5155 = vld [vmem:[%s5140 + $0x38] sm:$0xf]
        %v5156 = vld [vmem:[%s5140 + $0x3c] sm:$0xf]
        %v5173 = vunpack.c.l.b16 %v5141
        %v5174 = vunpack.c.l.b16 %v5142
        %v5175 = vunpack.c.l.b16 %v5143
        %v5176 = vunpack.c.l.b16 %v5144
        %v5177 = vunpack.c.l.b16 %v5145
        %v5178 = vunpack.c.l.b16 %v5146
        %v5179 = vunpack.c.l.b16 %v5147
        %v5180 = vunpack.c.l.b16 %v5148
        %v5181 = vunpack.c.l.b16 %v5149
        %v5182 = vunpack.c.l.b16 %v5150
        %v5183 = vunpack.c.l.b16 %v5151
        %v5184 = vunpack.c.l.b16 %v5152
        %v5185 = vunpack.c.l.b16 %v5153
        %v5186 = vunpack.c.l.b16 %v5154
        %v5187 = vunpack.c.l.b16 %v5155
        %v5188 = vunpack.c.l.b16 %v5156
        %v5189 = vpack.c.b16 %v5174, %v5173
        %v5190 = vpack.c.b16 %v5176, %v5175
        %v5191 = vpack.c.b16 %v5178, %v5177
        %v5192 = vpack.c.b16 %v5180, %v5179
        %v5193 = vpack.c.b16 %v5182, %v5181
        %v5194 = vpack.c.b16 %v5184, %v5183
        %v5195 = vpack.c.b16 %v5186, %v5185
        %v5196 = vpack.c.b16 %v5188, %v5187
        %5205 = vmatprep.subr.bf16.mxu0 0
        %5206 = vmatpush1.bf16.msra.mxu0 %v5189
        %5207 = vmatprep.subr.bf16.mxu0 0
        %5208 = vmatpush1.bf16.msra.mxu0 %v5190
        %5209 = vmatprep.subr.bf16.mxu0 0
        %5210 = vmatpush1.bf16.msra.mxu0 %v5191
        %5211 = vmatprep.subr.bf16.mxu0 0
        %5212 = vmatpush1.bf16.msra.mxu0 %v5192
        %5213 = vmatprep.subr.bf16.mxu0 0
        %5214 = vmatpush1.bf16.msra.mxu0 %v5193
        %5215 = vmatprep.subr.bf16.mxu0 0
        %5216 = vmatpush1.bf16.msra.mxu0 %v5194
        %5217 = vmatprep.subr.bf16.mxu0 0
        %5218 = vmatpush1.bf16.msra.mxu0 %v5195
        %5219 = vmatprep.subr.bf16.mxu0 0
        %5220 = vmatpush1.bf16.msra.mxu0 %v5196
        %5221 = vmatprep.subr.bf16.mxu0 0
        %5222 = vmatpush1.bf16.msra.mxu0 0
        %5223 = vmatprep.subr.bf16.mxu0 0
        %5224 = vmatpush1.bf16.msra.mxu0 0
        %5225 = vmatprep.subr.bf16.mxu0 0
        %5226 = vmatpush1.bf16.msra.mxu0 0
        %5227 = vmatprep.subr.bf16.mxu0 0
        %5228 = vmatpush1.bf16.msra.mxu0 0
        %5229 = vmatprep.subr.bf16.mxu0 0
        %5230 = vmatpush1.bf16.msra.mxu0 0
        %5231 = vmatprep.subr.bf16.mxu0 0
        %5232 = vmatpush1.bf16.msra.mxu0 0
        %5233 = vmatprep.subr.bf16.mxu0 0
        %5234 = vmatpush1.bf16.msra.mxu0 0
        %5235 = vmatprep.subr.bf16.mxu0 0
        %5236 = vmatpush1.bf16.msra.mxu0 0
        %5237 = vmatprep.mubr.bf16.mxu0 0
        %5238 = vmatmul.mubr.bf16.gmra.mrb[0].mxu0 %v5132
        %v5239 = vpop.f32.mrb[0].mxu0
        %v5240 = vadd.f32 0.0, %v5239
        %v5241 = vpop.f32.mrb[0].mxu0
        %v5242 = vpop.f32.mrb[0].mxu0
        %v5243 = vadd.f32 0.0, %v5242
        %v5244 = vpop.f32.mrb[0].mxu0
        %5245 = vmatprep.mubr.bf16.mxu0 0
        %5246 = vmatmul.mubr.bf16.gmra.mrb[0].mxu0 %v5133
        %v5247 = vpop.f32.mrb[0].mxu0
        %v5248 = vadd.f32 0.0, %v5247
        %v5249 = vpop.f32.mrb[0].mxu0
        %v5250 = vpop.f32.mrb[0].mxu0
        %v5251 = vadd.f32 0.0, %v5250
        %v5252 = vpop.f32.mrb[0].mxu0
        %5253 = vmatprep.mubr.bf16.mxu0 0
        %5254 = vmatmul.mubr.bf16.gmra.mrb[0].mxu0 %v5134
        %v5255 = vpop.f32.mrb[0].mxu0
        %v5256 = vadd.f32 0.0, %v5255
        %v5257 = vpop.f32.mrb[0].mxu0
        %v5258 = vpop.f32.mrb[0].mxu0
        %v5259 = vadd.f32 0.0, %v5258
        %v5260 = vpop.f32.mrb[0].mxu0
        %5261 = vmatprep.mubr.bf16.mxu0 0
        %5262 = vmatmul.mubr.bf16.gmra.mrb[0].mxu0 %v5135
        %v5263 = vpop.f32.mrb[0].mxu0
        %v5264 = vadd.f32 0.0, %v5263
        %v5265 = vpop.f32.mrb[0].mxu0
        %v5266 = vpop.f32.mrb[0].mxu0
        %v5267 = vadd.f32 0.0, %v5266
        %v5268 = vpop.f32.mrb[0].mxu0
        %5269 = vmatprep.mubr.bf16.mxu0 0
        %5270 = vmatmul.mubr.bf16.gmra.mrb[0].mxu0 %v5136
        %v5271 = vpop.f32.mrb[0].mxu0
        %v5272 = vadd.f32 0.0, %v5271
        %v5273 = vpop.f32.mrb[0].mxu0
        %v5274 = vpop.f32.mrb[0].mxu0
        %v5275 = vadd.f32 0.0, %v5274
        %v5276 = vpop.f32.mrb[0].mxu0
        %5277 = vmatprep.mubr.bf16.mxu0 0
        %5278 = vmatmul.mubr.bf16.gmra.mrb[0].mxu0 %v5137
        %v5279 = vpop.f32.mrb[0].mxu0
        %v5280 = vadd.f32 0.0, %v5279
        %v5281 = vpop.f32.mrb[0].mxu0
        %v5282 = vpop.f32.mrb[0].mxu0
        %v5283 = vadd.f32 0.0, %v5282
        %v5284 = vpop.f32.mrb[0].mxu0
        %5285 = vmatprep.mubr.bf16.mxu0 0
        %5286 = vmatmul.mubr.bf16.gmra.mrb[0].mxu0 %v5138
        %v5287 = vpop.f32.mrb[0].mxu0
        %v5288 = vadd.f32 0.0, %v5287
        %v5289 = vpop.f32.mrb[0].mxu0
        %v5290 = vpop.f32.mrb[0].mxu0
        %v5291 = vadd.f32 0.0, %v5290
        %v5292 = vpop.f32.mrb[0].mxu0
        %5293 = vmatprep.mubr.bf16.mxu0 0
        %5294 = vmatmul.mubr.bf16.gmra.mrb[0].mxu0 %v5139
        %v5295 = vpop.f32.mrb[0].mxu0
        %v5296 = vadd.f32 0.0, %v5295
        %v5297 = vpop.f32.mrb[0].mxu0
        %v5298 = vpop.f32.mrb[0].mxu0
        %v5299 = vadd.f32 0.0, %v5298
        %v5300 = vpop.f32.mrb[0].mxu0
        %5301 = vdwg.mxu0
        %v5302 = vadd.f32 %v5100, %v5240
        %v5303 = vadd.f32 %v5101, %v5243
        %v5304 = vadd.f32 %v5102, %v5248
        %v5305 = vadd.f32 %v5103, %v5251
        %v5306 = vadd.f32 %v5104, %v5256
        %v5307 = vadd.f32 %v5105, %v5259
        %v5308 = vadd.f32 %v5106, %v5264
        %v5309 = vadd.f32 %v5107, %v5267
        %v5310 = vadd.f32 %v5108, %v5272
        %v5311 = vadd.f32 %v5109, %v5275
        %v5312 = vadd.f32 %v5110, %v5280
        %v5313 = vadd.f32 %v5111, %v5283
        %v5314 = vadd.f32 %v5112, %v5288
        %v5315 = vadd.f32 %v5113, %v5291
        %v5316 = vadd.f32 %v5114, %v5296
        %v5317 = vadd.f32 %v5115, %v5299
        %v5318 = vld [vmem:[%s4913 + $0x9] sm:$0xff]
        %v5319 = vld [vmem:[%s4913 + $0x11] sm:$0xff]
        %v5320 = vld [vmem:[%s4913 + $0x29] sm:$0xff]
        %v5321 = vld [vmem:[%s4913 + $0x31] sm:$0xff]
        %v5322 = vld [vmem:[%s4913 + $0x49] sm:$0xff]
        %v5323 = vld [vmem:[%s4913 + $0x51] sm:$0xff]
        %v5324 = vld [vmem:[%s4913 + $0x69] sm:$0xff]
        %v5325 = vld [vmem:[%s4913 + $0x71] sm:$0xff]
        %v5326 = vld [vmem:[%s4913 + $0x89] sm:$0xff]
        %v5327 = vld [vmem:[%s4913 + $0x91] sm:$0xff]
        %v5328 = vld [vmem:[%s4913 + $0xa9] sm:$0xff]
        %v5329 = vld [vmem:[%s4913 + $0xb1] sm:$0xff]
        %v5330 = vld [vmem:[%s4913 + $0xc9] sm:$0xff]
        %v5331 = vld [vmem:[%s4913 + $0xd1] sm:$0xff]
        %v5332 = vld [vmem:[%s4913 + $0xe9] sm:$0xff]
        %v5333 = vld [vmem:[%s4913 + $0xf1] sm:$0xff]
        %v5334 = vpack.c.bf16 %v5319, %v5318
        %v5335 = vpack.c.bf16 %v5321, %v5320
        %v5336 = vpack.c.bf16 %v5323, %v5322
        %v5337 = vpack.c.bf16 %v5325, %v5324
        %v5338 = vpack.c.bf16 %v5327, %v5326
        %v5339 = vpack.c.bf16 %v5329, %v5328
        %v5340 = vpack.c.bf16 %v5331, %v5330
        %v5341 = vpack.c.bf16 %v5333, %v5332
        %s5342 = scalar_lea.vmem [#allocation8], 512
        %v5343 = vld [vmem:[%s5342] sm:$0xf]
        %v5344 = vld [vmem:[%s5342 + $0x4] sm:$0xf]
        %v5345 = vld [vmem:[%s5342 + $0x8] sm:$0xf]
        %v5346 = vld [vmem:[%s5342 + $0xc] sm:$0xf]
        %v5347 = vld [vmem:[%s5342 + $0x10] sm:$0xf]
        %v5348 = vld [vmem:[%s5342 + $0x14] sm:$0xf]
        %v5349 = vld [vmem:[%s5342 + $0x18] sm:$0xf]
        %v5350 = vld [vmem:[%s5342 + $0x1c] sm:$0xf]
        %v5351 = vld [vmem:[%s5342 + $0x20] sm:$0xf]
        %v5352 = vld [vmem:[%s5342 + $0x24] sm:$0xf]
        %v5353 = vld [vmem:[%s5342 + $0x28] sm:$0xf]
        %v5354 = vld [vmem:[%s5342 + $0x2c] sm:$0xf]
        %v5355 = vld [vmem:[%s5342 + $0x30] sm:$0xf]
        %v5356 = vld [vmem:[%s5342 + $0x34] sm:$0xf]
        %v5357 = vld [vmem:[%s5342 + $0x38] sm:$0xf]
        %v5358 = vld [vmem:[%s5342 + $0x3c] sm:$0xf]
        %v5375 = vunpack.c.l.b16 %v5343
        %v5376 = vunpack.c.l.b16 %v5344
        %v5377 = vunpack.c.l.b16 %v5345
        %v5378 = vunpack.c.l.b16 %v5346
        %v5379 = vunpack.c.l.b16 %v5347
        %v5380 = vunpack.c.l.b16 %v5348
        %v5381 = vunpack.c.l.b16 %v5349
        %v5382 = vunpack.c.l.b16 %v5350
        %v5383 = vunpack.c.l.b16 %v5351
        %v5384 = vunpack.c.l.b16 %v5352
        %v5385 = vunpack.c.l.b16 %v5353
        %v5386 = vunpack.c.l.b16 %v5354
        %v5387 = vunpack.c.l.b16 %v5355
        %v5388 = vunpack.c.l.b16 %v5356
        %v5389 = vunpack.c.l.b16 %v5357
        %v5390 = vunpack.c.l.b16 %v5358
        %v5391 = vpack.c.b16 %v5376, %v5375
        %v5392 = vpack.c.b16 %v5378, %v5377
        %v5393 = vpack.c.b16 %v5380, %v5379
        %v5394 = vpack.c.b16 %v5382, %v5381
        %v5395 = vpack.c.b16 %v5384, %v5383
        %v5396 = vpack.c.b16 %v5386, %v5385
        %v5397 = vpack.c.b16 %v5388, %v5387
        %v5398 = vpack.c.b16 %v5390, %v5389
        %5407 = vmatprep.subr.bf16.mxu0 0
        %5408 = vmatpush1.bf16.msra.mxu0 %v5391
        %5409 = vmatprep.subr.bf16.mxu0 0
        %5410 = vmatpush1.bf16.msra.mxu0 %v5392
        %5411 = vmatprep.subr.bf16.mxu0 0
        %5412 = vmatpush1.bf16.msra.mxu0 %v5393
        %5413 = vmatprep.subr.bf16.mxu0 0
        %5414 = vmatpush1.bf16.msra.mxu0 %v5394
        %5415 = vmatprep.subr.bf16.mxu0 0
        %5416 = vmatpush1.bf16.msra.mxu0 %v5395
        %5417 = vmatprep.subr.bf16.mxu0 0
        %5418 = vmatpush1.bf16.msra.mxu0 %v5396
        %5419 = vmatprep.subr.bf16.mxu0 0
        %5420 = vmatpush1.bf16.msra.mxu0 %v5397
        %5421 = vmatprep.subr.bf16.mxu0 0
        %5422 = vmatpush1.bf16.msra.mxu0 %v5398
        %5423 = vmatprep.subr.bf16.mxu0 0
        %5424 = vmatpush1.bf16.msra.mxu0 0
        %5425 = vmatprep.subr.bf16.mxu0 0
        %5426 = vmatpush1.bf16.msra.mxu0 0
        %5427 = vmatprep.subr.bf16.mxu0 0
        %5428 = vmatpush1.bf16.msra.mxu0 0
        %5429 = vmatprep.subr.bf16.mxu0 0
        %5430 = vmatpush1.bf16.msra.mxu0 0
        %5431 = vmatprep.subr.bf16.mxu0 0
        %5432 = vmatpush1.bf16.msra.mxu0 0
        %5433 = vmatprep.subr.bf16.mxu0 0
        %5434 = vmatpush1.bf16.msra.mxu0 0
        %5435 = vmatprep.subr.bf16.mxu0 0
        %5436 = vmatpush1.bf16.msra.mxu0 0
        %5437 = vmatprep.subr.bf16.mxu0 0
        %5438 = vmatpush1.bf16.msra.mxu0 0
        %5439 = vmatprep.mubr.bf16.mxu0 0
        %5440 = vmatmul.mubr.bf16.gmra.mrb[0].mxu0 %v5334
        %v5441 = vpop.f32.mrb[0].mxu0
        %v5442 = vadd.f32 0.0, %v5441
        %v5443 = vpop.f32.mrb[0].mxu0
        %v5444 = vpop.f32.mrb[0].mxu0
        %v5445 = vadd.f32 0.0, %v5444
        %v5446 = vpop.f32.mrb[0].mxu0
        %5447 = vmatprep.mubr.bf16.mxu0 0
        %5448 = vmatmul.mubr.bf16.gmra.mrb[0].mxu0 %v5335
        %v5449 = vpop.f32.mrb[0].mxu0
        %v5450 = vadd.f32 0.0, %v5449
        %v5451 = vpop.f32.mrb[0].mxu0
        %v5452 = vpop.f32.mrb[0].mxu0
        %v5453 = vadd.f32 0.0, %v5452
        %v5454 = vpop.f32.mrb[0].mxu0
        %5455 = vmatprep.mubr.bf16.mxu0 0
        %5456 = vmatmul.mubr.bf16.gmra.mrb[0].mxu0 %v5336
        %v5457 = vpop.f32.mrb[0].mxu0
        %v5458 = vadd.f32 0.0, %v5457
        %v5459 = vpop.f32.mrb[0].mxu0
        %v5460 = vpop.f32.mrb[0].mxu0
        %v5461 = vadd.f32 0.0, %v5460
        %v5462 = vpop.f32.mrb[0].mxu0
        %5463 = vmatprep.mubr.bf16.mxu0 0
        %5464 = vmatmul.mubr.bf16.gmra.mrb[0].mxu0 %v5337
        %v5465 = vpop.f32.mrb[0].mxu0
        %v5466 = vadd.f32 0.0, %v5465
        %v5467 = vpop.f32.mrb[0].mxu0
        %v5468 = vpop.f32.mrb[0].mxu0
        %v5469 = vadd.f32 0.0, %v5468
        %v5470 = vpop.f32.mrb[0].mxu0
        %5471 = vmatprep.mubr.bf16.mxu0 0
        %5472 = vmatmul.mubr.bf16.gmra.mrb[0].mxu0 %v5338
        %v5473 = vpop.f32.mrb[0].mxu0
        %v5474 = vadd.f32 0.0, %v5473
        %v5475 = vpop.f32.mrb[0].mxu0
        %v5476 = vpop.f32.mrb[0].mxu0
        %v5477 = vadd.f32 0.0, %v5476
        %v5478 = vpop.f32.mrb[0].mxu0
        %5479 = vmatprep.mubr.bf16.mxu0 0
        %5480 = vmatmul.mubr.bf16.gmra.mrb[0].mxu0 %v5339
        %v5481 = vpop.f32.mrb[0].mxu0
        %v5482 = vadd.f32 0.0, %v5481
        %v5483 = vpop.f32.mrb[0].mxu0
        %v5484 = vpop.f32.mrb[0].mxu0
        %v5485 = vadd.f32 0.0, %v5484
        %v5486 = vpop.f32.mrb[0].mxu0
        %5487 = vmatprep.mubr.bf16.mxu0 0
        %5488 = vmatmul.mubr.bf16.gmra.mrb[0].mxu0 %v5340
        %v5489 = vpop.f32.mrb[0].mxu0
        %v5490 = vadd.f32 0.0, %v5489
        %v5491 = vpop.f32.mrb[0].mxu0
        %v5492 = vpop.f32.mrb[0].mxu0
        %v5493 = vadd.f32 0.0, %v5492
        %v5494 = vpop.f32.mrb[0].mxu0
        %5495 = vmatprep.mubr.bf16.mxu0 0
        %5496 = vmatmul.mubr.bf16.gmra.mrb[0].mxu0 %v5341
        %v5497 = vpop.f32.mrb[0].mxu0
        %v5498 = vadd.f32 0.0, %v5497
        %v5499 = vpop.f32.mrb[0].mxu0
        %v5500 = vpop.f32.mrb[0].mxu0
        %v5501 = vadd.f32 0.0, %v5500
        %v5502 = vpop.f32.mrb[0].mxu0
        %5503 = vdwg.mxu0
        %v5504 = vadd.f32 %v5302, %v5442
        %v5505 = vadd.f32 %v5303, %v5445
        %v5506 = vadd.f32 %v5304, %v5450
        %v5507 = vadd.f32 %v5305, %v5453
        %v5508 = vadd.f32 %v5306, %v5458
        %v5509 = vadd.f32 %v5307, %v5461
        %v5510 = vadd.f32 %v5308, %v5466
        %v5511 = vadd.f32 %v5309, %v5469
        %v5512 = vadd.f32 %v5310, %v5474
        %v5513 = vadd.f32 %v5311, %v5477
        %v5514 = vadd.f32 %v5312, %v5482
        %v5515 = vadd.f32 %v5313, %v5485
        %v5516 = vadd.f32 %v5314, %v5490
        %v5517 = vadd.f32 %v5315, %v5493
        %v5518 = vadd.f32 %v5316, %v5498
        %v5519 = vadd.f32 %v5317, %v5501
        %v5520 = vld [vmem:[%s4] sm:$0x1]
        %v5522 = vlaneseq
        %v5523 = vshrl.u32 %v5522, 7
        %v5524 = vsub.s32 0, %v5523
        %v5525 = vrot.slane %v5520, %v5524
        %v5527 = vadd.f32 %v5504, %v5525
        %v5528 = vadd.f32 %v5505, %v5525
        %v5529 = vadd.f32 %v5506, %v5525
        %v5530 = vadd.f32 %v5507, %v5525
        %v5531 = vadd.f32 %v5508, %v5525
        %v5532 = vadd.f32 %v5509, %v5525
        %v5533 = vadd.f32 %v5510, %v5525
        %v5534 = vadd.f32 %v5511, %v5525
        %v5535 = vadd.f32 %v5512, %v5525
        %v5536 = vadd.f32 %v5513, %v5525
        %v5537 = vadd.f32 %v5514, %v5525
        %v5538 = vadd.f32 %v5515, %v5525
        %v5539 = vadd.f32 %v5516, %v5525
        %v5540 = vadd.f32 %v5517, %v5525
        %v5541 = vadd.f32 %v5518, %v5525
        %v5542 = vadd.f32 %v5519, %v5525
        %v5543 = vmax.f32 %v5527, 0.0
        %v5544 = vmax.f32 %v5528, 0.0
        %v5545 = vmax.f32 %v5529, 0.0
        %v5546 = vmax.f32 %v5530, 0.0
        %v5547 = vmax.f32 %v5531, 0.0
        %v5548 = vmax.f32 %v5532, 0.0
        %v5549 = vmax.f32 %v5533, 0.0
        %v5550 = vmax.f32 %v5534, 0.0
        %v5551 = vmax.f32 %v5535, 0.0
        %v5552 = vmax.f32 %v5536, 0.0
        %v5553 = vmax.f32 %v5537, 0.0
        %v5554 = vmax.f32 %v5538, 0.0
        %v5555 = vmax.f32 %v5539, 0.0
        %v5556 = vmax.f32 %v5540, 0.0
        %v5557 = vmax.f32 %v5541, 0.0
        %v5558 = vmax.f32 %v5542, 0.0
        %5559 = vst [vmem:[%s289] sm:$0xff] %v5543
        %5560 = vst [vmem:[%s289 + $0x8] sm:$0xff] %v5544
        %5561 = vst [vmem:[%s289 + $0x10] sm:$0xff] %v5545
        %5562 = vst [vmem:[%s289 + $0x18] sm:$0xff] %v5546
        %5563 = vst [vmem:[%s289 + $0x20] sm:$0xff] %v5547
        %5564 = vst [vmem:[%s289 + $0x28] sm:$0xff] %v5548
        %5565 = vst [vmem:[%s289 + $0x30] sm:$0xff] %v5549
        %5566 = vst [vmem:[%s289 + $0x38] sm:$0xff] %v5550
        %5567 = vst [vmem:[%s289 + $0x40] sm:$0xff] %v5551
        %5568 = vst [vmem:[%s289 + $0x48] sm:$0xff] %v5552
        %5569 = vst [vmem:[%s289 + $0x50] sm:$0xff] %v5553
        %5570 = vst [vmem:[%s289 + $0x58] sm:$0xff] %v5554
        %5571 = vst [vmem:[%s289 + $0x60] sm:$0xff] %v5555
        %5572 = vst [vmem:[%s289 + $0x68] sm:$0xff] %v5556
        %5573 = vst [vmem:[%s289 + $0x70] sm:$0xff] %v5557
        %5574 = vst [vmem:[%s289 + $0x78] sm:$0xff] %v5558
        %s5575 = sand.u32 %s157, 1
        %s5576 = scalar_lea.sflag [#allocation5], %s5575
        %s5577 = sand.u32 %s157, 1
        %s5578 = smul.addr %s5577, 128
        %s5579 = scalar_lea.vmem [#allocation9], %s5578
        // Predicated region
        $region61: #{tpu_custom_call.1} parent=39 // pred_check
          %p5580 = pneg %p167
        $region62: #{tpu_custom_call.1} parent=39 // pred_check_branch
          %5582 = sbr.rel (%p5580) target = $region64
        $region63: #{tpu_custom_call.1} parent=39 // pred_region
          %s5583 = smul.u32 8, %s28
          %s5585 = ssub.s32 2048, 2048
          %5586 = vsyncadd %s5576, %s5585
          %s5587 = smul.addr %s5583, 2
          %s5588 = smul.addr %s27, 32
          %s5589 = sadd.s32 %s5587, %s5588
          %s5590 = smul.addr %s5589, 128
          %s5591 = scalar_lea.hbm %s5, %s5590
          %s5592 = sshll.u32 %s5579, 4
          %s5593 = int_to_ptr.vmem [resolvable:$true] %s5592
          %5598 = dma.vmem_to_hbm [thread:$0]  %s5593, 2048, %s5591, %s5576, 128, 128, 8
        $region64: #{tpu_custom_call.1} parent=39 // pred_fallthru
          _
      $region40: #{tpu_custom_call.1} parent=5 // pred_fallthru
        _
      %p5599 = scmp.le.s32.totalorder 2, %s18
      // Predicated region
      $region65: #{tpu_custom_call.1} parent=5 // pred_check
        %p5600 = pneg %p5599
      $region66: #{tpu_custom_call.1} parent=5 // pred_check_branch
        %5602 = sbr.rel (%p5600) target = $region68
      $region67: #{tpu_custom_call.1} parent=5 // pred_region
        %s5603 = ssub.s32 %s18, 2
        // Predicated region
        $region69: #{tpu_custom_call.1} parent=67 // pred_check
          %p5604 = pneg %p173
        $region70: #{tpu_custom_call.1} parent=67 // pred_check_branch
          %5606 = sbr.rel (%p5604) target = $region72
        $region71: #{tpu_custom_call.1} parent=67 // pred_region
          %s5607 = sand.u32 %s158, 1
          %s5608 = scalar_lea.sflag [#allocation5], %s5607
          %s5609 = sand.u32 %s158, 1
          %s5610 = smul.addr %s5609, 128
          %s5611 = scalar_lea.vmem [#allocation9], %s5610
          %5612 = dma.done %s5608, 2048
        $region72: #{tpu_custom_call.1} parent=67 // pred_fallthru
          _
      $region68: #{tpu_custom_call.1} parent=5 // pred_fallthru
        _
    $region6: #{tpu_custom_call.1} parent=1 // loop_footer
      %s22 = sadd.s32 1, %s18
    $region7: #{tpu_custom_call.1} parent=1 // loop_footer_branch
      %17 = sbr.rel target = $region3
    $region8: #{tpu_custom_call.1} parent=1 // loop_exit
      _
    %5613 = vsyncpa [#allocation4], 1
    %s5614 = scalar_lea.sflag [#allocation4], 1
    %5615 = vsyncpa %s5614, 1
    %5616 = vsyncpa [#allocation7], 1
    %5617 = vsyncpa [#allocation5], 1
    %s5618 = scalar_lea.sflag [#allocation5], 1
    %5619 = vsyncpa %s5618, 1

</llo_original>
